<compile_context>
chip_gen: v7x
topology: tpu7x:2x2x1
jax: 0.10.0
libtpu: 0.0.40
codegen_flags: <defaults>
</compile_context>

<pallas_src>
import jax
import jax.numpy as jnp
from jax.experimental import pallas as pl
from jax.experimental.pallas import tpu as pltpu

H = 1000          # torch hidden size
H_PAD = 1024      # 8 * 128
OUT = 784         # 28 * 28
OUT_PAD = 896     # 7 * 128


def _leaky_relu(x, slope=0.01):
    # torch.nn.LeakyReLU default negative_slope = 0.01
    return jnp.where(x > 0, x, slope * x)


def decoder_kernel(x_ref,
                   w1_ref, s1_ref, b1_ref,
                   w2_ref, s2_ref, b2_ref,
                   w3_ref, s3_ref, b3_ref,
                   o_ref):
    # int8 weights -> bf16 MXU operands (exact cast); per-output-channel scales
    # applied to the small (B, out) matmul result; f32 accumulation throughout.
    x = x_ref[...].astype(jnp.bfloat16)                                    # (B, Z)

    h1 = jnp.dot(x, w1_ref[...].astype(jnp.bfloat16),
                 preferred_element_type=jnp.float32)                       # (B, 1024)
    h1 = _leaky_relu(h1 * s1_ref[...] + b1_ref[...])

    h2 = jnp.dot(h1.astype(jnp.bfloat16), w2_ref[...].astype(jnp.bfloat16),
                 preferred_element_type=jnp.float32)                       # (B, 1024)
    h2 = _leaky_relu(h2 * s2_ref[...] + b2_ref[...])

    h3 = jnp.dot(h2.astype(jnp.bfloat16), w3_ref[...].astype(jnp.bfloat16),
                 preferred_element_type=jnp.float32)                       # (B, 896)
    o_ref[...] = jax.nn.sigmoid(h3 * s3_ref[...] + b3_ref[...])


@jax.jit
def decoder_forward(x, params):
    """x: (B, Z) float32 -> (B, 1, 28, 28) float32 (matches torch NCHW view)."""
    B, Z = x.shape
    weight_bytes = sum(int(a.size) * a.dtype.itemsize for a in params)
    cost = pl.CostEstimate(
        flops=2 * B * (Z * H_PAD + H_PAD * H_PAD + H_PAD * OUT_PAD),
        transcendentals=B * OUT_PAD,                     # sigmoid exp
        bytes_accessed=int(weight_bytes + x.size * 4 + B * OUT_PAD * 4),
    )
    out_pad = pl.pallas_call(
        decoder_kernel,
        out_shape=jax.ShapeDtypeStruct((B, OUT_PAD), jnp.float32),
        # No grid / no in_specs: full arrays placed in VMEM once (no pipeline,
        # no double-buffered copies of the weights). Total footprint ~2.2 MB.
        compiler_params=pltpu.CompilerParams(vmem_limit_bytes=12 << 20),
        cost_estimate=cost,
    )(x, *params)
    # Slice away zero-padded output columns, then torch: x.view(-1, 1, 28, 28)
    return out_pad[:, :OUT].reshape(-1, 1, 28, 28)


def _pad_to(a, shape):
    return jnp.pad(a, [(0, t - s) for s, t in zip(a.shape, shape)])


def _quantize_per_col(w):
    """Symmetric per-output-channel int8 quantization. Zero-padded columns get
    scale 1 and q == 0, preserving the zero-fill invariant."""
    amax = jnp.max(jnp.abs(w), axis=0, keepdims=True)          # (1, out)
    scale = jnp.where(amax > 0, amax / 127.0, 1.0)
    q = jnp.round(w / scale).astype(jnp.int8)
    return q, scale.astype(jnp.float32)


def init_params(key, z):
    """torch.nn.Linear-style U(-1/sqrt(fan_in), 1/sqrt(fan_in)) init at the true
    shapes, zero-padded to 128-aligned shapes. Returns
      qparams: (w1_i8, s1, b1, w2_i8, s2, b2, w3_i8, s3, b3)   (kernel inputs)
      fparams: (w1_f32, b1, w2_f32, b2, w3_f32, b3)            (f32 reference)
    """
    dims = [(z, H), (H, H), (H, OUT)]
    padded = [(z, H_PAD), (H_PAD, H_PAD), (H_PAD, OUT_PAD)]
    qparams, fparams = [], []
    for (fan_in, fan_out), pshape in zip(dims, padded):
        key, kw, kb = jax.random.split(key, 3)
        bound = 1.0 / jnp.sqrt(fan_in)
        w = jax.random.uniform(kw, (fan_in, fan_out), jnp.float32, -bound, bound)
        b = jax.random.uniform(kb, (1, fan_out), jnp.float32, -bound, bound)
        w_pad = _pad_to(w, pshape)
        b_pad = _pad_to(b, (1, pshape[1]))
        q, s = _quantize_per_col(w_pad)
        qparams += [q, s, b_pad]
        fparams += [w_pad, b_pad]
    return tuple(qparams), tuple(fparams)


def decoder_reference_quant(x, qparams):
    """Pure-JAX reference with the identical int8+scale / bf16 / f32-accum path."""
    w1, s1, b1, w2, s2, b2, w3, s3, b3 = qparams
    xb = x.astype(jnp.bfloat16)
    h1 = _leaky_relu(jnp.dot(xb, w1.astype(jnp.bfloat16),
                             preferred_element_type=jnp.float32) * s1 + b1)
    h2 = _leaky_relu(jnp.dot(h1.astype(jnp.bfloat16), w2.astype(jnp.bfloat16),
                             preferred_element_type=jnp.float32) * s2 + b2)
    h3 = jnp.dot(h2.astype(jnp.bfloat16), w3.astype(jnp.bfloat16),
                 preferred_element_type=jnp.float32) * s3 + b3
    return jax.nn.sigmoid(h3)[:, :OUT].reshape(-1, 1, 28, 28)


def decoder_reference_f32(x, fparams):
    """Full-precision reference (what the torch module computes, up to init)."""
    w1, b1, w2, b2, w3, b3 = fparams
    h1 = _leaky_relu(x @ w1 + b1)
    h2 = _leaky_relu(h1 @ w2 + b2)
    h3 = h2 @ w3 + b3
    return jax.nn.sigmoid(h3)[:, :OUT].reshape(-1, 1, 28, 28)


if __name__ == "__main__":
    Z = 32          # latent dim
    B = 8           # batch (kernel is weight-BW bound; larger B amortizes it)

    key = jax.random.PRNGKey(0)
    key, kx = jax.random.split(key)
    x = jax.random.normal(kx, (B, Z), dtype=jnp.float32)

    qparams, fparams = init_params(key, Z)

    out = jax.block_until_ready(decoder_forward(x, qparams))

    assert out.shape == (B, 1, 28, 28), out.shape
    assert out.dtype == jnp.float32
    # Sigmoid output range sanity check
    assert bool(jnp.all(out >= 0.0)) and bool(jnp.all(out <= 1.0))

    # Exact-path check: pure-JAX reference with identical int8/bf16/f32 math.
    ref_q = decoder_reference_quant(x, qparams)
    err_q = float(jnp.max(jnp.abs(out - ref_q)))
    assert err_q < 5e-3, err_q

    # Fidelity check vs the full-f32 (torch-equivalent) model: int8 per-channel
    # weights + bf16 activations keep the post-sigmoid error small.
    ref_f = decoder_reference_f32(x, fparams)
    err_f = float(jnp.max(jnp.abs(out - ref_f)))
    assert err_f < 5e-2, err_f

    print("KERNEL_OK")
</pallas_src>

<mosaic_0001>
module attributes {stable_mosaic.version = 11 : i64} {
  func.func @decoder_kernel(%arg0: memref<8x32xf32, #tpu.memory_space<vmem>>, %arg1: memref<32x1024xi8, #tpu.memory_space<vmem>>, %arg2: memref<1x1024xf32, #tpu.memory_space<vmem>>, %arg3: memref<1x1024xf32, #tpu.memory_space<vmem>>, %arg4: memref<1024x1024xi8, #tpu.memory_space<vmem>>, %arg5: memref<1x1024xf32, #tpu.memory_space<vmem>>, %arg6: memref<1x1024xf32, #tpu.memory_space<vmem>>, %arg7: memref<1024x896xi8, #tpu.memory_space<vmem>>, %arg8: memref<1x896xf32, #tpu.memory_space<vmem>>, %arg9: memref<1x896xf32, #tpu.memory_space<vmem>>, %arg10: memref<8x896xf32, #tpu.memory_space<vmem>>) attributes {dimension_semantics = [], scalar_prefetch = 0 : i64, scratch_operands = 0 : i64, tpu.core_type = #tpu.core_type<tc>} {
    %c0 = arith.constant 0 : index
    %c0_0 = arith.constant 0 : index
    %0 = vector.load %arg0[%c0, %c0_0] : memref<8x32xf32, #tpu.memory_space<vmem>>, vector<8x32xf32>
    %1 = arith.truncf %0 : vector<8x32xf32> to vector<8x32xbf16>
    %c0_1 = arith.constant 0 : index
    %c0_2 = arith.constant 0 : index
    %2 = vector.load %arg1[%c0_1, %c0_2] : memref<32x1024xi8, #tpu.memory_space<vmem>>, vector<32x1024xi8>
    %3 = arith.sitofp %2 : vector<32x1024xi8> to vector<32x1024xbf16>
    %cst = arith.constant dense<0.000000e+00> : vector<8x1024xf32>
    %4 = tpu.matmul %1, %3, %cst {dimension_numbers = #tpu.dot_dimension_numbers<[1], [0], [0], [1], [0, 0, 1, 1], [], []>} : vector<8x32xbf16>, vector<32x1024xbf16>, vector<8x1024xf32> -> vector<8x1024xf32>
    %c0_3 = arith.constant 0 : index
    %c0_4 = arith.constant 0 : index
    %5 = vector.load %arg2[%c0_3, %c0_4] : memref<1x1024xf32, #tpu.memory_space<vmem>>, vector<1x1024xf32>
    %6 = vector.broadcast %5 : vector<1x1024xf32> to vector<8x1024xf32>
    %7 = arith.mulf %4, %6 : vector<8x1024xf32>
    %c0_5 = arith.constant 0 : index
    %c0_6 = arith.constant 0 : index
    %8 = vector.load %arg3[%c0_5, %c0_6] : memref<1x1024xf32, #tpu.memory_space<vmem>>, vector<1x1024xf32>
    %9 = vector.broadcast %8 : vector<1x1024xf32> to vector<8x1024xf32>
    %10 = arith.addf %7, %9 : vector<8x1024xf32>
    %cst_7 = arith.constant 0.000000e+00 : f32
    %11 = vector.broadcast %cst_7 : f32 to vector<8x1024xf32>
    %12 = arith.cmpf ogt, %10, %11 : vector<8x1024xf32>
    %cst_8 = arith.constant 0.00999999977 : f32
    %13 = vector.broadcast %cst_8 : f32 to vector<8x1024xf32>
    %14 = arith.mulf %13, %10 : vector<8x1024xf32>
    %15 = arith.select %12, %10, %14 : vector<8x1024xi1>, vector<8x1024xf32>
    %16 = arith.truncf %15 : vector<8x1024xf32> to vector<8x1024xbf16>
    %c0_9 = arith.constant 0 : index
    %c0_10 = arith.constant 0 : index
    %17 = vector.load %arg4[%c0_9, %c0_10] : memref<1024x1024xi8, #tpu.memory_space<vmem>>, vector<1024x1024xi8>
    %18 = arith.sitofp %17 : vector<1024x1024xi8> to vector<1024x1024xbf16>
    %cst_11 = arith.constant dense<0.000000e+00> : vector<8x1024xf32>
    %19 = tpu.matmul %16, %18, %cst_11 {dimension_numbers = #tpu.dot_dimension_numbers<[1], [0], [0], [1], [0, 0, 1, 1], [], []>} : vector<8x1024xbf16>, vector<1024x1024xbf16>, vector<8x1024xf32> -> vector<8x1024xf32>
    %c0_12 = arith.constant 0 : index
    %c0_13 = arith.constant 0 : index
    %20 = vector.load %arg5[%c0_12, %c0_13] : memref<1x1024xf32, #tpu.memory_space<vmem>>, vector<1x1024xf32>
    %21 = vector.broadcast %20 : vector<1x1024xf32> to vector<8x1024xf32>
    %22 = arith.mulf %19, %21 : vector<8x1024xf32>
    %c0_14 = arith.constant 0 : index
    %c0_15 = arith.constant 0 : index
    %23 = vector.load %arg6[%c0_14, %c0_15] : memref<1x1024xf32, #tpu.memory_space<vmem>>, vector<1x1024xf32>
    %24 = vector.broadcast %23 : vector<1x1024xf32> to vector<8x1024xf32>
    %25 = arith.addf %22, %24 : vector<8x1024xf32>
    %cst_16 = arith.constant 0.000000e+00 : f32
    %26 = vector.broadcast %cst_16 : f32 to vector<8x1024xf32>
    %27 = arith.cmpf ogt, %25, %26 : vector<8x1024xf32>
    %cst_17 = arith.constant 0.00999999977 : f32
    %28 = vector.broadcast %cst_17 : f32 to vector<8x1024xf32>
    %29 = arith.mulf %28, %25 : vector<8x1024xf32>
    %30 = arith.select %27, %25, %29 : vector<8x1024xi1>, vector<8x1024xf32>
    %31 = arith.truncf %30 : vector<8x1024xf32> to vector<8x1024xbf16>
    %c0_18 = arith.constant 0 : index
    %c0_19 = arith.constant 0 : index
    %32 = vector.load %arg7[%c0_18, %c0_19] : memref<1024x896xi8, #tpu.memory_space<vmem>>, vector<1024x896xi8>
    %33 = arith.sitofp %32 : vector<1024x896xi8> to vector<1024x896xbf16>
    %cst_20 = arith.constant dense<0.000000e+00> : vector<8x896xf32>
    %34 = tpu.matmul %31, %33, %cst_20 {dimension_numbers = #tpu.dot_dimension_numbers<[1], [0], [0], [1], [0, 0, 1, 1], [], []>} : vector<8x1024xbf16>, vector<1024x896xbf16>, vector<8x896xf32> -> vector<8x896xf32>
    %c0_21 = arith.constant 0 : index
    %c0_22 = arith.constant 0 : index
    %35 = vector.load %arg8[%c0_21, %c0_22] : memref<1x896xf32, #tpu.memory_space<vmem>>, vector<1x896xf32>
    %36 = vector.broadcast %35 : vector<1x896xf32> to vector<8x896xf32>
    %37 = arith.mulf %34, %36 : vector<8x896xf32>
    %c0_23 = arith.constant 0 : index
    %c0_24 = arith.constant 0 : index
    %38 = vector.load %arg9[%c0_23, %c0_24] : memref<1x896xf32, #tpu.memory_space<vmem>>, vector<1x896xf32>
    %39 = vector.broadcast %38 : vector<1x896xf32> to vector<8x896xf32>
    %40 = arith.addf %37, %39 : vector<8x896xf32>
    %41 = arith.negf %40 : vector<8x896xf32>
    %42 = math.exp %41 : vector<8x896xf32>
    %cst_25 = arith.constant 1.000000e+00 : f32
    %43 = vector.broadcast %cst_25 : f32 to vector<8x896xf32>
    %44 = arith.addf %43, %42 : vector<8x896xf32>
    %45 = arith.divf %43, %44 : vector<8x896xf32>
    %c0_26 = arith.constant 0 : index
    %c0_27 = arith.constant 0 : index
    %46 = vector.load %arg10[%c0_26, %c0_27] : memref<8x896xf32, #tpu.memory_space<vmem>>, vector<8x896xf32>
    tpu.vector_store %arg10[%c0_26, %c0_27], %45 {strides = array<i32>} : memref<8x896xf32, #tpu.memory_space<vmem>>, vector<8x896xf32>,
    return
  }
}

</mosaic_0001>

<llo_original>
// kernel: decoder_forward.1
$region0: #{decoder_forward.1}
  #allocation0 [shape = 'u32[]', space=smem, size = 0x4, offset = 0x4, fixed_abs, tag = 'smem constant byte address 0x4 - core index']
  #allocation1 [shape = 'u32[144,128]{1,0:T(1,128)}', space=vmem, size = 0x12000, scoped, tag = 'internal scratch']
  %s0 = inlined_call_operand.hbm [shape: f32[8,32], index: 0, kind: input, shape index: {}]
  %s1 = inlined_call_operand.hbm [shape: s8[32,1024], index: 1, kind: input, shape index: {}]
  %s2 = inlined_call_operand.hbm [shape: f32[1,1024], index: 2, kind: input, shape index: {}]
  %s3 = inlined_call_operand.vmem [shape: f32[1,1024], index: 3, kind: input, shape index: {}]
  %s4 = inlined_call_operand.hbm [shape: s8[1024,1024], index: 4, kind: input, shape index: {}]
  %s5 = inlined_call_operand.vmem [shape: f32[1,1024], index: 5, kind: input, shape index: {}]
  %s6 = inlined_call_operand.hbm [shape: f32[1,1024], index: 6, kind: input, shape index: {}]
  %s7 = inlined_call_operand.hbm [shape: s8[1024,896], index: 7, kind: input, shape index: {}]
  %s8 = inlined_call_operand.vmem [shape: f32[1,896], index: 8, kind: input, shape index: {}]
  %s9 = inlined_call_operand.vmem [shape: f32[1,896], index: 9, kind: input, shape index: {}]
  %s10 = inlined_call_operand.vmem [shape: f32[8,896], index: 10, kind: output, shape index: {}]
  %s11 = sld [smem:[#allocation0]]
  $region74: #{decoder_forward.1} parent=0
    _
  %s13 = ssub.s32 1, %s11
  %s14 = scalar_select 0, %s13, %s11
  $region1: #{decoder_forward.1} parent=0
    #allocation2 [shape = 'u8[4096]{0}', space=vmem, size = 0x1000, scoped, tag = 'input window, operand 0, single buffered']
    #allocation3 [shape = 's32[1]{0}', space=sflag, size = 0x4, scoped, tag = 'scoped memory for decoder_forward.1']
    #allocation4 [shape = 'u8[32768]{0}', space=vmem, size = 0x8000, scoped, tag = 'input window, operand 1, single buffered']
    #allocation5 [shape = 's32[1]{0}', space=sflag, size = 0x4, scoped, tag = 'scoped memory for decoder_forward.1']
    #allocation6 [shape = 'u8[4096]{0}', space=vmem, size = 0x1000, scoped, tag = 'input window, operand 2, single buffered']
    #allocation7 [shape = 'u8[1048576]{0}', space=vmem, size = 0x100000, scoped, tag = 'input window, operand 4, single buffered']
    #allocation8 [shape = 's32[1]{0}', space=sflag, size = 0x4, scoped, tag = 'scoped memory for decoder_forward.1']
    #allocation9 [shape = 'u8[4096]{0}', space=vmem, size = 0x1000, scoped, tag = 'input window, operand 6, single buffered']
    #allocation10 [shape = 'u8[917504]{0}', space=vmem, size = 0xe0000, scoped, tag = 'input window, operand 7, single buffered']
    #allocation11 [shape = 's32[1]{0}', space=sflag, size = 0x4, scoped, tag = 'scoped memory for decoder_forward.1']
    %15 = vsyncpa [#allocation3], 0
    %16 = vsyncpa [#allocation5], 0
    %17 = vsyncpa [#allocation8], 0
    %18 = vsyncpa [#allocation11], 0
    // Predicated region
    $region2: #{decoder_forward.1} parent=1 // pred_check
      _
    $region3: #{decoder_forward.1} parent=1 // pred_check_branch
      %20 = sbr.rel (0) target = $region5
    $region4: #{decoder_forward.1} parent=1 // pred_region
      %s22 = ssub.s32 128, 128
      %23 = vsyncadd [#allocation3], %s22
      %s25 = sshll.u32 [#allocation2], 4
      %s26 = int_to_ptr.vmem [resolvable:$true] %s25
      %28 = dma.hbm_to_vmem [thread:$0]  %s0, 128, %s26, [#allocation3]
    $region5: #{decoder_forward.1} parent=1 // pred_fallthru
      _
    // Predicated region
    $region6: #{decoder_forward.1} parent=1 // pred_check
      _
    $region7: #{decoder_forward.1} parent=1 // pred_check_branch
      %30 = sbr.rel (0) target = $region9
    $region8: #{decoder_forward.1} parent=1 // pred_region
      %s32 = ssub.s32 1024, 1024
      %33 = vsyncadd [#allocation5], %s32
      %s35 = sshll.u32 [#allocation4], 4
      %s36 = int_to_ptr.vmem [resolvable:$true] %s35
      %38 = dma.hbm_to_vmem [thread:$0]  %s1, 1024, %s36, [#allocation5]
    $region9: #{decoder_forward.1} parent=1 // pred_fallthru
      _
    // Predicated region
    $region10: #{decoder_forward.1} parent=1 // pred_check
      _
    $region11: #{decoder_forward.1} parent=1 // pred_check_branch
      %40 = sbr.rel (0) target = $region13
    $region12: #{decoder_forward.1} parent=1 // pred_region
      %s42 = ssub.s32 128, 128
      %43 = vsyncadd [#allocation5], %s42
      %s45 = sshll.u32 [#allocation6], 4
      %s46 = int_to_ptr.vmem [resolvable:$true] %s45
      %48 = dma.hbm_to_vmem [thread:$0]  %s2, 128, %s46, [#allocation5]
    $region13: #{decoder_forward.1} parent=1 // pred_fallthru
      _
    // Predicated region
    $region14: #{decoder_forward.1} parent=1 // pred_check
      _
    $region15: #{decoder_forward.1} parent=1 // pred_check_branch
      %50 = sbr.rel (0) target = $region17
    $region16: #{decoder_forward.1} parent=1 // pred_region
      _
    $region17: #{decoder_forward.1} parent=1 // pred_fallthru
      _
    // Predicated region
    $region18: #{decoder_forward.1} parent=1 // pred_check
      _
    $region19: #{decoder_forward.1} parent=1 // pred_check_branch
      %52 = sbr.rel (0) target = $region21
    $region20: #{decoder_forward.1} parent=1 // pred_region
      %s54 = ssub.s32 32768, 32768
      %55 = vsyncadd [#allocation8], %s54
      %s56 = sshll.u32 [#allocation7], 4
      %s57 = int_to_ptr.vmem [resolvable:$true] %s56
      %62 = dma.hbm_to_vmem [thread:$0]  %s4, 32768, %s57, [#allocation8], 1024, 1024, 64
    $region21: #{decoder_forward.1} parent=1 // pred_fallthru
      _
    // Predicated region
    $region22: #{decoder_forward.1} parent=1 // pred_check
      _
    $region23: #{decoder_forward.1} parent=1 // pred_check_branch
      %64 = sbr.rel (0) target = $region25
    $region24: #{decoder_forward.1} parent=1 // pred_region
      _
    $region25: #{decoder_forward.1} parent=1 // pred_fallthru
      _
    // Predicated region
    $region26: #{decoder_forward.1} parent=1 // pred_check
      _
    $region27: #{decoder_forward.1} parent=1 // pred_check_branch
      %66 = sbr.rel (0) target = $region29
    $region28: #{decoder_forward.1} parent=1 // pred_region
      %s68 = ssub.s32 128, 128
      %69 = vsyncadd [#allocation8], %s68
      %s71 = sshll.u32 [#allocation9], 4
      %s72 = int_to_ptr.vmem [resolvable:$true] %s71
      %74 = dma.hbm_to_vmem [thread:$0]  %s6, 128, %s72, [#allocation8]
    $region29: #{decoder_forward.1} parent=1 // pred_fallthru
      _
    // Predicated region
    $region30: #{decoder_forward.1} parent=1 // pred_check
      _
    $region31: #{decoder_forward.1} parent=1 // pred_check_branch
      %76 = sbr.rel (0) target = $region33
    $region32: #{decoder_forward.1} parent=1 // pred_region
      %s78 = ssub.s32 28672, 28672
      %79 = vsyncadd [#allocation11], %s78
      %s80 = sshll.u32 [#allocation10], 4
      %s81 = int_to_ptr.vmem [resolvable:$true] %s80
      %86 = dma.hbm_to_vmem [thread:$0]  %s7, 28672, %s81, [#allocation11], 896, 896, 56
    $region33: #{decoder_forward.1} parent=1 // pred_fallthru
      _
    // Predicated region
    $region34: #{decoder_forward.1} parent=1 // pred_check
      _
    $region35: #{decoder_forward.1} parent=1 // pred_check_branch
      %88 = sbr.rel (0) target = $region37
    $region36: #{decoder_forward.1} parent=1 // pred_region
      _
    $region37: #{decoder_forward.1} parent=1 // pred_fallthru
      _
    // Predicated region
    $region38: #{decoder_forward.1} parent=1 // pred_check
      _
    $region39: #{decoder_forward.1} parent=1 // pred_check_branch
      %90 = sbr.rel (0) target = $region41
    $region40: #{decoder_forward.1} parent=1 // pred_region
      _
    $region41: #{decoder_forward.1} parent=1 // pred_fallthru
      _
    // Predicated region
    $region42: #{decoder_forward.1} parent=1 // pred_check
      _
    $region43: #{decoder_forward.1} parent=1 // pred_check_branch
      %92 = sbr.rel (0) target = $region45
    $region44: #{decoder_forward.1} parent=1 // pred_region
      %93 = dma.done [#allocation3], 128
    $region45: #{decoder_forward.1} parent=1 // pred_fallthru
      _
    // Predicated region
    $region46: #{decoder_forward.1} parent=1 // pred_check
      _
    $region47: #{decoder_forward.1} parent=1 // pred_check_branch
      %95 = sbr.rel (0) target = $region49
    $region48: #{decoder_forward.1} parent=1 // pred_region
      %96 = dma.done [#allocation5], 1024
    $region49: #{decoder_forward.1} parent=1 // pred_fallthru
      _
    // Predicated region
    $region50: #{decoder_forward.1} parent=1 // pred_check
      _
    $region51: #{decoder_forward.1} parent=1 // pred_check_branch
      %98 = sbr.rel (0) target = $region53
    $region52: #{decoder_forward.1} parent=1 // pred_region
      %99 = dma.done [#allocation5], 128
    $region53: #{decoder_forward.1} parent=1 // pred_fallthru
      _
    // Predicated region
    $region54: #{decoder_forward.1} parent=1 // pred_check
      _
    $region55: #{decoder_forward.1} parent=1 // pred_check_branch
      %101 = sbr.rel (0) target = $region57
    $region56: #{decoder_forward.1} parent=1 // pred_region
      %102 = dma.done [#allocation8], 32768
    $region57: #{decoder_forward.1} parent=1 // pred_fallthru
      _
    // Predicated region
    $region58: #{decoder_forward.1} parent=1 // pred_check
      _
    $region59: #{decoder_forward.1} parent=1 // pred_check_branch
      %104 = sbr.rel (0) target = $region61
    $region60: #{decoder_forward.1} parent=1 // pred_region
      %105 = dma.done [#allocation8], 128
    $region61: #{decoder_forward.1} parent=1 // pred_fallthru
      _
    // Predicated region
    $region62: #{decoder_forward.1} parent=1 // pred_check
      _
    $region63: #{decoder_forward.1} parent=1 // pred_check_branch
      %107 = sbr.rel (0) target = $region65
    $region64: #{decoder_forward.1} parent=1 // pred_region
      %108 = dma.done [#allocation11], 28672
    $region65: #{decoder_forward.1} parent=1 // pred_fallthru
      _
    %v110 = vld [vmem:[#allocation2] sm:$0xff]
    %v111 = vpack.c.bf16 %v110, %v110
    %v112 = vld [vmem:[#allocation4] sm:$0xff]
    %v113 = vld [vmem:[#allocation4 + $0x8] sm:$0xff]
    %v114 = vld [vmem:[#allocation4 + $0x10] sm:$0xff]
    %v115 = vld [vmem:[#allocation4 + $0x18] sm:$0xff]
    %v116 = vld [vmem:[#allocation4 + $0x20] sm:$0xff]
    %v117 = vld [vmem:[#allocation4 + $0x28] sm:$0xff]
    %v118 = vld [vmem:[#allocation4 + $0x30] sm:$0xff]
    %v119 = vld [vmem:[#allocation4 + $0x38] sm:$0xff]
    %v120 = vunpack.c.l.s8.bf16 %v112
    %v121 = vunpack.c.l.s8.bf16 %v113
    %v122 = vunpack.c.l.s8.bf16 %v114
    %v123 = vunpack.c.l.s8.bf16 %v115
    %v124 = vunpack.c.l.s8.bf16 %v116
    %v125 = vunpack.c.l.s8.bf16 %v117
    %v126 = vunpack.c.l.s8.bf16 %v118
    %v127 = vunpack.c.l.s8.bf16 %v119
    %v128 = vunpack.c.h.s8.bf16 %v112
    %v129 = vunpack.c.h.s8.bf16 %v113
    %v130 = vunpack.c.h.s8.bf16 %v114
    %v131 = vunpack.c.h.s8.bf16 %v115
    %v132 = vunpack.c.h.s8.bf16 %v116
    %v133 = vunpack.c.h.s8.bf16 %v117
    %v134 = vunpack.c.h.s8.bf16 %v118
    %v135 = vunpack.c.h.s8.bf16 %v119
    %vm136 = vcmask 261120
    %v138 = vsel %vm136, %v111, 0
    %140 = vmatprep.subr.bf16.mxu0 %v121
    %141 = vmatpush1.bf16.msra.mxu0 %v120
    %142 = vmatprep.subr.bf16.mxu0 %v129
    %143 = vmatpush1.bf16.msra.mxu0 %v128
    %144 = vmatprep.subr.bf16.mxu0 0
    %145 = vmatpush1.bf16.msra.mxu0 0
    %146 = vmatprep.subr.bf16.mxu0 0
    %147 = vmatpush1.bf16.msra.mxu0 0
    %148 = vmatprep.subr.bf16.mxu0 0
    %149 = vmatpush1.bf16.msra.mxu0 0
    %150 = vmatprep.subr.bf16.mxu0 0
    %151 = vmatpush1.bf16.msra.mxu0 0
    %152 = vmatprep.subr.bf16.mxu0 0
    %153 = vmatpush1.bf16.msra.mxu0 0
    %154 = vmatprep.subr.bf16.mxu0 0
    %155 = vmatpush1.bf16.msra.mxu0 0
    %156 = vmatprep.subr.bf16.mxu0 0
    %157 = vmatpush1.bf16.msra.mxu0 0
    %158 = vmatprep.subr.bf16.mxu0 0
    %159 = vmatpush1.bf16.msra.mxu0 0
    %160 = vmatprep.subr.bf16.mxu0 0
    %161 = vmatpush1.bf16.msra.mxu0 0
    %162 = vmatprep.subr.bf16.mxu0 0
    %163 = vmatpush1.bf16.msra.mxu0 0
    %164 = vmatprep.subr.bf16.mxu0 0
    %165 = vmatpush1.bf16.msra.mxu0 0
    %166 = vmatprep.subr.bf16.mxu0 0
    %167 = vmatpush1.bf16.msra.mxu0 0
    %168 = vmatprep.subr.bf16.mxu0 0
    %169 = vmatpush1.bf16.msra.mxu0 0
    %170 = vmatprep.subr.bf16.mxu0 0
    %171 = vmatpush1.bf16.msra.mxu0 0
    %172 = vmatprep.mubr.bf16.mxu0 0
    %173 = vmatmul.mubr.bf16.gmra.mrb[0].mxu0 %v138
    %v174 = vpop.f32.mrb[0].mxu0
    %v175 = vadd.f32 0.0, %v174
    %v176 = vpop.f32.mrb[0].mxu0
    %v177 = vadd.f32 0.0, %v176
    %v178 = vpop.f32.mrb[0].mxu0
    %v179 = vpop.f32.mrb[0].mxu0
    %180 = vdwg.mxu0
    %181 = vmatprep.subr.bf16.mxu0 %v123
    %182 = vmatpush1.bf16.msra.mxu0 %v122
    %183 = vmatprep.subr.bf16.mxu0 %v131
    %184 = vmatpush1.bf16.msra.mxu0 %v130
    %185 = vmatprep.subr.bf16.mxu0 0
    %186 = vmatpush1.bf16.msra.mxu0 0
    %187 = vmatprep.subr.bf16.mxu0 0
    %188 = vmatpush1.bf16.msra.mxu0 0
    %189 = vmatprep.subr.bf16.mxu0 0
    %190 = vmatpush1.bf16.msra.mxu0 0
    %191 = vmatprep.subr.bf16.mxu0 0
    %192 = vmatpush1.bf16.msra.mxu0 0
    %193 = vmatprep.subr.bf16.mxu0 0
    %194 = vmatpush1.bf16.msra.mxu0 0
    %195 = vmatprep.subr.bf16.mxu0 0
    %196 = vmatpush1.bf16.msra.mxu0 0
    %197 = vmatprep.subr.bf16.mxu0 0
    %198 = vmatpush1.bf16.msra.mxu0 0
    %199 = vmatprep.subr.bf16.mxu0 0
    %200 = vmatpush1.bf16.msra.mxu0 0
    %201 = vmatprep.subr.bf16.mxu0 0
    %202 = vmatpush1.bf16.msra.mxu0 0
    %203 = vmatprep.subr.bf16.mxu0 0
    %204 = vmatpush1.bf16.msra.mxu0 0
    %205 = vmatprep.subr.bf16.mxu0 0
    %206 = vmatpush1.bf16.msra.mxu0 0
    %207 = vmatprep.subr.bf16.mxu0 0
    %208 = vmatpush1.bf16.msra.mxu0 0
    %209 = vmatprep.subr.bf16.mxu0 0
    %210 = vmatpush1.bf16.msra.mxu0 0
    %211 = vmatprep.subr.bf16.mxu0 0
    %212 = vmatpush1.bf16.msra.mxu0 0
    %213 = vmatprep.mubr.bf16.mxu0 0
    %214 = vmatmul.mubr.bf16.gmra.mrb[0].mxu0 %v138
    %v215 = vpop.f32.mrb[0].mxu0
    %v216 = vadd.f32 0.0, %v215
    %v217 = vpop.f32.mrb[0].mxu0
    %v218 = vadd.f32 0.0, %v217
    %v219 = vpop.f32.mrb[0].mxu0
    %v220 = vpop.f32.mrb[0].mxu0
    %221 = vdwg.mxu0
    %222 = vmatprep.subr.bf16.mxu0 %v125
    %223 = vmatpush1.bf16.msra.mxu0 %v124
    %224 = vmatprep.subr.bf16.mxu0 %v133
    %225 = vmatpush1.bf16.msra.mxu0 %v132
    %226 = vmatprep.subr.bf16.mxu0 0
    %227 = vmatpush1.bf16.msra.mxu0 0
    %228 = vmatprep.subr.bf16.mxu0 0
    %229 = vmatpush1.bf16.msra.mxu0 0
    %230 = vmatprep.subr.bf16.mxu0 0
    %231 = vmatpush1.bf16.msra.mxu0 0
    %232 = vmatprep.subr.bf16.mxu0 0
    %233 = vmatpush1.bf16.msra.mxu0 0
    %234 = vmatprep.subr.bf16.mxu0 0
    %235 = vmatpush1.bf16.msra.mxu0 0
    %236 = vmatprep.subr.bf16.mxu0 0
    %237 = vmatpush1.bf16.msra.mxu0 0
    %238 = vmatprep.subr.bf16.mxu0 0
    %239 = vmatpush1.bf16.msra.mxu0 0
    %240 = vmatprep.subr.bf16.mxu0 0
    %241 = vmatpush1.bf16.msra.mxu0 0
    %242 = vmatprep.subr.bf16.mxu0 0
    %243 = vmatpush1.bf16.msra.mxu0 0
    %244 = vmatprep.subr.bf16.mxu0 0
    %245 = vmatpush1.bf16.msra.mxu0 0
    %246 = vmatprep.subr.bf16.mxu0 0
    %247 = vmatpush1.bf16.msra.mxu0 0
    %248 = vmatprep.subr.bf16.mxu0 0
    %249 = vmatpush1.bf16.msra.mxu0 0
    %250 = vmatprep.subr.bf16.mxu0 0
    %251 = vmatpush1.bf16.msra.mxu0 0
    %252 = vmatprep.subr.bf16.mxu0 0
    %253 = vmatpush1.bf16.msra.mxu0 0
    %254 = vmatprep.mubr.bf16.mxu0 0
    %255 = vmatmul.mubr.bf16.gmra.mrb[0].mxu0 %v138
    %v256 = vpop.f32.mrb[0].mxu0
    %v257 = vadd.f32 0.0, %v256
    %v258 = vpop.f32.mrb[0].mxu0
    %v259 = vadd.f32 0.0, %v258
    %v260 = vpop.f32.mrb[0].mxu0
    %v261 = vpop.f32.mrb[0].mxu0
    %262 = vdwg.mxu0
    %263 = vmatprep.subr.bf16.mxu0 %v127
    %264 = vmatpush1.bf16.msra.mxu0 %v126
    %265 = vmatprep.subr.bf16.mxu0 %v135
    %266 = vmatpush1.bf16.msra.mxu0 %v134
    %267 = vmatprep.subr.bf16.mxu0 0
    %268 = vmatpush1.bf16.msra.mxu0 0
    %269 = vmatprep.subr.bf16.mxu0 0
    %270 = vmatpush1.bf16.msra.mxu0 0
    %271 = vmatprep.subr.bf16.mxu0 0
    %272 = vmatpush1.bf16.msra.mxu0 0
    %273 = vmatprep.subr.bf16.mxu0 0
    %274 = vmatpush1.bf16.msra.mxu0 0
    %275 = vmatprep.subr.bf16.mxu0 0
    %276 = vmatpush1.bf16.msra.mxu0 0
    %277 = vmatprep.subr.bf16.mxu0 0
    %278 = vmatpush1.bf16.msra.mxu0 0
    %279 = vmatprep.subr.bf16.mxu0 0
    %280 = vmatpush1.bf16.msra.mxu0 0
    %281 = vmatprep.subr.bf16.mxu0 0
    %282 = vmatpush1.bf16.msra.mxu0 0
    %283 = vmatprep.subr.bf16.mxu0 0
    %284 = vmatpush1.bf16.msra.mxu0 0
    %285 = vmatprep.subr.bf16.mxu0 0
    %286 = vmatpush1.bf16.msra.mxu0 0
    %287 = vmatprep.subr.bf16.mxu0 0
    %288 = vmatpush1.bf16.msra.mxu0 0
    %289 = vmatprep.subr.bf16.mxu0 0
    %290 = vmatpush1.bf16.msra.mxu0 0
    %291 = vmatprep.subr.bf16.mxu0 0
    %292 = vmatpush1.bf16.msra.mxu0 0
    %293 = vmatprep.subr.bf16.mxu0 0
    %294 = vmatpush1.bf16.msra.mxu0 0
    %295 = vmatprep.mubr.bf16.mxu0 0
    %296 = vmatmul.mubr.bf16.gmra.mrb[0].mxu0 %v138
    %v297 = vpop.f32.mrb[0].mxu0
    %v298 = vadd.f32 0.0, %v297
    %v299 = vpop.f32.mrb[0].mxu0
    %v300 = vadd.f32 0.0, %v299
    %v301 = vpop.f32.mrb[0].mxu0
    %v302 = vpop.f32.mrb[0].mxu0
    %303 = vdwg.mxu0
    %v304 = vld [vmem:[#allocation6] sm:$0xff]
    %v306 = vlaneseq
    %v307 = vshrl.u32 %v306, 7
    %v308 = vsub.s32 0, %v307
    %v309 = vrot.slane %v304, %v308
    %v310 = vlaneseq
    %v311 = vshrl.u32 %v310, 7
    %v312 = vsub.s32 1, %v311
    %v313 = vrot.slane %v304, %v312
    %v314 = vlaneseq
    %v315 = vshrl.u32 %v314, 7
    %v316 = vsub.s32 2, %v315
    %v317 = vrot.slane %v304, %v316
    %v318 = vlaneseq
    %v319 = vshrl.u32 %v318, 7
    %v320 = vsub.s32 3, %v319
    %v321 = vrot.slane %v304, %v320
    %v322 = vlaneseq
    %v323 = vshrl.u32 %v322, 7
    %v324 = vsub.s32 4, %v323
    %v325 = vrot.slane %v304, %v324
    %v326 = vlaneseq
    %v327 = vshrl.u32 %v326, 7
    %v328 = vsub.s32 5, %v327
    %v329 = vrot.slane %v304, %v328
    %v330 = vlaneseq
    %v331 = vshrl.u32 %v330, 7
    %v332 = vsub.s32 6, %v331
    %v333 = vrot.slane %v304, %v332
    %v334 = vlaneseq
    %v335 = vshrl.u32 %v334, 7
    %v336 = vsub.s32 7, %v335
    %v337 = vrot.slane %v304, %v336
    %v346 = vmul.f32 %v175, %v309
    %v347 = vmul.f32 %v177, %v313
    %v348 = vmul.f32 %v216, %v317
    %v349 = vmul.f32 %v218, %v321
    %v350 = vmul.f32 %v257, %v325
    %v351 = vmul.f32 %v259, %v329
    %v352 = vmul.f32 %v298, %v333
    %v353 = vmul.f32 %v300, %v337
    %v354 = vld [vmem:[%s3] sm:$0xff]
    %v356 = vlaneseq
    %v357 = vshrl.u32 %v356, 7
    %v358 = vsub.s32 0, %v357
    %v359 = vrot.slane %v354, %v358
    %v360 = vlaneseq
    %v361 = vshrl.u32 %v360, 7
    %v362 = vsub.s32 1, %v361
    %v363 = vrot.slane %v354, %v362
    %v364 = vlaneseq
    %v365 = vshrl.u32 %v364, 7
    %v366 = vsub.s32 2, %v365
    %v367 = vrot.slane %v354, %v366
    %v368 = vlaneseq
    %v369 = vshrl.u32 %v368, 7
    %v370 = vsub.s32 3, %v369
    %v371 = vrot.slane %v354, %v370
    %v372 = vlaneseq
    %v373 = vshrl.u32 %v372, 7
    %v374 = vsub.s32 4, %v373
    %v375 = vrot.slane %v354, %v374
    %v376 = vlaneseq
    %v377 = vshrl.u32 %v376, 7
    %v378 = vsub.s32 5, %v377
    %v379 = vrot.slane %v354, %v378
    %v380 = vlaneseq
    %v381 = vshrl.u32 %v380, 7
    %v382 = vsub.s32 6, %v381
    %v383 = vrot.slane %v354, %v382
    %v384 = vlaneseq
    %v385 = vshrl.u32 %v384, 7
    %v386 = vsub.s32 7, %v385
    %v387 = vrot.slane %v354, %v386
    %v396 = vadd.f32 %v346, %v359
    %v397 = vadd.f32 %v347, %v363
    %v398 = vadd.f32 %v348, %v367
    %v399 = vadd.f32 %v349, %v371
    %v400 = vadd.f32 %v350, %v375
    %v401 = vadd.f32 %v351, %v379
    %v402 = vadd.f32 %v352, %v383
    %v403 = vadd.f32 %v353, %v387
    %vm404 = vcmp.gt.f32.partialorder %v396, 0.0
    %vm405 = vcmp.gt.f32.partialorder %v397, 0.0
    %vm406 = vcmp.gt.f32.partialorder %v398, 0.0
    %vm407 = vcmp.gt.f32.partialorder %v399, 0.0
    %vm408 = vcmp.gt.f32.partialorder %v400, 0.0
    %vm409 = vcmp.gt.f32.partialorder %v401, 0.0
    %vm410 = vcmp.gt.f32.partialorder %v402, 0.0
    %vm411 = vcmp.gt.f32.partialorder %v403, 0.0
    %v412 = vmul.f32 %v396, 0.01
    %v413 = vmul.f32 %v397, 0.01
    %v414 = vmul.f32 %v398, 0.01
    %v415 = vmul.f32 %v399, 0.01
    %v416 = vmul.f32 %v400, 0.01
    %v417 = vmul.f32 %v401, 0.01
    %v418 = vmul.f32 %v402, 0.01
    %v419 = vmul.f32 %v403, 0.01
    %v420 = vsel %vm404, %v396, %v412
    %v421 = vsel %vm405, %v397, %v413
    %v422 = vsel %vm406, %v398, %v414
    %v423 = vsel %vm407, %v399, %v415
    %v424 = vsel %vm408, %v400, %v416
    %v425 = vsel %vm409, %v401, %v417
    %v426 = vsel %vm410, %v402, %v418
    %v427 = vsel %vm411, %v403, %v419
    %v428 = vpack.c.bf16 %v420, %v420
    %v429 = vpack.c.bf16 %v421, %v421
    %v430 = vpack.c.bf16 %v422, %v422
    %v431 = vpack.c.bf16 %v423, %v423
    %v432 = vpack.c.bf16 %v424, %v424
    %v433 = vpack.c.bf16 %v425, %v425
    %v434 = vpack.c.bf16 %v426, %v426
    %v435 = vpack.c.bf16 %v427, %v427
    %v436 = vld [vmem:[#allocation7] sm:$0xff]
    %v437 = vld [vmem:[#allocation7 + $0x8] sm:$0xff]
    %v438 = vld [vmem:[#allocation7 + $0x10] sm:$0xff]
    %v439 = vld [vmem:[#allocation7 + $0x18] sm:$0xff]
    %v440 = vld [vmem:[#allocation7 + $0x20] sm:$0xff]
    %v441 = vld [vmem:[#allocation7 + $0x28] sm:$0xff]
    %v442 = vld [vmem:[#allocation7 + $0x30] sm:$0xff]
    %v443 = vld [vmem:[#allocation7 + $0x38] sm:$0xff]
    %v444 = vld [vmem:[#allocation7 + $0x40] sm:$0xff]
    %v445 = vld [vmem:[#allocation7 + $0x48] sm:$0xff]
    %v446 = vld [vmem:[#allocation7 + $0x50] sm:$0xff]
    %v447 = vld [vmem:[#allocation7 + $0x58] sm:$0xff]
    %v448 = vld [vmem:[#allocation7 + $0x60] sm:$0xff]
    %v449 = vld [vmem:[#allocation7 + $0x68] sm:$0xff]
    %v450 = vld [vmem:[#allocation7 + $0x70] sm:$0xff]
    %v451 = vld [vmem:[#allocation7 + $0x78] sm:$0xff]
    %v452 = vld [vmem:[#allocation7 + $0x80] sm:$0xff]
    %v453 = vld [vmem:[#allocation7 + $0x88] sm:$0xff]
    %v454 = vld [vmem:[#allocation7 + $0x90] sm:$0xff]
    %v455 = vld [vmem:[#allocation7 + $0x98] sm:$0xff]
    %v456 = vld [vmem:[#allocation7 + $0xa0] sm:$0xff]
    %v457 = vld [vmem:[#allocation7 + $0xa8] sm:$0xff]
    %v458 = vld [vmem:[#allocation7 + $0xb0] sm:$0xff]
    %v459 = vld [vmem:[#allocation7 + $0xb8] sm:$0xff]
    %v460 = vld [vmem:[#allocation7 + $0xc0] sm:$0xff]
    %v461 = vld [vmem:[#allocation7 + $0xc8] sm:$0xff]
    %v462 = vld [vmem:[#allocation7 + $0xd0] sm:$0xff]
    %v463 = vld [vmem:[#allocation7 + $0xd8] sm:$0xff]
    %v464 = vld [vmem:[#allocation7 + $0xe0] sm:$0xff]
    %v465 = vld [vmem:[#allocation7 + $0xe8] sm:$0xff]
    %v466 = vld [vmem:[#allocation7 + $0xf0] sm:$0xff]
    %v467 = vld [vmem:[#allocation7 + $0xf8] sm:$0xff]
    %v468 = vld [vmem:[#allocation7 + $0x100] sm:$0xff]
    %v469 = vld [vmem:[#allocation7 + $0x108] sm:$0xff]
    %v470 = vld [vmem:[#allocation7 + $0x110] sm:$0xff]
    %v471 = vld [vmem:[#allocation7 + $0x118] sm:$0xff]
    %v472 = vld [vmem:[#allocation7 + $0x120] sm:$0xff]
    %v473 = vld [vmem:[#allocation7 + $0x128] sm:$0xff]
    %v474 = vld [vmem:[#allocation7 + $0x130] sm:$0xff]
    %v475 = vld [vmem:[#allocation7 + $0x138] sm:$0xff]
    %v476 = vld [vmem:[#allocation7 + $0x140] sm:$0xff]
    %v477 = vld [vmem:[#allocation7 + $0x148] sm:$0xff]
    %v478 = vld [vmem:[#allocation7 + $0x150] sm:$0xff]
    %v479 = vld [vmem:[#allocation7 + $0x158] sm:$0xff]
    %v480 = vld [vmem:[#allocation7 + $0x160] sm:$0xff]
    %v481 = vld [vmem:[#allocation7 + $0x168] sm:$0xff]
    %v482 = vld [vmem:[#allocation7 + $0x170] sm:$0xff]
    %v483 = vld [vmem:[#allocation7 + $0x178] sm:$0xff]
    %v484 = vld [vmem:[#allocation7 + $0x180] sm:$0xff]
    %v485 = vld [vmem:[#allocation7 + $0x188] sm:$0xff]
    %v486 = vld [vmem:[#allocation7 + $0x190] sm:$0xff]
    %v487 = vld [vmem:[#allocation7 + $0x198] sm:$0xff]
    %v488 = vld [vmem:[#allocation7 + $0x1a0] sm:$0xff]
    %v489 = vld [vmem:[#allocation7 + $0x1a8] sm:$0xff]
    %v490 = vld [vmem:[#allocation7 + $0x1b0] sm:$0xff]
    %v491 = vld [vmem:[#allocation7 + $0x1b8] sm:$0xff]
    %v492 = vld [vmem:[#allocation7 + $0x1c0] sm:$0xff]
    %v493 = vld [vmem:[#allocation7 + $0x1c8] sm:$0xff]
    %v494 = vld [vmem:[#allocation7 + $0x1d0] sm:$0xff]
    %v495 = vld [vmem:[#allocation7 + $0x1d8] sm:$0xff]
    %v496 = vld [vmem:[#allocation7 + $0x1e0] sm:$0xff]
    %v497 = vld [vmem:[#allocation7 + $0x1e8] sm:$0xff]
    %v498 = vld [vmem:[#allocation7 + $0x1f0] sm:$0xff]
    %v499 = vld [vmem:[#allocation7 + $0x1f8] sm:$0xff]
    %v500 = vld [vmem:[#allocation7 + $0x200] sm:$0xff]
    %v501 = vld [vmem:[#allocation7 + $0x208] sm:$0xff]
    %v502 = vld [vmem:[#allocation7 + $0x210] sm:$0xff]
    %v503 = vld [vmem:[#allocation7 + $0x218] sm:$0xff]
    %v504 = vld [vmem:[#allocation7 + $0x220] sm:$0xff]
    %v505 = vld [vmem:[#allocation7 + $0x228] sm:$0xff]
    %v506 = vld [vmem:[#allocation7 + $0x230] sm:$0xff]
    %v507 = vld [vmem:[#allocation7 + $0x238] sm:$0xff]
    %v508 = vld [vmem:[#allocation7 + $0x240] sm:$0xff]
    %v509 = vld [vmem:[#allocation7 + $0x248] sm:$0xff]
    %v510 = vld [vmem:[#allocation7 + $0x250] sm:$0xff]
    %v511 = vld [vmem:[#allocation7 + $0x258] sm:$0xff]
    %v512 = vld [vmem:[#allocation7 + $0x260] sm:$0xff]
    %v513 = vld [vmem:[#allocation7 + $0x268] sm:$0xff]
    %v514 = vld [vmem:[#allocation7 + $0x270] sm:$0xff]
    %v515 = vld [vmem:[#allocation7 + $0x278] sm:$0xff]
    %v516 = vld [vmem:[#allocation7 + $0x280] sm:$0xff]
    %v517 = vld [vmem:[#allocation7 + $0x288] sm:$0xff]
    %v518 = vld [vmem:[#allocation7 + $0x290] sm:$0xff]
    %v519 = vld [vmem:[#allocation7 + $0x298] sm:$0xff]
    %v520 = vld [vmem:[#allocation7 + $0x2a0] sm:$0xff]
    %v521 = vld [vmem:[#allocation7 + $0x2a8] sm:$0xff]
    %v522 = vld [vmem:[#allocation7 + $0x2b0] sm:$0xff]
    %v523 = vld [vmem:[#allocation7 + $0x2b8] sm:$0xff]
    %v524 = vld [vmem:[#allocation7 + $0x2c0] sm:$0xff]
    %v525 = vld [vmem:[#allocation7 + $0x2c8] sm:$0xff]
    %v526 = vld [vmem:[#allocation7 + $0x2d0] sm:$0xff]
    %v527 = vld [vmem:[#allocation7 + $0x2d8] sm:$0xff]
    %v528 = vld [vmem:[#allocation7 + $0x2e0] sm:$0xff]
    %v529 = vld [vmem:[#allocation7 + $0x2e8] sm:$0xff]
    %v530 = vld [vmem:[#allocation7 + $0x2f0] sm:$0xff]
    %v531 = vld [vmem:[#allocation7 + $0x2f8] sm:$0xff]
    %v532 = vld [vmem:[#allocation7 + $0x300] sm:$0xff]
    %v533 = vld [vmem:[#allocation7 + $0x308] sm:$0xff]
    %v534 = vld [vmem:[#allocation7 + $0x310] sm:$0xff]
    %v535 = vld [vmem:[#allocation7 + $0x318] sm:$0xff]
    %v536 = vld [vmem:[#allocation7 + $0x320] sm:$0xff]
    %v537 = vld [vmem:[#allocation7 + $0x328] sm:$0xff]
    %v538 = vld [vmem:[#allocation7 + $0x330] sm:$0xff]
    %v539 = vld [vmem:[#allocation7 + $0x338] sm:$0xff]
    %v540 = vld [vmem:[#allocation7 + $0x340] sm:$0xff]
    %v541 = vld [vmem:[#allocation7 + $0x348] sm:$0xff]
    %v542 = vld [vmem:[#allocation7 + $0x350] sm:$0xff]
    %v543 = vld [vmem:[#allocation7 + $0x358] sm:$0xff]
    %v544 = vld [vmem:[#allocation7 + $0x360] sm:$0xff]
    %v545 = vld [vmem:[#allocation7 + $0x368] sm:$0xff]
    %v546 = vld [vmem:[#allocation7 + $0x370] sm:$0xff]
    %v547 = vld [vmem:[#allocation7 + $0x378] sm:$0xff]
    %v548 = vld [vmem:[#allocation7 + $0x380] sm:$0xff]
    %v549 = vld [vmem:[#allocation7 + $0x388] sm:$0xff]
    %v550 = vld [vmem:[#allocation7 + $0x390] sm:$0xff]
    %v551 = vld [vmem:[#allocation7 + $0x398] sm:$0xff]
    %v552 = vld [vmem:[#allocation7 + $0x3a0] sm:$0xff]
    %v553 = vld [vmem:[#allocation7 + $0x3a8] sm:$0xff]
    %v554 = vld [vmem:[#allocation7 + $0x3b0] sm:$0xff]
    %v555 = vld [vmem:[#allocation7 + $0x3b8] sm:$0xff]
    %v556 = vld [vmem:[#allocation7 + $0x3c0] sm:$0xff]
    %v557 = vld [vmem:[#allocation7 + $0x3c8] sm:$0xff]
    %v558 = vld [vmem:[#allocation7 + $0x3d0] sm:$0xff]
    %v559 = vld [vmem:[#allocation7 + $0x3d8] sm:$0xff]
    %v560 = vld [vmem:[#allocation7 + $0x3e0] sm:$0xff]
    %v561 = vld [vmem:[#allocation7 + $0x3e8] sm:$0xff]
    %v562 = vld [vmem:[#allocation7 + $0x3f0] sm:$0xff]
    %v563 = vld [vmem:[#allocation7 + $0x3f8] sm:$0xff]
    %v564 = vld [vmem:[#allocation7 + $0x400] sm:$0xff]
    %v565 = vld [vmem:[#allocation7 + $0x408] sm:$0xff]
    %v566 = vld [vmem:[#allocation7 + $0x410] sm:$0xff]
    %v567 = vld [vmem:[#allocation7 + $0x418] sm:$0xff]
    %v568 = vld [vmem:[#allocation7 + $0x420] sm:$0xff]
    %v569 = vld [vmem:[#allocation7 + $0x428] sm:$0xff]
    %v570 = vld [vmem:[#allocation7 + $0x430] sm:$0xff]
    %v571 = vld [vmem:[#allocation7 + $0x438] sm:$0xff]
    %v572 = vld [vmem:[#allocation7 + $0x440] sm:$0xff]
    %v573 = vld [vmem:[#allocation7 + $0x448] sm:$0xff]
    %v574 = vld [vmem:[#allocation7 + $0x450] sm:$0xff]
    %v575 = vld [vmem:[#allocation7 + $0x458] sm:$0xff]
    %v576 = vld [vmem:[#allocation7 + $0x460] sm:$0xff]
    %v577 = vld [vmem:[#allocation7 + $0x468] sm:$0xff]
    %v578 = vld [vmem:[#allocation7 + $0x470] sm:$0xff]
    %v579 = vld [vmem:[#allocation7 + $0x478] sm:$0xff]
    %v580 = vld [vmem:[#allocation7 + $0x480] sm:$0xff]
    %v581 = vld [vmem:[#allocation7 + $0x488] sm:$0xff]
    %v582 = vld [vmem:[#allocation7 + $0x490] sm:$0xff]
    %v583 = vld [vmem:[#allocation7 + $0x498] sm:$0xff]
    %v584 = vld [vmem:[#allocation7 + $0x4a0] sm:$0xff]
    %v585 = vld [vmem:[#allocation7 + $0x4a8] sm:$0xff]
    %v586 = vld [vmem:[#allocation7 + $0x4b0] sm:$0xff]
    %v587 = vld [vmem:[#allocation7 + $0x4b8] sm:$0xff]
    %v588 = vld [vmem:[#allocation7 + $0x4c0] sm:$0xff]
    %v589 = vld [vmem:[#allocation7 + $0x4c8] sm:$0xff]
    %v590 = vld [vmem:[#allocation7 + $0x4d0] sm:$0xff]
    %v591 = vld [vmem:[#allocation7 + $0x4d8] sm:$0xff]
    %v592 = vld [vmem:[#allocation7 + $0x4e0] sm:$0xff]
    %v593 = vld [vmem:[#allocation7 + $0x4e8] sm:$0xff]
    %v594 = vld [vmem:[#allocation7 + $0x4f0] sm:$0xff]
    %v595 = vld [vmem:[#allocation7 + $0x4f8] sm:$0xff]
    %v596 = vld [vmem:[#allocation7 + $0x500] sm:$0xff]
    %v597 = vld [vmem:[#allocation7 + $0x508] sm:$0xff]
    %v598 = vld [vmem:[#allocation7 + $0x510] sm:$0xff]
    %v599 = vld [vmem:[#allocation7 + $0x518] sm:$0xff]
    %v600 = vld [vmem:[#allocation7 + $0x520] sm:$0xff]
    %v601 = vld [vmem:[#allocation7 + $0x528] sm:$0xff]
    %v602 = vld [vmem:[#allocation7 + $0x530] sm:$0xff]
    %v603 = vld [vmem:[#allocation7 + $0x538] sm:$0xff]
    %v604 = vld [vmem:[#allocation7 + $0x540] sm:$0xff]
    %v605 = vld [vmem:[#allocation7 + $0x548] sm:$0xff]
    %v606 = vld [vmem:[#allocation7 + $0x550] sm:$0xff]
    %v607 = vld [vmem:[#allocation7 + $0x558] sm:$0xff]
    %v608 = vld [vmem:[#allocation7 + $0x560] sm:$0xff]
    %v609 = vld [vmem:[#allocation7 + $0x568] sm:$0xff]
    %v610 = vld [vmem:[#allocation7 + $0x570] sm:$0xff]
    %v611 = vld [vmem:[#allocation7 + $0x578] sm:$0xff]
    %v612 = vld [vmem:[#allocation7 + $0x580] sm:$0xff]
    %v613 = vld [vmem:[#allocation7 + $0x588] sm:$0xff]
    %v614 = vld [vmem:[#allocation7 + $0x590] sm:$0xff]
    %v615 = vld [vmem:[#allocation7 + $0x598] sm:$0xff]
    %v616 = vld [vmem:[#allocation7 + $0x5a0] sm:$0xff]
    %v617 = vld [vmem:[#allocation7 + $0x5a8] sm:$0xff]
    %v618 = vld [vmem:[#allocation7 + $0x5b0] sm:$0xff]
    %v619 = vld [vmem:[#allocation7 + $0x5b8] sm:$0xff]
    %v620 = vld [vmem:[#allocation7 + $0x5c0] sm:$0xff]
    %v621 = vld [vmem:[#allocation7 + $0x5c8] sm:$0xff]
    %v622 = vld [vmem:[#allocation7 + $0x5d0] sm:$0xff]
    %v623 = vld [vmem:[#allocation7 + $0x5d8] sm:$0xff]
    %v624 = vld [vmem:[#allocation7 + $0x5e0] sm:$0xff]
    %v625 = vld [vmem:[#allocation7 + $0x5e8] sm:$0xff]
    %v626 = vld [vmem:[#allocation7 + $0x5f0] sm:$0xff]
    %v627 = vld [vmem:[#allocation7 + $0x5f8] sm:$0xff]
    %v628 = vld [vmem:[#allocation7 + $0x600] sm:$0xff]
    %v629 = vld [vmem:[#allocation7 + $0x608] sm:$0xff]
    %v630 = vld [vmem:[#allocation7 + $0x610] sm:$0xff]
    %v631 = vld [vmem:[#allocation7 + $0x618] sm:$0xff]
    %v632 = vld [vmem:[#allocation7 + $0x620] sm:$0xff]
    %v633 = vld [vmem:[#allocation7 + $0x628] sm:$0xff]
    %v634 = vld [vmem:[#allocation7 + $0x630] sm:$0xff]
    %v635 = vld [vmem:[#allocation7 + $0x638] sm:$0xff]
    %v636 = vld [vmem:[#allocation7 + $0x640] sm:$0xff]
    %v637 = vld [vmem:[#allocation7 + $0x648] sm:$0xff]
    %v638 = vld [vmem:[#allocation7 + $0x650] sm:$0xff]
    %v639 = vld [vmem:[#allocation7 + $0x658] sm:$0xff]
    %v640 = vld [vmem:[#allocation7 + $0x660] sm:$0xff]
    %v641 = vld [vmem:[#allocation7 + $0x668] sm:$0xff]
    %v642 = vld [vmem:[#allocation7 + $0x670] sm:$0xff]
    %v643 = vld [vmem:[#allocation7 + $0x678] sm:$0xff]
    %v644 = vld [vmem:[#allocation7 + $0x680] sm:$0xff]
    %v645 = vld [vmem:[#allocation7 + $0x688] sm:$0xff]
    %v646 = vld [vmem:[#allocation7 + $0x690] sm:$0xff]
    %v647 = vld [vmem:[#allocation7 + $0x698] sm:$0xff]
    %v648 = vld [vmem:[#allocation7 + $0x6a0] sm:$0xff]
    %v649 = vld [vmem:[#allocation7 + $0x6a8] sm:$0xff]
    %v650 = vld [vmem:[#allocation7 + $0x6b0] sm:$0xff]
    %v651 = vld [vmem:[#allocation7 + $0x6b8] sm:$0xff]
    %v652 = vld [vmem:[#allocation7 + $0x6c0] sm:$0xff]
    %v653 = vld [vmem:[#allocation7 + $0x6c8] sm:$0xff]
    %v654 = vld [vmem:[#allocation7 + $0x6d0] sm:$0xff]
    %v655 = vld [vmem:[#allocation7 + $0x6d8] sm:$0xff]
    %v656 = vld [vmem:[#allocation7 + $0x6e0] sm:$0xff]
    %v657 = vld [vmem:[#allocation7 + $0x6e8] sm:$0xff]
    %v658 = vld [vmem:[#allocation7 + $0x6f0] sm:$0xff]
    %v659 = vld [vmem:[#allocation7 + $0x6f8] sm:$0xff]
    %v660 = vld [vmem:[#allocation7 + $0x700] sm:$0xff]
    %v661 = vld [vmem:[#allocation7 + $0x708] sm:$0xff]
    %v662 = vld [vmem:[#allocation7 + $0x710] sm:$0xff]
    %v663 = vld [vmem:[#allocation7 + $0x718] sm:$0xff]
    %v664 = vld [vmem:[#allocation7 + $0x720] sm:$0xff]
    %v665 = vld [vmem:[#allocation7 + $0x728] sm:$0xff]
    %v666 = vld [vmem:[#allocation7 + $0x730] sm:$0xff]
    %v667 = vld [vmem:[#allocation7 + $0x738] sm:$0xff]
    %v668 = vld [vmem:[#allocation7 + $0x740] sm:$0xff]
    %v669 = vld [vmem:[#allocation7 + $0x748] sm:$0xff]
    %v670 = vld [vmem:[#allocation7 + $0x750] sm:$0xff]
    %v671 = vld [vmem:[#allocation7 + $0x758] sm:$0xff]
    %v672 = vld [vmem:[#allocation7 + $0x760] sm:$0xff]
    %v673 = vld [vmem:[#allocation7 + $0x768] sm:$0xff]
    %v674 = vld [vmem:[#allocation7 + $0x770] sm:$0xff]
    %v675 = vld [vmem:[#allocation7 + $0x778] sm:$0xff]
    %v676 = vld [vmem:[#allocation7 + $0x780] sm:$0xff]
    %v677 = vld [vmem:[#allocation7 + $0x788] sm:$0xff]
    %v678 = vld [vmem:[#allocation7 + $0x790] sm:$0xff]
    %v679 = vld [vmem:[#allocation7 + $0x798] sm:$0xff]
    %v680 = vld [vmem:[#allocation7 + $0x7a0] sm:$0xff]
    %v681 = vld [vmem:[#allocation7 + $0x7a8] sm:$0xff]
    %v682 = vld [vmem:[#allocation7 + $0x7b0] sm:$0xff]
    %v683 = vld [vmem:[#allocation7 + $0x7b8] sm:$0xff]
    %v684 = vld [vmem:[#allocation7 + $0x7c0] sm:$0xff]
    %v685 = vld [vmem:[#allocation7 + $0x7c8] sm:$0xff]
    %v686 = vld [vmem:[#allocation7 + $0x7d0] sm:$0xff]
    %v687 = vld [vmem:[#allocation7 + $0x7d8] sm:$0xff]
    %v688 = vld [vmem:[#allocation7 + $0x7e0] sm:$0xff]
    %v689 = vld [vmem:[#allocation7 + $0x7e8] sm:$0xff]
    %v690 = vld [vmem:[#allocation7 + $0x7f0] sm:$0xff]
    %v691 = vld [vmem:[#allocation7 + $0x7f8] sm:$0xff]
    %v692 = vunpack.c.l.s8.bf16 %v436
    %v693 = vunpack.c.l.s8.bf16 %v437
    %v694 = vunpack.c.l.s8.bf16 %v438
    %v695 = vunpack.c.l.s8.bf16 %v439
    %v696 = vunpack.c.l.s8.bf16 %v440
    %v697 = vunpack.c.l.s8.bf16 %v441
    %v698 = vunpack.c.l.s8.bf16 %v442
    %v699 = vunpack.c.l.s8.bf16 %v443
    %v700 = vunpack.c.h.s8.bf16 %v436
    %v701 = vunpack.c.h.s8.bf16 %v437
    %v702 = vunpack.c.h.s8.bf16 %v438
    %v703 = vunpack.c.h.s8.bf16 %v439
    %v704 = vunpack.c.h.s8.bf16 %v440
    %v705 = vunpack.c.h.s8.bf16 %v441
    %v706 = vunpack.c.h.s8.bf16 %v442
    %v707 = vunpack.c.h.s8.bf16 %v443
    %v708 = vunpack.c.l.s8.bf16 %v444
    %v709 = vunpack.c.l.s8.bf16 %v445
    %v710 = vunpack.c.l.s8.bf16 %v446
    %v711 = vunpack.c.l.s8.bf16 %v447
    %v712 = vunpack.c.l.s8.bf16 %v448
    %v713 = vunpack.c.l.s8.bf16 %v449
    %v714 = vunpack.c.l.s8.bf16 %v450
    %v715 = vunpack.c.l.s8.bf16 %v451
    %v716 = vunpack.c.h.s8.bf16 %v444
    %v717 = vunpack.c.h.s8.bf16 %v445
    %v718 = vunpack.c.h.s8.bf16 %v446
    %v719 = vunpack.c.h.s8.bf16 %v447
    %v720 = vunpack.c.h.s8.bf16 %v448
    %v721 = vunpack.c.h.s8.bf16 %v449
    %v722 = vunpack.c.h.s8.bf16 %v450
    %v723 = vunpack.c.h.s8.bf16 %v451
    %v724 = vunpack.c.l.s8.bf16 %v452
    %v725 = vunpack.c.l.s8.bf16 %v453
    %v726 = vunpack.c.l.s8.bf16 %v454
    %v727 = vunpack.c.l.s8.bf16 %v455
    %v728 = vunpack.c.l.s8.bf16 %v456
    %v729 = vunpack.c.l.s8.bf16 %v457
    %v730 = vunpack.c.l.s8.bf16 %v458
    %v731 = vunpack.c.l.s8.bf16 %v459
    %v732 = vunpack.c.h.s8.bf16 %v452
    %v733 = vunpack.c.h.s8.bf16 %v453
    %v734 = vunpack.c.h.s8.bf16 %v454
    %v735 = vunpack.c.h.s8.bf16 %v455
    %v736 = vunpack.c.h.s8.bf16 %v456
    %v737 = vunpack.c.h.s8.bf16 %v457
    %v738 = vunpack.c.h.s8.bf16 %v458
    %v739 = vunpack.c.h.s8.bf16 %v459
    %v740 = vunpack.c.l.s8.bf16 %v460
    %v741 = vunpack.c.l.s8.bf16 %v461
    %v742 = vunpack.c.l.s8.bf16 %v462
    %v743 = vunpack.c.l.s8.bf16 %v463
    %v744 = vunpack.c.l.s8.bf16 %v464
    %v745 = vunpack.c.l.s8.bf16 %v465
    %v746 = vunpack.c.l.s8.bf16 %v466
    %v747 = vunpack.c.l.s8.bf16 %v467
    %v748 = vunpack.c.h.s8.bf16 %v460
    %v749 = vunpack.c.h.s8.bf16 %v461
    %v750 = vunpack.c.h.s8.bf16 %v462
    %v751 = vunpack.c.h.s8.bf16 %v463
    %v752 = vunpack.c.h.s8.bf16 %v464
    %v753 = vunpack.c.h.s8.bf16 %v465
    %v754 = vunpack.c.h.s8.bf16 %v466
    %v755 = vunpack.c.h.s8.bf16 %v467
    %v756 = vunpack.c.l.s8.bf16 %v468
    %v757 = vunpack.c.l.s8.bf16 %v469
    %v758 = vunpack.c.l.s8.bf16 %v470
    %v759 = vunpack.c.l.s8.bf16 %v471
    %v760 = vunpack.c.l.s8.bf16 %v472
    %v761 = vunpack.c.l.s8.bf16 %v473
    %v762 = vunpack.c.l.s8.bf16 %v474
    %v763 = vunpack.c.l.s8.bf16 %v475
    %v764 = vunpack.c.h.s8.bf16 %v468
    %v765 = vunpack.c.h.s8.bf16 %v469
    %v766 = vunpack.c.h.s8.bf16 %v470
    %v767 = vunpack.c.h.s8.bf16 %v471
    %v768 = vunpack.c.h.s8.bf16 %v472
    %v769 = vunpack.c.h.s8.bf16 %v473
    %v770 = vunpack.c.h.s8.bf16 %v474
    %v771 = vunpack.c.h.s8.bf16 %v475
    %v772 = vunpack.c.l.s8.bf16 %v476
    %v773 = vunpack.c.l.s8.bf16 %v477
    %v774 = vunpack.c.l.s8.bf16 %v478
    %v775 = vunpack.c.l.s8.bf16 %v479
    %v776 = vunpack.c.l.s8.bf16 %v480
    %v777 = vunpack.c.l.s8.bf16 %v481
    %v778 = vunpack.c.l.s8.bf16 %v482
    %v779 = vunpack.c.l.s8.bf16 %v483
    %v780 = vunpack.c.h.s8.bf16 %v476
    %v781 = vunpack.c.h.s8.bf16 %v477
    %v782 = vunpack.c.h.s8.bf16 %v478
    %v783 = vunpack.c.h.s8.bf16 %v479
    %v784 = vunpack.c.h.s8.bf16 %v480
    %v785 = vunpack.c.h.s8.bf16 %v481
    %v786 = vunpack.c.h.s8.bf16 %v482
    %v787 = vunpack.c.h.s8.bf16 %v483
    %v788 = vunpack.c.l.s8.bf16 %v484
    %v789 = vunpack.c.l.s8.bf16 %v485
    %v790 = vunpack.c.l.s8.bf16 %v486
    %v791 = vunpack.c.l.s8.bf16 %v487
    %v792 = vunpack.c.l.s8.bf16 %v488
    %v793 = vunpack.c.l.s8.bf16 %v489
    %v794 = vunpack.c.l.s8.bf16 %v490
    %v795 = vunpack.c.l.s8.bf16 %v491
    %v796 = vunpack.c.h.s8.bf16 %v484
    %v797 = vunpack.c.h.s8.bf16 %v485
    %v798 = vunpack.c.h.s8.bf16 %v486
    %v799 = vunpack.c.h.s8.bf16 %v487
    %v800 = vunpack.c.h.s8.bf16 %v488
    %v801 = vunpack.c.h.s8.bf16 %v489
    %v802 = vunpack.c.h.s8.bf16 %v490
    %v803 = vunpack.c.h.s8.bf16 %v491
    %v804 = vunpack.c.l.s8.bf16 %v492
    %v805 = vunpack.c.l.s8.bf16 %v493
    %v806 = vunpack.c.l.s8.bf16 %v494
    %v807 = vunpack.c.l.s8.bf16 %v495
    %v808 = vunpack.c.l.s8.bf16 %v496
    %v809 = vunpack.c.l.s8.bf16 %v497
    %v810 = vunpack.c.l.s8.bf16 %v498
    %v811 = vunpack.c.l.s8.bf16 %v499
    %v812 = vunpack.c.h.s8.bf16 %v492
    %v813 = vunpack.c.h.s8.bf16 %v493
    %v814 = vunpack.c.h.s8.bf16 %v494
    %v815 = vunpack.c.h.s8.bf16 %v495
    %v816 = vunpack.c.h.s8.bf16 %v496
    %v817 = vunpack.c.h.s8.bf16 %v497
    %v818 = vunpack.c.h.s8.bf16 %v498
    %v819 = vunpack.c.h.s8.bf16 %v499
    %v820 = vunpack.c.l.s8.bf16 %v500
    %v821 = vunpack.c.l.s8.bf16 %v501
    %v822 = vunpack.c.l.s8.bf16 %v502
    %v823 = vunpack.c.l.s8.bf16 %v503
    %v824 = vunpack.c.l.s8.bf16 %v504
    %v825 = vunpack.c.l.s8.bf16 %v505
    %v826 = vunpack.c.l.s8.bf16 %v506
    %v827 = vunpack.c.l.s8.bf16 %v507
    %v828 = vunpack.c.h.s8.bf16 %v500
    %v829 = vunpack.c.h.s8.bf16 %v501
    %v830 = vunpack.c.h.s8.bf16 %v502
    %v831 = vunpack.c.h.s8.bf16 %v503
    %v832 = vunpack.c.h.s8.bf16 %v504
    %v833 = vunpack.c.h.s8.bf16 %v505
    %v834 = vunpack.c.h.s8.bf16 %v506
    %v835 = vunpack.c.h.s8.bf16 %v507
    %v836 = vunpack.c.l.s8.bf16 %v508
    %v837 = vunpack.c.l.s8.bf16 %v509
    %v838 = vunpack.c.l.s8.bf16 %v510
    %v839 = vunpack.c.l.s8.bf16 %v511
    %v840 = vunpack.c.l.s8.bf16 %v512
    %v841 = vunpack.c.l.s8.bf16 %v513
    %v842 = vunpack.c.l.s8.bf16 %v514
    %v843 = vunpack.c.l.s8.bf16 %v515
    %v844 = vunpack.c.h.s8.bf16 %v508
    %v845 = vunpack.c.h.s8.bf16 %v509
    %v846 = vunpack.c.h.s8.bf16 %v510
    %v847 = vunpack.c.h.s8.bf16 %v511
    %v848 = vunpack.c.h.s8.bf16 %v512
    %v849 = vunpack.c.h.s8.bf16 %v513
    %v850 = vunpack.c.h.s8.bf16 %v514
    %v851 = vunpack.c.h.s8.bf16 %v515
    %v852 = vunpack.c.l.s8.bf16 %v516
    %v853 = vunpack.c.l.s8.bf16 %v517
    %v854 = vunpack.c.l.s8.bf16 %v518
    %v855 = vunpack.c.l.s8.bf16 %v519
    %v856 = vunpack.c.l.s8.bf16 %v520
    %v857 = vunpack.c.l.s8.bf16 %v521
    %v858 = vunpack.c.l.s8.bf16 %v522
    %v859 = vunpack.c.l.s8.bf16 %v523
    %v860 = vunpack.c.h.s8.bf16 %v516
    %v861 = vunpack.c.h.s8.bf16 %v517
    %v862 = vunpack.c.h.s8.bf16 %v518
    %v863 = vunpack.c.h.s8.bf16 %v519
    %v864 = vunpack.c.h.s8.bf16 %v520
    %v865 = vunpack.c.h.s8.bf16 %v521
    %v866 = vunpack.c.h.s8.bf16 %v522
    %v867 = vunpack.c.h.s8.bf16 %v523
    %v868 = vunpack.c.l.s8.bf16 %v524
    %v869 = vunpack.c.l.s8.bf16 %v525
    %v870 = vunpack.c.l.s8.bf16 %v526
    %v871 = vunpack.c.l.s8.bf16 %v527
    %v872 = vunpack.c.l.s8.bf16 %v528
    %v873 = vunpack.c.l.s8.bf16 %v529
    %v874 = vunpack.c.l.s8.bf16 %v530
    %v875 = vunpack.c.l.s8.bf16 %v531
    %v876 = vunpack.c.h.s8.bf16 %v524
    %v877 = vunpack.c.h.s8.bf16 %v525
    %v878 = vunpack.c.h.s8.bf16 %v526
    %v879 = vunpack.c.h.s8.bf16 %v527
    %v880 = vunpack.c.h.s8.bf16 %v528
    %v881 = vunpack.c.h.s8.bf16 %v529
    %v882 = vunpack.c.h.s8.bf16 %v530
    %v883 = vunpack.c.h.s8.bf16 %v531
    %v884 = vunpack.c.l.s8.bf16 %v532
    %v885 = vunpack.c.l.s8.bf16 %v533
    %v886 = vunpack.c.l.s8.bf16 %v534
    %v887 = vunpack.c.l.s8.bf16 %v535
    %v888 = vunpack.c.l.s8.bf16 %v536
    %v889 = vunpack.c.l.s8.bf16 %v537
    %v890 = vunpack.c.l.s8.bf16 %v538
    %v891 = vunpack.c.l.s8.bf16 %v539
    %v892 = vunpack.c.h.s8.bf16 %v532
    %v893 = vunpack.c.h.s8.bf16 %v533
    %v894 = vunpack.c.h.s8.bf16 %v534
    %v895 = vunpack.c.h.s8.bf16 %v535
    %v896 = vunpack.c.h.s8.bf16 %v536
    %v897 = vunpack.c.h.s8.bf16 %v537
    %v898 = vunpack.c.h.s8.bf16 %v538
    %v899 = vunpack.c.h.s8.bf16 %v539
    %v900 = vunpack.c.l.s8.bf16 %v540
    %v901 = vunpack.c.l.s8.bf16 %v541
    %v902 = vunpack.c.l.s8.bf16 %v542
    %v903 = vunpack.c.l.s8.bf16 %v543
    %v904 = vunpack.c.l.s8.bf16 %v544
    %v905 = vunpack.c.l.s8.bf16 %v545
    %v906 = vunpack.c.l.s8.bf16 %v546
    %v907 = vunpack.c.l.s8.bf16 %v547
    %v908 = vunpack.c.h.s8.bf16 %v540
    %v909 = vunpack.c.h.s8.bf16 %v541
    %v910 = vunpack.c.h.s8.bf16 %v542
    %v911 = vunpack.c.h.s8.bf16 %v543
    %v912 = vunpack.c.h.s8.bf16 %v544
    %v913 = vunpack.c.h.s8.bf16 %v545
    %v914 = vunpack.c.h.s8.bf16 %v546
    %v915 = vunpack.c.h.s8.bf16 %v547
    %v916 = vunpack.c.l.s8.bf16 %v548
    %v917 = vunpack.c.l.s8.bf16 %v549
    %v918 = vunpack.c.l.s8.bf16 %v550
    %v919 = vunpack.c.l.s8.bf16 %v551
    %v920 = vunpack.c.l.s8.bf16 %v552
    %v921 = vunpack.c.l.s8.bf16 %v553
    %v922 = vunpack.c.l.s8.bf16 %v554
    %v923 = vunpack.c.l.s8.bf16 %v555
    %v924 = vunpack.c.h.s8.bf16 %v548
    %v925 = vunpack.c.h.s8.bf16 %v549
    %v926 = vunpack.c.h.s8.bf16 %v550
    %v927 = vunpack.c.h.s8.bf16 %v551
    %v928 = vunpack.c.h.s8.bf16 %v552
    %v929 = vunpack.c.h.s8.bf16 %v553
    %v930 = vunpack.c.h.s8.bf16 %v554
    %v931 = vunpack.c.h.s8.bf16 %v555
    %v932 = vunpack.c.l.s8.bf16 %v556
    %v933 = vunpack.c.l.s8.bf16 %v557
    %v934 = vunpack.c.l.s8.bf16 %v558
    %v935 = vunpack.c.l.s8.bf16 %v559
    %v936 = vunpack.c.l.s8.bf16 %v560
    %v937 = vunpack.c.l.s8.bf16 %v561
    %v938 = vunpack.c.l.s8.bf16 %v562
    %v939 = vunpack.c.l.s8.bf16 %v563
    %v940 = vunpack.c.h.s8.bf16 %v556
    %v941 = vunpack.c.h.s8.bf16 %v557
    %v942 = vunpack.c.h.s8.bf16 %v558
    %v943 = vunpack.c.h.s8.bf16 %v559
    %v944 = vunpack.c.h.s8.bf16 %v560
    %v945 = vunpack.c.h.s8.bf16 %v561
    %v946 = vunpack.c.h.s8.bf16 %v562
    %v947 = vunpack.c.h.s8.bf16 %v563
    %v948 = vunpack.c.l.s8.bf16 %v564
    %v949 = vunpack.c.l.s8.bf16 %v565
    %v950 = vunpack.c.l.s8.bf16 %v566
    %v951 = vunpack.c.l.s8.bf16 %v567
    %v952 = vunpack.c.l.s8.bf16 %v568
    %v953 = vunpack.c.l.s8.bf16 %v569
    %v954 = vunpack.c.l.s8.bf16 %v570
    %v955 = vunpack.c.l.s8.bf16 %v571
    %v956 = vunpack.c.h.s8.bf16 %v564
    %v957 = vunpack.c.h.s8.bf16 %v565
    %v958 = vunpack.c.h.s8.bf16 %v566
    %v959 = vunpack.c.h.s8.bf16 %v567
    %v960 = vunpack.c.h.s8.bf16 %v568
    %v961 = vunpack.c.h.s8.bf16 %v569
    %v962 = vunpack.c.h.s8.bf16 %v570
    %v963 = vunpack.c.h.s8.bf16 %v571
    %v964 = vunpack.c.l.s8.bf16 %v572
    %v965 = vunpack.c.l.s8.bf16 %v573
    %v966 = vunpack.c.l.s8.bf16 %v574
    %v967 = vunpack.c.l.s8.bf16 %v575
    %v968 = vunpack.c.l.s8.bf16 %v576
    %v969 = vunpack.c.l.s8.bf16 %v577
    %v970 = vunpack.c.l.s8.bf16 %v578
    %v971 = vunpack.c.l.s8.bf16 %v579
    %v972 = vunpack.c.h.s8.bf16 %v572
    %v973 = vunpack.c.h.s8.bf16 %v573
    %v974 = vunpack.c.h.s8.bf16 %v574
    %v975 = vunpack.c.h.s8.bf16 %v575
    %v976 = vunpack.c.h.s8.bf16 %v576
    %v977 = vunpack.c.h.s8.bf16 %v577
    %v978 = vunpack.c.h.s8.bf16 %v578
    %v979 = vunpack.c.h.s8.bf16 %v579
    %v980 = vunpack.c.l.s8.bf16 %v580
    %v981 = vunpack.c.l.s8.bf16 %v581
    %v982 = vunpack.c.l.s8.bf16 %v582
    %v983 = vunpack.c.l.s8.bf16 %v583
    %v984 = vunpack.c.l.s8.bf16 %v584
    %v985 = vunpack.c.l.s8.bf16 %v585
    %v986 = vunpack.c.l.s8.bf16 %v586
    %v987 = vunpack.c.l.s8.bf16 %v587
    %v988 = vunpack.c.h.s8.bf16 %v580
    %v989 = vunpack.c.h.s8.bf16 %v581
    %v990 = vunpack.c.h.s8.bf16 %v582
    %v991 = vunpack.c.h.s8.bf16 %v583
    %v992 = vunpack.c.h.s8.bf16 %v584
    %v993 = vunpack.c.h.s8.bf16 %v585
    %v994 = vunpack.c.h.s8.bf16 %v586
    %v995 = vunpack.c.h.s8.bf16 %v587
    %v996 = vunpack.c.l.s8.bf16 %v588
    %v997 = vunpack.c.l.s8.bf16 %v589
    %v998 = vunpack.c.l.s8.bf16 %v590
    %v999 = vunpack.c.l.s8.bf16 %v591
    %v1000 = vunpack.c.l.s8.bf16 %v592
    %v1001 = vunpack.c.l.s8.bf16 %v593
    %v1002 = vunpack.c.l.s8.bf16 %v594
    %v1003 = vunpack.c.l.s8.bf16 %v595
    %v1004 = vunpack.c.h.s8.bf16 %v588
    %v1005 = vunpack.c.h.s8.bf16 %v589
    %v1006 = vunpack.c.h.s8.bf16 %v590
    %v1007 = vunpack.c.h.s8.bf16 %v591
    %v1008 = vunpack.c.h.s8.bf16 %v592
    %v1009 = vunpack.c.h.s8.bf16 %v593
    %v1010 = vunpack.c.h.s8.bf16 %v594
    %v1011 = vunpack.c.h.s8.bf16 %v595
    %v1012 = vunpack.c.l.s8.bf16 %v596
    %v1013 = vunpack.c.l.s8.bf16 %v597
    %v1014 = vunpack.c.l.s8.bf16 %v598
    %v1015 = vunpack.c.l.s8.bf16 %v599
    %v1016 = vunpack.c.l.s8.bf16 %v600
    %v1017 = vunpack.c.l.s8.bf16 %v601
    %v1018 = vunpack.c.l.s8.bf16 %v602
    %v1019 = vunpack.c.l.s8.bf16 %v603
    %v1020 = vunpack.c.h.s8.bf16 %v596
    %v1021 = vunpack.c.h.s8.bf16 %v597
    %v1022 = vunpack.c.h.s8.bf16 %v598
    %v1023 = vunpack.c.h.s8.bf16 %v599
    %v1024 = vunpack.c.h.s8.bf16 %v600
    %v1025 = vunpack.c.h.s8.bf16 %v601
    %v1026 = vunpack.c.h.s8.bf16 %v602
    %v1027 = vunpack.c.h.s8.bf16 %v603
    %v1028 = vunpack.c.l.s8.bf16 %v604
    %v1029 = vunpack.c.l.s8.bf16 %v605
    %v1030 = vunpack.c.l.s8.bf16 %v606
    %v1031 = vunpack.c.l.s8.bf16 %v607
    %v1032 = vunpack.c.l.s8.bf16 %v608
    %v1033 = vunpack.c.l.s8.bf16 %v609
    %v1034 = vunpack.c.l.s8.bf16 %v610
    %v1035 = vunpack.c.l.s8.bf16 %v611
    %v1036 = vunpack.c.h.s8.bf16 %v604
    %v1037 = vunpack.c.h.s8.bf16 %v605
    %v1038 = vunpack.c.h.s8.bf16 %v606
    %v1039 = vunpack.c.h.s8.bf16 %v607
    %v1040 = vunpack.c.h.s8.bf16 %v608
    %v1041 = vunpack.c.h.s8.bf16 %v609
    %v1042 = vunpack.c.h.s8.bf16 %v610
    %v1043 = vunpack.c.h.s8.bf16 %v611
    %v1044 = vunpack.c.l.s8.bf16 %v612
    %v1045 = vunpack.c.l.s8.bf16 %v613
    %v1046 = vunpack.c.l.s8.bf16 %v614
    %v1047 = vunpack.c.l.s8.bf16 %v615
    %v1048 = vunpack.c.l.s8.bf16 %v616
    %v1049 = vunpack.c.l.s8.bf16 %v617
    %v1050 = vunpack.c.l.s8.bf16 %v618
    %v1051 = vunpack.c.l.s8.bf16 %v619
    %v1052 = vunpack.c.h.s8.bf16 %v612
    %v1053 = vunpack.c.h.s8.bf16 %v613
    %v1054 = vunpack.c.h.s8.bf16 %v614
    %v1055 = vunpack.c.h.s8.bf16 %v615
    %v1056 = vunpack.c.h.s8.bf16 %v616
    %v1057 = vunpack.c.h.s8.bf16 %v617
    %v1058 = vunpack.c.h.s8.bf16 %v618
    %v1059 = vunpack.c.h.s8.bf16 %v619
    %v1060 = vunpack.c.l.s8.bf16 %v620
    %v1061 = vunpack.c.l.s8.bf16 %v621
    %v1062 = vunpack.c.l.s8.bf16 %v622
    %v1063 = vunpack.c.l.s8.bf16 %v623
    %v1064 = vunpack.c.l.s8.bf16 %v624
    %v1065 = vunpack.c.l.s8.bf16 %v625
    %v1066 = vunpack.c.l.s8.bf16 %v626
    %v1067 = vunpack.c.l.s8.bf16 %v627
    %v1068 = vunpack.c.h.s8.bf16 %v620
    %v1069 = vunpack.c.h.s8.bf16 %v621
    %v1070 = vunpack.c.h.s8.bf16 %v622
    %v1071 = vunpack.c.h.s8.bf16 %v623
    %v1072 = vunpack.c.h.s8.bf16 %v624
    %v1073 = vunpack.c.h.s8.bf16 %v625
    %v1074 = vunpack.c.h.s8.bf16 %v626
    %v1075 = vunpack.c.h.s8.bf16 %v627
    %v1076 = vunpack.c.l.s8.bf16 %v628
    %v1077 = vunpack.c.l.s8.bf16 %v629
    %v1078 = vunpack.c.l.s8.bf16 %v630
    %v1079 = vunpack.c.l.s8.bf16 %v631
    %v1080 = vunpack.c.l.s8.bf16 %v632
    %v1081 = vunpack.c.l.s8.bf16 %v633
    %v1082 = vunpack.c.l.s8.bf16 %v634
    %v1083 = vunpack.c.l.s8.bf16 %v635
    %v1084 = vunpack.c.h.s8.bf16 %v628
    %v1085 = vunpack.c.h.s8.bf16 %v629
    %v1086 = vunpack.c.h.s8.bf16 %v630
    %v1087 = vunpack.c.h.s8.bf16 %v631
    %v1088 = vunpack.c.h.s8.bf16 %v632
    %v1089 = vunpack.c.h.s8.bf16 %v633
    %v1090 = vunpack.c.h.s8.bf16 %v634
    %v1091 = vunpack.c.h.s8.bf16 %v635
    %v1092 = vunpack.c.l.s8.bf16 %v636
    %v1093 = vunpack.c.l.s8.bf16 %v637
    %v1094 = vunpack.c.l.s8.bf16 %v638
    %v1095 = vunpack.c.l.s8.bf16 %v639
    %v1096 = vunpack.c.l.s8.bf16 %v640
    %v1097 = vunpack.c.l.s8.bf16 %v641
    %v1098 = vunpack.c.l.s8.bf16 %v642
    %v1099 = vunpack.c.l.s8.bf16 %v643
    %v1100 = vunpack.c.h.s8.bf16 %v636
    %v1101 = vunpack.c.h.s8.bf16 %v637
    %v1102 = vunpack.c.h.s8.bf16 %v638
    %v1103 = vunpack.c.h.s8.bf16 %v639
    %v1104 = vunpack.c.h.s8.bf16 %v640
    %v1105 = vunpack.c.h.s8.bf16 %v641
    %v1106 = vunpack.c.h.s8.bf16 %v642
    %v1107 = vunpack.c.h.s8.bf16 %v643
    %v1108 = vunpack.c.l.s8.bf16 %v644
    %v1109 = vunpack.c.l.s8.bf16 %v645
    %v1110 = vunpack.c.l.s8.bf16 %v646
    %v1111 = vunpack.c.l.s8.bf16 %v647
    %v1112 = vunpack.c.l.s8.bf16 %v648
    %v1113 = vunpack.c.l.s8.bf16 %v649
    %v1114 = vunpack.c.l.s8.bf16 %v650
    %v1115 = vunpack.c.l.s8.bf16 %v651
    %v1116 = vunpack.c.h.s8.bf16 %v644
    %v1117 = vunpack.c.h.s8.bf16 %v645
    %v1118 = vunpack.c.h.s8.bf16 %v646
    %v1119 = vunpack.c.h.s8.bf16 %v647
    %v1120 = vunpack.c.h.s8.bf16 %v648
    %v1121 = vunpack.c.h.s8.bf16 %v649
    %v1122 = vunpack.c.h.s8.bf16 %v650
    %v1123 = vunpack.c.h.s8.bf16 %v651
    %v1124 = vunpack.c.l.s8.bf16 %v652
    %v1125 = vunpack.c.l.s8.bf16 %v653
    %v1126 = vunpack.c.l.s8.bf16 %v654
    %v1127 = vunpack.c.l.s8.bf16 %v655
    %v1128 = vunpack.c.l.s8.bf16 %v656
    %v1129 = vunpack.c.l.s8.bf16 %v657
    %v1130 = vunpack.c.l.s8.bf16 %v658
    %v1131 = vunpack.c.l.s8.bf16 %v659
    %v1132 = vunpack.c.h.s8.bf16 %v652
    %v1133 = vunpack.c.h.s8.bf16 %v653
    %v1134 = vunpack.c.h.s8.bf16 %v654
    %v1135 = vunpack.c.h.s8.bf16 %v655
    %v1136 = vunpack.c.h.s8.bf16 %v656
    %v1137 = vunpack.c.h.s8.bf16 %v657
    %v1138 = vunpack.c.h.s8.bf16 %v658
    %v1139 = vunpack.c.h.s8.bf16 %v659
    %v1140 = vunpack.c.l.s8.bf16 %v660
    %v1141 = vunpack.c.l.s8.bf16 %v661
    %v1142 = vunpack.c.l.s8.bf16 %v662
    %v1143 = vunpack.c.l.s8.bf16 %v663
    %v1144 = vunpack.c.l.s8.bf16 %v664
    %v1145 = vunpack.c.l.s8.bf16 %v665
    %v1146 = vunpack.c.l.s8.bf16 %v666
    %v1147 = vunpack.c.l.s8.bf16 %v667
    %v1148 = vunpack.c.h.s8.bf16 %v660
    %v1149 = vunpack.c.h.s8.bf16 %v661
    %v1150 = vunpack.c.h.s8.bf16 %v662
    %v1151 = vunpack.c.h.s8.bf16 %v663
    %v1152 = vunpack.c.h.s8.bf16 %v664
    %v1153 = vunpack.c.h.s8.bf16 %v665
    %v1154 = vunpack.c.h.s8.bf16 %v666
    %v1155 = vunpack.c.h.s8.bf16 %v667
    %v1156 = vunpack.c.l.s8.bf16 %v668
    %v1157 = vunpack.c.l.s8.bf16 %v669
    %v1158 = vunpack.c.l.s8.bf16 %v670
    %v1159 = vunpack.c.l.s8.bf16 %v671
    %v1160 = vunpack.c.l.s8.bf16 %v672
    %v1161 = vunpack.c.l.s8.bf16 %v673
    %v1162 = vunpack.c.l.s8.bf16 %v674
    %v1163 = vunpack.c.l.s8.bf16 %v675
    %v1164 = vunpack.c.h.s8.bf16 %v668
    %v1165 = vunpack.c.h.s8.bf16 %v669
    %v1166 = vunpack.c.h.s8.bf16 %v670
    %v1167 = vunpack.c.h.s8.bf16 %v671
    %v1168 = vunpack.c.h.s8.bf16 %v672
    %v1169 = vunpack.c.h.s8.bf16 %v673
    %v1170 = vunpack.c.h.s8.bf16 %v674
    %v1171 = vunpack.c.h.s8.bf16 %v675
    %v1172 = vunpack.c.l.s8.bf16 %v676
    %v1173 = vunpack.c.l.s8.bf16 %v677
    %v1174 = vunpack.c.l.s8.bf16 %v678
    %v1175 = vunpack.c.l.s8.bf16 %v679
    %v1176 = vunpack.c.l.s8.bf16 %v680
    %v1177 = vunpack.c.l.s8.bf16 %v681
    %v1178 = vunpack.c.l.s8.bf16 %v682
    %v1179 = vunpack.c.l.s8.bf16 %v683
    %v1180 = vunpack.c.h.s8.bf16 %v676
    %v1181 = vunpack.c.h.s8.bf16 %v677
    %v1182 = vunpack.c.h.s8.bf16 %v678
    %v1183 = vunpack.c.h.s8.bf16 %v679
    %v1184 = vunpack.c.h.s8.bf16 %v680
    %v1185 = vunpack.c.h.s8.bf16 %v681
    %v1186 = vunpack.c.h.s8.bf16 %v682
    %v1187 = vunpack.c.h.s8.bf16 %v683
    %v1188 = vunpack.c.l.s8.bf16 %v684
    %v1189 = vunpack.c.l.s8.bf16 %v685
    %v1190 = vunpack.c.l.s8.bf16 %v686
    %v1191 = vunpack.c.l.s8.bf16 %v687
    %v1192 = vunpack.c.l.s8.bf16 %v688
    %v1193 = vunpack.c.l.s8.bf16 %v689
    %v1194 = vunpack.c.l.s8.bf16 %v690
    %v1195 = vunpack.c.l.s8.bf16 %v691
    %v1196 = vunpack.c.h.s8.bf16 %v684
    %v1197 = vunpack.c.h.s8.bf16 %v685
    %v1198 = vunpack.c.h.s8.bf16 %v686
    %v1199 = vunpack.c.h.s8.bf16 %v687
    %v1200 = vunpack.c.h.s8.bf16 %v688
    %v1201 = vunpack.c.h.s8.bf16 %v689
    %v1202 = vunpack.c.h.s8.bf16 %v690
    %v1203 = vunpack.c.h.s8.bf16 %v691
    %1204 = vmatprep.subr.bf16.mxu0 %v693
    %1205 = vmatpush1.bf16.msra.mxu0 %v692
    %1206 = vmatprep.subr.bf16.mxu0 %v701
    %1207 = vmatpush1.bf16.msra.mxu0 %v700
    %1208 = vmatprep.subr.bf16.mxu0 %v709
    %1209 = vmatpush1.bf16.msra.mxu0 %v708
    %1210 = vmatprep.subr.bf16.mxu0 %v717
    %1211 = vmatpush1.bf16.msra.mxu0 %v716
    %1212 = vmatprep.subr.bf16.mxu0 %v725
    %1213 = vmatpush1.bf16.msra.mxu0 %v724
    %1214 = vmatprep.subr.bf16.mxu0 %v733
    %1215 = vmatpush1.bf16.msra.mxu0 %v732
    %1216 = vmatprep.subr.bf16.mxu0 %v741
    %1217 = vmatpush1.bf16.msra.mxu0 %v740
    %1218 = vmatprep.subr.bf16.mxu0 %v749
    %1219 = vmatpush1.bf16.msra.mxu0 %v748
    %1220 = vmatprep.subr.bf16.mxu0 %v757
    %1221 = vmatpush1.bf16.msra.mxu0 %v756
    %1222 = vmatprep.subr.bf16.mxu0 %v765
    %1223 = vmatpush1.bf16.msra.mxu0 %v764
    %1224 = vmatprep.subr.bf16.mxu0 %v773
    %1225 = vmatpush1.bf16.msra.mxu0 %v772
    %1226 = vmatprep.subr.bf16.mxu0 %v781
    %1227 = vmatpush1.bf16.msra.mxu0 %v780
    %1228 = vmatprep.subr.bf16.mxu0 %v789
    %1229 = vmatpush1.bf16.msra.mxu0 %v788
    %1230 = vmatprep.subr.bf16.mxu0 %v797
    %1231 = vmatpush1.bf16.msra.mxu0 %v796
    %1232 = vmatprep.subr.bf16.mxu0 %v805
    %1233 = vmatpush1.bf16.msra.mxu0 %v804
    %1234 = vmatprep.subr.bf16.mxu0 %v813
    %1235 = vmatpush1.bf16.msra.mxu0 %v812
    %1236 = vmatprep.mubr.bf16.mxu0 %v429
    %1237 = vmatmul.mubr.bf16.gmra.mrb[0].mxu0 %v428
    %v1238 = vpop.f32.mrb[0].mxu0
    %v1239 = vadd.f32 0.0, %v1238
    %v1240 = vpop.f32.mrb[0].mxu0
    %v1241 = vadd.f32 0.0, %v1240
    %v1242 = vpop.f32.mrb[0].mxu0
    %v1243 = vpop.f32.mrb[0].mxu0
    %1244 = vdwg.mxu0
    %1245 = vmatprep.subr.bf16.mxu0 %v821
    %1246 = vmatpush1.bf16.msra.mxu0 %v820
    %1247 = vmatprep.subr.bf16.mxu0 %v829
    %1248 = vmatpush1.bf16.msra.mxu0 %v828
    %1249 = vmatprep.subr.bf16.mxu0 %v837
    %1250 = vmatpush1.bf16.msra.mxu0 %v836
    %1251 = vmatprep.subr.bf16.mxu0 %v845
    %1252 = vmatpush1.bf16.msra.mxu0 %v844
    %1253 = vmatprep.subr.bf16.mxu0 %v853
    %1254 = vmatpush1.bf16.msra.mxu0 %v852
    %1255 = vmatprep.subr.bf16.mxu0 %v861
    %1256 = vmatpush1.bf16.msra.mxu0 %v860
    %1257 = vmatprep.subr.bf16.mxu0 %v869
    %1258 = vmatpush1.bf16.msra.mxu0 %v868
    %1259 = vmatprep.subr.bf16.mxu0 %v877
    %1260 = vmatpush1.bf16.msra.mxu0 %v876
    %1261 = vmatprep.subr.bf16.mxu0 %v885
    %1262 = vmatpush1.bf16.msra.mxu0 %v884
    %1263 = vmatprep.subr.bf16.mxu0 %v893
    %1264 = vmatpush1.bf16.msra.mxu0 %v892
    %1265 = vmatprep.subr.bf16.mxu0 %v901
    %1266 = vmatpush1.bf16.msra.mxu0 %v900
    %1267 = vmatprep.subr.bf16.mxu0 %v909
    %1268 = vmatpush1.bf16.msra.mxu0 %v908
    %1269 = vmatprep.subr.bf16.mxu0 %v917
    %1270 = vmatpush1.bf16.msra.mxu0 %v916
    %1271 = vmatprep.subr.bf16.mxu0 %v925
    %1272 = vmatpush1.bf16.msra.mxu0 %v924
    %1273 = vmatprep.subr.bf16.mxu0 %v933
    %1274 = vmatpush1.bf16.msra.mxu0 %v932
    %1275 = vmatprep.subr.bf16.mxu0 %v941
    %1276 = vmatpush1.bf16.msra.mxu0 %v940
    %1277 = vmatprep.mubr.bf16.mxu0 %v431
    %1278 = vmatmul.mubr.bf16.gmra.mrb[0].mxu0 %v430
    %v1279 = vpop.f32.mrb[0].mxu0
    %v1280 = vadd.f32 %v1239, %v1279
    %v1281 = vpop.f32.mrb[0].mxu0
    %v1282 = vadd.f32 %v1241, %v1281
    %v1283 = vpop.f32.mrb[0].mxu0
    %v1284 = vpop.f32.mrb[0].mxu0
    %1285 = vdwg.mxu0
    %1286 = vmatprep.subr.bf16.mxu0 %v949
    %1287 = vmatpush1.bf16.msra.mxu0 %v948
    %1288 = vmatprep.subr.bf16.mxu0 %v957
    %1289 = vmatpush1.bf16.msra.mxu0 %v956
    %1290 = vmatprep.subr.bf16.mxu0 %v965
    %1291 = vmatpush1.bf16.msra.mxu0 %v964
    %1292 = vmatprep.subr.bf16.mxu0 %v973
    %1293 = vmatpush1.bf16.msra.mxu0 %v972
    %1294 = vmatprep.subr.bf16.mxu0 %v981
    %1295 = vmatpush1.bf16.msra.mxu0 %v980
    %1296 = vmatprep.subr.bf16.mxu0 %v989
    %1297 = vmatpush1.bf16.msra.mxu0 %v988
    %1298 = vmatprep.subr.bf16.mxu0 %v997
    %1299 = vmatpush1.bf16.msra.mxu0 %v996
    %1300 = vmatprep.subr.bf16.mxu0 %v1005
    %1301 = vmatpush1.bf16.msra.mxu0 %v1004
    %1302 = vmatprep.subr.bf16.mxu0 %v1013
    %1303 = vmatpush1.bf16.msra.mxu0 %v1012
    %1304 = vmatprep.subr.bf16.mxu0 %v1021
    %1305 = vmatpush1.bf16.msra.mxu0 %v1020
    %1306 = vmatprep.subr.bf16.mxu0 %v1029
    %1307 = vmatpush1.bf16.msra.mxu0 %v1028
    %1308 = vmatprep.subr.bf16.mxu0 %v1037
    %1309 = vmatpush1.bf16.msra.mxu0 %v1036
    %1310 = vmatprep.subr.bf16.mxu0 %v1045
    %1311 = vmatpush1.bf16.msra.mxu0 %v1044
    %1312 = vmatprep.subr.bf16.mxu0 %v1053
    %1313 = vmatpush1.bf16.msra.mxu0 %v1052
    %1314 = vmatprep.subr.bf16.mxu0 %v1061
    %1315 = vmatpush1.bf16.msra.mxu0 %v1060
    %1316 = vmatprep.subr.bf16.mxu0 %v1069
    %1317 = vmatpush1.bf16.msra.mxu0 %v1068
    %1318 = vmatprep.mubr.bf16.mxu0 %v433
    %1319 = vmatmul.mubr.bf16.gmra.mrb[0].mxu0 %v432
    %v1320 = vpop.f32.mrb[0].mxu0
    %v1321 = vadd.f32 %v1280, %v1320
    %v1322 = vpop.f32.mrb[0].mxu0
    %v1323 = vadd.f32 %v1282, %v1322
    %v1324 = vpop.f32.mrb[0].mxu0
    %v1325 = vpop.f32.mrb[0].mxu0
    %1326 = vdwg.mxu0
    %1327 = vmatprep.subr.bf16.mxu0 %v1077
    %1328 = vmatpush1.bf16.msra.mxu0 %v1076
    %1329 = vmatprep.subr.bf16.mxu0 %v1085
    %1330 = vmatpush1.bf16.msra.mxu0 %v1084
    %1331 = vmatprep.subr.bf16.mxu0 %v1093
    %1332 = vmatpush1.bf16.msra.mxu0 %v1092
    %1333 = vmatprep.subr.bf16.mxu0 %v1101
    %1334 = vmatpush1.bf16.msra.mxu0 %v1100
    %1335 = vmatprep.subr.bf16.mxu0 %v1109
    %1336 = vmatpush1.bf16.msra.mxu0 %v1108
    %1337 = vmatprep.subr.bf16.mxu0 %v1117
    %1338 = vmatpush1.bf16.msra.mxu0 %v1116
    %1339 = vmatprep.subr.bf16.mxu0 %v1125
    %1340 = vmatpush1.bf16.msra.mxu0 %v1124
    %1341 = vmatprep.subr.bf16.mxu0 %v1133
    %1342 = vmatpush1.bf16.msra.mxu0 %v1132
    %1343 = vmatprep.subr.bf16.mxu0 %v1141
    %1344 = vmatpush1.bf16.msra.mxu0 %v1140
    %1345 = vmatprep.subr.bf16.mxu0 %v1149
    %1346 = vmatpush1.bf16.msra.mxu0 %v1148
    %1347 = vmatprep.subr.bf16.mxu0 %v1157
    %1348 = vmatpush1.bf16.msra.mxu0 %v1156
    %1349 = vmatprep.subr.bf16.mxu0 %v1165
    %1350 = vmatpush1.bf16.msra.mxu0 %v1164
    %1351 = vmatprep.subr.bf16.mxu0 %v1173
    %1352 = vmatpush1.bf16.msra.mxu0 %v1172
    %1353 = vmatprep.subr.bf16.mxu0 %v1181
    %1354 = vmatpush1.bf16.msra.mxu0 %v1180
    %1355 = vmatprep.subr.bf16.mxu0 %v1189
    %1356 = vmatpush1.bf16.msra.mxu0 %v1188
    %1357 = vmatprep.subr.bf16.mxu0 %v1197
    %1358 = vmatpush1.bf16.msra.mxu0 %v1196
    %1359 = vmatprep.mubr.bf16.mxu0 %v435
    %1360 = vmatmul.mubr.bf16.gmra.mrb[0].mxu0 %v434
    %v1361 = vpop.f32.mrb[0].mxu0
    %v1362 = vadd.f32 %v1321, %v1361
    %v1363 = vpop.f32.mrb[0].mxu0
    %v1364 = vadd.f32 %v1323, %v1363
    %v1365 = vpop.f32.mrb[0].mxu0
    %v1366 = vpop.f32.mrb[0].mxu0
    %1367 = vdwg.mxu0
    %1368 = vmatprep.subr.bf16.mxu0 %v695
    %1369 = vmatpush1.bf16.msra.mxu0 %v694
    %1370 = vmatprep.subr.bf16.mxu0 %v703
    %1371 = vmatpush1.bf16.msra.mxu0 %v702
    %1372 = vmatprep.subr.bf16.mxu0 %v711
    %1373 = vmatpush1.bf16.msra.mxu0 %v710
    %1374 = vmatprep.subr.bf16.mxu0 %v719
    %1375 = vmatpush1.bf16.msra.mxu0 %v718
    %1376 = vmatprep.subr.bf16.mxu0 %v727
    %1377 = vmatpush1.bf16.msra.mxu0 %v726
    %1378 = vmatprep.subr.bf16.mxu0 %v735
    %1379 = vmatpush1.bf16.msra.mxu0 %v734
    %1380 = vmatprep.subr.bf16.mxu0 %v743
    %1381 = vmatpush1.bf16.msra.mxu0 %v742
    %1382 = vmatprep.subr.bf16.mxu0 %v751
    %1383 = vmatpush1.bf16.msra.mxu0 %v750
    %1384 = vmatprep.subr.bf16.mxu0 %v759
    %1385 = vmatpush1.bf16.msra.mxu0 %v758
    %1386 = vmatprep.subr.bf16.mxu0 %v767
    %1387 = vmatpush1.bf16.msra.mxu0 %v766
    %1388 = vmatprep.subr.bf16.mxu0 %v775
    %1389 = vmatpush1.bf16.msra.mxu0 %v774
    %1390 = vmatprep.subr.bf16.mxu0 %v783
    %1391 = vmatpush1.bf16.msra.mxu0 %v782
    %1392 = vmatprep.subr.bf16.mxu0 %v791
    %1393 = vmatpush1.bf16.msra.mxu0 %v790
    %1394 = vmatprep.subr.bf16.mxu0 %v799
    %1395 = vmatpush1.bf16.msra.mxu0 %v798
    %1396 = vmatprep.subr.bf16.mxu0 %v807
    %1397 = vmatpush1.bf16.msra.mxu0 %v806
    %1398 = vmatprep.subr.bf16.mxu0 %v815
    %1399 = vmatpush1.bf16.msra.mxu0 %v814
    %1400 = vmatprep.mubr.bf16.mxu0 %v429
    %1401 = vmatmul.mubr.bf16.gmra.mrb[0].mxu0 %v428
    %v1402 = vpop.f32.mrb[0].mxu0
    %v1403 = vadd.f32 0.0, %v1402
    %v1404 = vpop.f32.mrb[0].mxu0
    %v1405 = vadd.f32 0.0, %v1404
    %v1406 = vpop.f32.mrb[0].mxu0
    %v1407 = vpop.f32.mrb[0].mxu0
    %1408 = vdwg.mxu0
    %1409 = vmatprep.subr.bf16.mxu0 %v823
    %1410 = vmatpush1.bf16.msra.mxu0 %v822
    %1411 = vmatprep.subr.bf16.mxu0 %v831
    %1412 = vmatpush1.bf16.msra.mxu0 %v830
    %1413 = vmatprep.subr.bf16.mxu0 %v839
    %1414 = vmatpush1.bf16.msra.mxu0 %v838
    %1415 = vmatprep.subr.bf16.mxu0 %v847
    %1416 = vmatpush1.bf16.msra.mxu0 %v846
    %1417 = vmatprep.subr.bf16.mxu0 %v855
    %1418 = vmatpush1.bf16.msra.mxu0 %v854
    %1419 = vmatprep.subr.bf16.mxu0 %v863
    %1420 = vmatpush1.bf16.msra.mxu0 %v862
    %1421 = vmatprep.subr.bf16.mxu0 %v871
    %1422 = vmatpush1.bf16.msra.mxu0 %v870
    %1423 = vmatprep.subr.bf16.mxu0 %v879
    %1424 = vmatpush1.bf16.msra.mxu0 %v878
    %1425 = vmatprep.subr.bf16.mxu0 %v887
    %1426 = vmatpush1.bf16.msra.mxu0 %v886
    %1427 = vmatprep.subr.bf16.mxu0 %v895
    %1428 = vmatpush1.bf16.msra.mxu0 %v894
    %1429 = vmatprep.subr.bf16.mxu0 %v903
    %1430 = vmatpush1.bf16.msra.mxu0 %v902
    %1431 = vmatprep.subr.bf16.mxu0 %v911
    %1432 = vmatpush1.bf16.msra.mxu0 %v910
    %1433 = vmatprep.subr.bf16.mxu0 %v919
    %1434 = vmatpush1.bf16.msra.mxu0 %v918
    %1435 = vmatprep.subr.bf16.mxu0 %v927
    %1436 = vmatpush1.bf16.msra.mxu0 %v926
    %1437 = vmatprep.subr.bf16.mxu0 %v935
    %1438 = vmatpush1.bf16.msra.mxu0 %v934
    %1439 = vmatprep.subr.bf16.mxu0 %v943
    %1440 = vmatpush1.bf16.msra.mxu0 %v942
    %1441 = vmatprep.mubr.bf16.mxu0 %v431
    %1442 = vmatmul.mubr.bf16.gmra.mrb[0].mxu0 %v430
    %v1443 = vpop.f32.mrb[0].mxu0
    %v1444 = vadd.f32 %v1403, %v1443
    %v1445 = vpop.f32.mrb[0].mxu0
    %v1446 = vadd.f32 %v1405, %v1445
    %v1447 = vpop.f32.mrb[0].mxu0
    %v1448 = vpop.f32.mrb[0].mxu0
    %1449 = vdwg.mxu0
    %1450 = vmatprep.subr.bf16.mxu0 %v951
    %1451 = vmatpush1.bf16.msra.mxu0 %v950
    %1452 = vmatprep.subr.bf16.mxu0 %v959
    %1453 = vmatpush1.bf16.msra.mxu0 %v958
    %1454 = vmatprep.subr.bf16.mxu0 %v967
    %1455 = vmatpush1.bf16.msra.mxu0 %v966
    %1456 = vmatprep.subr.bf16.mxu0 %v975
    %1457 = vmatpush1.bf16.msra.mxu0 %v974
    %1458 = vmatprep.subr.bf16.mxu0 %v983
    %1459 = vmatpush1.bf16.msra.mxu0 %v982
    %1460 = vmatprep.subr.bf16.mxu0 %v991
    %1461 = vmatpush1.bf16.msra.mxu0 %v990
    %1462 = vmatprep.subr.bf16.mxu0 %v999
    %1463 = vmatpush1.bf16.msra.mxu0 %v998
    %1464 = vmatprep.subr.bf16.mxu0 %v1007
    %1465 = vmatpush1.bf16.msra.mxu0 %v1006
    %1466 = vmatprep.subr.bf16.mxu0 %v1015
    %1467 = vmatpush1.bf16.msra.mxu0 %v1014
    %1468 = vmatprep.subr.bf16.mxu0 %v1023
    %1469 = vmatpush1.bf16.msra.mxu0 %v1022
    %1470 = vmatprep.subr.bf16.mxu0 %v1031
    %1471 = vmatpush1.bf16.msra.mxu0 %v1030
    %1472 = vmatprep.subr.bf16.mxu0 %v1039
    %1473 = vmatpush1.bf16.msra.mxu0 %v1038
    %1474 = vmatprep.subr.bf16.mxu0 %v1047
    %1475 = vmatpush1.bf16.msra.mxu0 %v1046
    %1476 = vmatprep.subr.bf16.mxu0 %v1055
    %1477 = vmatpush1.bf16.msra.mxu0 %v1054
    %1478 = vmatprep.subr.bf16.mxu0 %v1063
    %1479 = vmatpush1.bf16.msra.mxu0 %v1062
    %1480 = vmatprep.subr.bf16.mxu0 %v1071
    %1481 = vmatpush1.bf16.msra.mxu0 %v1070
    %1482 = vmatprep.mubr.bf16.mxu0 %v433
    %1483 = vmatmul.mubr.bf16.gmra.mrb[0].mxu0 %v432
    %v1484 = vpop.f32.mrb[0].mxu0
    %v1485 = vadd.f32 %v1444, %v1484
    %v1486 = vpop.f32.mrb[0].mxu0
    %v1487 = vadd.f32 %v1446, %v1486
    %v1488 = vpop.f32.mrb[0].mxu0
    %v1489 = vpop.f32.mrb[0].mxu0
    %1490 = vdwg.mxu0
    %1491 = vmatprep.subr.bf16.mxu0 %v1079
    %1492 = vmatpush1.bf16.msra.mxu0 %v1078
    %1493 = vmatprep.subr.bf16.mxu0 %v1087
    %1494 = vmatpush1.bf16.msra.mxu0 %v1086
    %1495 = vmatprep.subr.bf16.mxu0 %v1095
    %1496 = vmatpush1.bf16.msra.mxu0 %v1094
    %1497 = vmatprep.subr.bf16.mxu0 %v1103
    %1498 = vmatpush1.bf16.msra.mxu0 %v1102
    %1499 = vmatprep.subr.bf16.mxu0 %v1111
    %1500 = vmatpush1.bf16.msra.mxu0 %v1110
    %1501 = vmatprep.subr.bf16.mxu0 %v1119
    %1502 = vmatpush1.bf16.msra.mxu0 %v1118
    %1503 = vmatprep.subr.bf16.mxu0 %v1127
    %1504 = vmatpush1.bf16.msra.mxu0 %v1126
    %1505 = vmatprep.subr.bf16.mxu0 %v1135
    %1506 = vmatpush1.bf16.msra.mxu0 %v1134
    %1507 = vmatprep.subr.bf16.mxu0 %v1143
    %1508 = vmatpush1.bf16.msra.mxu0 %v1142
    %1509 = vmatprep.subr.bf16.mxu0 %v1151
    %1510 = vmatpush1.bf16.msra.mxu0 %v1150
    %1511 = vmatprep.subr.bf16.mxu0 %v1159
    %1512 = vmatpush1.bf16.msra.mxu0 %v1158
    %1513 = vmatprep.subr.bf16.mxu0 %v1167
    %1514 = vmatpush1.bf16.msra.mxu0 %v1166
    %1515 = vmatprep.subr.bf16.mxu0 %v1175
    %1516 = vmatpush1.bf16.msra.mxu0 %v1174
    %1517 = vmatprep.subr.bf16.mxu0 %v1183
    %1518 = vmatpush1.bf16.msra.mxu0 %v1182
    %1519 = vmatprep.subr.bf16.mxu0 %v1191
    %1520 = vmatpush1.bf16.msra.mxu0 %v1190
    %1521 = vmatprep.subr.bf16.mxu0 %v1199
    %1522 = vmatpush1.bf16.msra.mxu0 %v1198
    %1523 = vmatprep.mubr.bf16.mxu0 %v435
    %1524 = vmatmul.mubr.bf16.gmra.mrb[0].mxu0 %v434
    %v1525 = vpop.f32.mrb[0].mxu0
    %v1526 = vadd.f32 %v1485, %v1525
    %v1527 = vpop.f32.mrb[0].mxu0
    %v1528 = vadd.f32 %v1487, %v1527
    %v1529 = vpop.f32.mrb[0].mxu0
    %v1530 = vpop.f32.mrb[0].mxu0
    %1531 = vdwg.mxu0
    %1532 = vmatprep.subr.bf16.mxu0 %v697
    %1533 = vmatpush1.bf16.msra.mxu0 %v696
    %1534 = vmatprep.subr.bf16.mxu0 %v705
    %1535 = vmatpush1.bf16.msra.mxu0 %v704
    %1536 = vmatprep.subr.bf16.mxu0 %v713
    %1537 = vmatpush1.bf16.msra.mxu0 %v712
    %1538 = vmatprep.subr.bf16.mxu0 %v721
    %1539 = vmatpush1.bf16.msra.mxu0 %v720
    %1540 = vmatprep.subr.bf16.mxu0 %v729
    %1541 = vmatpush1.bf16.msra.mxu0 %v728
    %1542 = vmatprep.subr.bf16.mxu0 %v737
    %1543 = vmatpush1.bf16.msra.mxu0 %v736
    %1544 = vmatprep.subr.bf16.mxu0 %v745
    %1545 = vmatpush1.bf16.msra.mxu0 %v744
    %1546 = vmatprep.subr.bf16.mxu0 %v753
    %1547 = vmatpush1.bf16.msra.mxu0 %v752
    %1548 = vmatprep.subr.bf16.mxu0 %v761
    %1549 = vmatpush1.bf16.msra.mxu0 %v760
    %1550 = vmatprep.subr.bf16.mxu0 %v769
    %1551 = vmatpush1.bf16.msra.mxu0 %v768
    %1552 = vmatprep.subr.bf16.mxu0 %v777
    %1553 = vmatpush1.bf16.msra.mxu0 %v776
    %1554 = vmatprep.subr.bf16.mxu0 %v785
    %1555 = vmatpush1.bf16.msra.mxu0 %v784
    %1556 = vmatprep.subr.bf16.mxu0 %v793
    %1557 = vmatpush1.bf16.msra.mxu0 %v792
    %1558 = vmatprep.subr.bf16.mxu0 %v801
    %1559 = vmatpush1.bf16.msra.mxu0 %v800
    %1560 = vmatprep.subr.bf16.mxu0 %v809
    %1561 = vmatpush1.bf16.msra.mxu0 %v808
    %1562 = vmatprep.subr.bf16.mxu0 %v817
    %1563 = vmatpush1.bf16.msra.mxu0 %v816
    %1564 = vmatprep.mubr.bf16.mxu0 %v429
    %1565 = vmatmul.mubr.bf16.gmra.mrb[0].mxu0 %v428
    %v1566 = vpop.f32.mrb[0].mxu0
    %v1567 = vadd.f32 0.0, %v1566
    %v1568 = vpop.f32.mrb[0].mxu0
    %v1569 = vadd.f32 0.0, %v1568
    %v1570 = vpop.f32.mrb[0].mxu0
    %v1571 = vpop.f32.mrb[0].mxu0
    %1572 = vdwg.mxu0
    %1573 = vmatprep.subr.bf16.mxu0 %v825
    %1574 = vmatpush1.bf16.msra.mxu0 %v824
    %1575 = vmatprep.subr.bf16.mxu0 %v833
    %1576 = vmatpush1.bf16.msra.mxu0 %v832
    %1577 = vmatprep.subr.bf16.mxu0 %v841
    %1578 = vmatpush1.bf16.msra.mxu0 %v840
    %1579 = vmatprep.subr.bf16.mxu0 %v849
    %1580 = vmatpush1.bf16.msra.mxu0 %v848
    %1581 = vmatprep.subr.bf16.mxu0 %v857
    %1582 = vmatpush1.bf16.msra.mxu0 %v856
    %1583 = vmatprep.subr.bf16.mxu0 %v865
    %1584 = vmatpush1.bf16.msra.mxu0 %v864
    %1585 = vmatprep.subr.bf16.mxu0 %v873
    %1586 = vmatpush1.bf16.msra.mxu0 %v872
    %1587 = vmatprep.subr.bf16.mxu0 %v881
    %1588 = vmatpush1.bf16.msra.mxu0 %v880
    %1589 = vmatprep.subr.bf16.mxu0 %v889
    %1590 = vmatpush1.bf16.msra.mxu0 %v888
    %1591 = vmatprep.subr.bf16.mxu0 %v897
    %1592 = vmatpush1.bf16.msra.mxu0 %v896
    %1593 = vmatprep.subr.bf16.mxu0 %v905
    %1594 = vmatpush1.bf16.msra.mxu0 %v904
    %1595 = vmatprep.subr.bf16.mxu0 %v913
    %1596 = vmatpush1.bf16.msra.mxu0 %v912
    %1597 = vmatprep.subr.bf16.mxu0 %v921
    %1598 = vmatpush1.bf16.msra.mxu0 %v920
    %1599 = vmatprep.subr.bf16.mxu0 %v929
    %1600 = vmatpush1.bf16.msra.mxu0 %v928
    %1601 = vmatprep.subr.bf16.mxu0 %v937
    %1602 = vmatpush1.bf16.msra.mxu0 %v936
    %1603 = vmatprep.subr.bf16.mxu0 %v945
    %1604 = vmatpush1.bf16.msra.mxu0 %v944
    %1605 = vmatprep.mubr.bf16.mxu0 %v431
    %1606 = vmatmul.mubr.bf16.gmra.mrb[0].mxu0 %v430
    %v1607 = vpop.f32.mrb[0].mxu0
    %v1608 = vadd.f32 %v1567, %v1607
    %v1609 = vpop.f32.mrb[0].mxu0
    %v1610 = vadd.f32 %v1569, %v1609
    %v1611 = vpop.f32.mrb[0].mxu0
    %v1612 = vpop.f32.mrb[0].mxu0
    %1613 = vdwg.mxu0
    %1614 = vmatprep.subr.bf16.mxu0 %v953
    %1615 = vmatpush1.bf16.msra.mxu0 %v952
    %1616 = vmatprep.subr.bf16.mxu0 %v961
    %1617 = vmatpush1.bf16.msra.mxu0 %v960
    %1618 = vmatprep.subr.bf16.mxu0 %v969
    %1619 = vmatpush1.bf16.msra.mxu0 %v968
    %1620 = vmatprep.subr.bf16.mxu0 %v977
    %1621 = vmatpush1.bf16.msra.mxu0 %v976
    %1622 = vmatprep.subr.bf16.mxu0 %v985
    %1623 = vmatpush1.bf16.msra.mxu0 %v984
    %1624 = vmatprep.subr.bf16.mxu0 %v993
    %1625 = vmatpush1.bf16.msra.mxu0 %v992
    %1626 = vmatprep.subr.bf16.mxu0 %v1001
    %1627 = vmatpush1.bf16.msra.mxu0 %v1000
    %1628 = vmatprep.subr.bf16.mxu0 %v1009
    %1629 = vmatpush1.bf16.msra.mxu0 %v1008
    %1630 = vmatprep.subr.bf16.mxu0 %v1017
    %1631 = vmatpush1.bf16.msra.mxu0 %v1016
    %1632 = vmatprep.subr.bf16.mxu0 %v1025
    %1633 = vmatpush1.bf16.msra.mxu0 %v1024
    %1634 = vmatprep.subr.bf16.mxu0 %v1033
    %1635 = vmatpush1.bf16.msra.mxu0 %v1032
    %1636 = vmatprep.subr.bf16.mxu0 %v1041
    %1637 = vmatpush1.bf16.msra.mxu0 %v1040
    %1638 = vmatprep.subr.bf16.mxu0 %v1049
    %1639 = vmatpush1.bf16.msra.mxu0 %v1048
    %1640 = vmatprep.subr.bf16.mxu0 %v1057
    %1641 = vmatpush1.bf16.msra.mxu0 %v1056
    %1642 = vmatprep.subr.bf16.mxu0 %v1065
    %1643 = vmatpush1.bf16.msra.mxu0 %v1064
    %1644 = vmatprep.subr.bf16.mxu0 %v1073
    %1645 = vmatpush1.bf16.msra.mxu0 %v1072
    %1646 = vmatprep.mubr.bf16.mxu0 %v433
    %1647 = vmatmul.mubr.bf16.gmra.mrb[0].mxu0 %v432
    %v1648 = vpop.f32.mrb[0].mxu0
    %v1649 = vadd.f32 %v1608, %v1648
    %v1650 = vpop.f32.mrb[0].mxu0
    %v1651 = vadd.f32 %v1610, %v1650
    %v1652 = vpop.f32.mrb[0].mxu0
    %v1653 = vpop.f32.mrb[0].mxu0
    %1654 = vdwg.mxu0
    %1655 = vmatprep.subr.bf16.mxu0 %v1081
    %1656 = vmatpush1.bf16.msra.mxu0 %v1080
    %1657 = vmatprep.subr.bf16.mxu0 %v1089
    %1658 = vmatpush1.bf16.msra.mxu0 %v1088
    %1659 = vmatprep.subr.bf16.mxu0 %v1097
    %1660 = vmatpush1.bf16.msra.mxu0 %v1096
    %1661 = vmatprep.subr.bf16.mxu0 %v1105
    %1662 = vmatpush1.bf16.msra.mxu0 %v1104
    %1663 = vmatprep.subr.bf16.mxu0 %v1113
    %1664 = vmatpush1.bf16.msra.mxu0 %v1112
    %1665 = vmatprep.subr.bf16.mxu0 %v1121
    %1666 = vmatpush1.bf16.msra.mxu0 %v1120
    %1667 = vmatprep.subr.bf16.mxu0 %v1129
    %1668 = vmatpush1.bf16.msra.mxu0 %v1128
    %1669 = vmatprep.subr.bf16.mxu0 %v1137
    %1670 = vmatpush1.bf16.msra.mxu0 %v1136
    %1671 = vmatprep.subr.bf16.mxu0 %v1145
    %1672 = vmatpush1.bf16.msra.mxu0 %v1144
    %1673 = vmatprep.subr.bf16.mxu0 %v1153
    %1674 = vmatpush1.bf16.msra.mxu0 %v1152
    %1675 = vmatprep.subr.bf16.mxu0 %v1161
    %1676 = vmatpush1.bf16.msra.mxu0 %v1160
    %1677 = vmatprep.subr.bf16.mxu0 %v1169
    %1678 = vmatpush1.bf16.msra.mxu0 %v1168
    %1679 = vmatprep.subr.bf16.mxu0 %v1177
    %1680 = vmatpush1.bf16.msra.mxu0 %v1176
    %1681 = vmatprep.subr.bf16.mxu0 %v1185
    %1682 = vmatpush1.bf16.msra.mxu0 %v1184
    %1683 = vmatprep.subr.bf16.mxu0 %v1193
    %1684 = vmatpush1.bf16.msra.mxu0 %v1192
    %1685 = vmatprep.subr.bf16.mxu0 %v1201
    %1686 = vmatpush1.bf16.msra.mxu0 %v1200
    %1687 = vmatprep.mubr.bf16.mxu0 %v435
    %1688 = vmatmul.mubr.bf16.gmra.mrb[0].mxu0 %v434
    %v1689 = vpop.f32.mrb[0].mxu0
    %v1690 = vadd.f32 %v1649, %v1689
    %v1691 = vpop.f32.mrb[0].mxu0
    %v1692 = vadd.f32 %v1651, %v1691
    %v1693 = vpop.f32.mrb[0].mxu0
    %v1694 = vpop.f32.mrb[0].mxu0
    %1695 = vdwg.mxu0
    %1696 = vmatprep.subr.bf16.mxu0 %v699
    %1697 = vmatpush1.bf16.msra.mxu0 %v698
    %1698 = vmatprep.subr.bf16.mxu0 %v707
    %1699 = vmatpush1.bf16.msra.mxu0 %v706
    %1700 = vmatprep.subr.bf16.mxu0 %v715
    %1701 = vmatpush1.bf16.msra.mxu0 %v714
    %1702 = vmatprep.subr.bf16.mxu0 %v723
    %1703 = vmatpush1.bf16.msra.mxu0 %v722
    %1704 = vmatprep.subr.bf16.mxu0 %v731
    %1705 = vmatpush1.bf16.msra.mxu0 %v730
    %1706 = vmatprep.subr.bf16.mxu0 %v739
    %1707 = vmatpush1.bf16.msra.mxu0 %v738
    %1708 = vmatprep.subr.bf16.mxu0 %v747
    %1709 = vmatpush1.bf16.msra.mxu0 %v746
    %1710 = vmatprep.subr.bf16.mxu0 %v755
    %1711 = vmatpush1.bf16.msra.mxu0 %v754
    %1712 = vmatprep.subr.bf16.mxu0 %v763
    %1713 = vmatpush1.bf16.msra.mxu0 %v762
    %1714 = vmatprep.subr.bf16.mxu0 %v771
    %1715 = vmatpush1.bf16.msra.mxu0 %v770
    %1716 = vmatprep.subr.bf16.mxu0 %v779
    %1717 = vmatpush1.bf16.msra.mxu0 %v778
    %1718 = vmatprep.subr.bf16.mxu0 %v787
    %1719 = vmatpush1.bf16.msra.mxu0 %v786
    %1720 = vmatprep.subr.bf16.mxu0 %v795
    %1721 = vmatpush1.bf16.msra.mxu0 %v794
    %1722 = vmatprep.subr.bf16.mxu0 %v803
    %1723 = vmatpush1.bf16.msra.mxu0 %v802
    %1724 = vmatprep.subr.bf16.mxu0 %v811
    %1725 = vmatpush1.bf16.msra.mxu0 %v810
    %1726 = vmatprep.subr.bf16.mxu0 %v819
    %1727 = vmatpush1.bf16.msra.mxu0 %v818
    %1728 = vmatprep.mubr.bf16.mxu0 %v429
    %1729 = vmatmul.mubr.bf16.gmra.mrb[0].mxu0 %v428
    %v1730 = vpop.f32.mrb[0].mxu0
    %v1731 = vadd.f32 0.0, %v1730
    %v1732 = vpop.f32.mrb[0].mxu0
    %v1733 = vadd.f32 0.0, %v1732
    %v1734 = vpop.f32.mrb[0].mxu0
    %v1735 = vpop.f32.mrb[0].mxu0
    %1736 = vdwg.mxu0
    %1737 = vmatprep.subr.bf16.mxu0 %v827
    %1738 = vmatpush1.bf16.msra.mxu0 %v826
    %1739 = vmatprep.subr.bf16.mxu0 %v835
    %1740 = vmatpush1.bf16.msra.mxu0 %v834
    %1741 = vmatprep.subr.bf16.mxu0 %v843
    %1742 = vmatpush1.bf16.msra.mxu0 %v842
    %1743 = vmatprep.subr.bf16.mxu0 %v851
    %1744 = vmatpush1.bf16.msra.mxu0 %v850
    %1745 = vmatprep.subr.bf16.mxu0 %v859
    %1746 = vmatpush1.bf16.msra.mxu0 %v858
    %1747 = vmatprep.subr.bf16.mxu0 %v867
    %1748 = vmatpush1.bf16.msra.mxu0 %v866
    %1749 = vmatprep.subr.bf16.mxu0 %v875
    %1750 = vmatpush1.bf16.msra.mxu0 %v874
    %1751 = vmatprep.subr.bf16.mxu0 %v883
    %1752 = vmatpush1.bf16.msra.mxu0 %v882
    %1753 = vmatprep.subr.bf16.mxu0 %v891
    %1754 = vmatpush1.bf16.msra.mxu0 %v890
    %1755 = vmatprep.subr.bf16.mxu0 %v899
    %1756 = vmatpush1.bf16.msra.mxu0 %v898
    %1757 = vmatprep.subr.bf16.mxu0 %v907
    %1758 = vmatpush1.bf16.msra.mxu0 %v906
    %1759 = vmatprep.subr.bf16.mxu0 %v915
    %1760 = vmatpush1.bf16.msra.mxu0 %v914
    %1761 = vmatprep.subr.bf16.mxu0 %v923
    %1762 = vmatpush1.bf16.msra.mxu0 %v922
    %1763 = vmatprep.subr.bf16.mxu0 %v931
    %1764 = vmatpush1.bf16.msra.mxu0 %v930
    %1765 = vmatprep.subr.bf16.mxu0 %v939
    %1766 = vmatpush1.bf16.msra.mxu0 %v938
    %1767 = vmatprep.subr.bf16.mxu0 %v947
    %1768 = vmatpush1.bf16.msra.mxu0 %v946
    %1769 = vmatprep.mubr.bf16.mxu0 %v431
    %1770 = vmatmul.mubr.bf16.gmra.mrb[0].mxu0 %v430
    %v1771 = vpop.f32.mrb[0].mxu0
    %v1772 = vadd.f32 %v1731, %v1771
    %v1773 = vpop.f32.mrb[0].mxu0
    %v1774 = vadd.f32 %v1733, %v1773
    %v1775 = vpop.f32.mrb[0].mxu0
    %v1776 = vpop.f32.mrb[0].mxu0
    %1777 = vdwg.mxu0
    %1778 = vmatprep.subr.bf16.mxu0 %v955
    %1779 = vmatpush1.bf16.msra.mxu0 %v954
    %1780 = vmatprep.subr.bf16.mxu0 %v963
    %1781 = vmatpush1.bf16.msra.mxu0 %v962
    %1782 = vmatprep.subr.bf16.mxu0 %v971
    %1783 = vmatpush1.bf16.msra.mxu0 %v970
    %1784 = vmatprep.subr.bf16.mxu0 %v979
    %1785 = vmatpush1.bf16.msra.mxu0 %v978
    %1786 = vmatprep.subr.bf16.mxu0 %v987
    %1787 = vmatpush1.bf16.msra.mxu0 %v986
    %1788 = vmatprep.subr.bf16.mxu0 %v995
    %1789 = vmatpush1.bf16.msra.mxu0 %v994
    %1790 = vmatprep.subr.bf16.mxu0 %v1003
    %1791 = vmatpush1.bf16.msra.mxu0 %v1002
    %1792 = vmatprep.subr.bf16.mxu0 %v1011
    %1793 = vmatpush1.bf16.msra.mxu0 %v1010
    %1794 = vmatprep.subr.bf16.mxu0 %v1019
    %1795 = vmatpush1.bf16.msra.mxu0 %v1018
    %1796 = vmatprep.subr.bf16.mxu0 %v1027
    %1797 = vmatpush1.bf16.msra.mxu0 %v1026
    %1798 = vmatprep.subr.bf16.mxu0 %v1035
    %1799 = vmatpush1.bf16.msra.mxu0 %v1034
    %1800 = vmatprep.subr.bf16.mxu0 %v1043
    %1801 = vmatpush1.bf16.msra.mxu0 %v1042
    %1802 = vmatprep.subr.bf16.mxu0 %v1051
    %1803 = vmatpush1.bf16.msra.mxu0 %v1050
    %1804 = vmatprep.subr.bf16.mxu0 %v1059
    %1805 = vmatpush1.bf16.msra.mxu0 %v1058
    %1806 = vmatprep.subr.bf16.mxu0 %v1067
    %1807 = vmatpush1.bf16.msra.mxu0 %v1066
    %1808 = vmatprep.subr.bf16.mxu0 %v1075
    %1809 = vmatpush1.bf16.msra.mxu0 %v1074
    %1810 = vmatprep.mubr.bf16.mxu0 %v433
    %1811 = vmatmul.mubr.bf16.gmra.mrb[0].mxu0 %v432
    %v1812 = vpop.f32.mrb[0].mxu0
    %v1813 = vadd.f32 %v1772, %v1812
    %v1814 = vpop.f32.mrb[0].mxu0
    %v1815 = vadd.f32 %v1774, %v1814
    %v1816 = vpop.f32.mrb[0].mxu0
    %v1817 = vpop.f32.mrb[0].mxu0
    %1818 = vdwg.mxu0
    %1819 = vmatprep.subr.bf16.mxu0 %v1083
    %1820 = vmatpush1.bf16.msra.mxu0 %v1082
    %1821 = vmatprep.subr.bf16.mxu0 %v1091
    %1822 = vmatpush1.bf16.msra.mxu0 %v1090
    %1823 = vmatprep.subr.bf16.mxu0 %v1099
    %1824 = vmatpush1.bf16.msra.mxu0 %v1098
    %1825 = vmatprep.subr.bf16.mxu0 %v1107
    %1826 = vmatpush1.bf16.msra.mxu0 %v1106
    %1827 = vmatprep.subr.bf16.mxu0 %v1115
    %1828 = vmatpush1.bf16.msra.mxu0 %v1114
    %1829 = vmatprep.subr.bf16.mxu0 %v1123
    %1830 = vmatpush1.bf16.msra.mxu0 %v1122
    %1831 = vmatprep.subr.bf16.mxu0 %v1131
    %1832 = vmatpush1.bf16.msra.mxu0 %v1130
    %1833 = vmatprep.subr.bf16.mxu0 %v1139
    %1834 = vmatpush1.bf16.msra.mxu0 %v1138
    %1835 = vmatprep.subr.bf16.mxu0 %v1147
    %1836 = vmatpush1.bf16.msra.mxu0 %v1146
    %1837 = vmatprep.subr.bf16.mxu0 %v1155
    %1838 = vmatpush1.bf16.msra.mxu0 %v1154
    %1839 = vmatprep.subr.bf16.mxu0 %v1163
    %1840 = vmatpush1.bf16.msra.mxu0 %v1162
    %1841 = vmatprep.subr.bf16.mxu0 %v1171
    %1842 = vmatpush1.bf16.msra.mxu0 %v1170
    %1843 = vmatprep.subr.bf16.mxu0 %v1179
    %1844 = vmatpush1.bf16.msra.mxu0 %v1178
    %1845 = vmatprep.subr.bf16.mxu0 %v1187
    %1846 = vmatpush1.bf16.msra.mxu0 %v1186
    %1847 = vmatprep.subr.bf16.mxu0 %v1195
    %1848 = vmatpush1.bf16.msra.mxu0 %v1194
    %1849 = vmatprep.subr.bf16.mxu0 %v1203
    %1850 = vmatpush1.bf16.msra.mxu0 %v1202
    %1851 = vmatprep.mubr.bf16.mxu0 %v435
    %1852 = vmatmul.mubr.bf16.gmra.mrb[0].mxu0 %v434
    %v1853 = vpop.f32.mrb[0].mxu0
    %v1854 = vadd.f32 %v1813, %v1853
    %v1855 = vpop.f32.mrb[0].mxu0
    %v1856 = vadd.f32 %v1815, %v1855
    %v1857 = vpop.f32.mrb[0].mxu0
    %v1858 = vpop.f32.mrb[0].mxu0
    %1859 = vdwg.mxu0
    %v1860 = vld [vmem:[%s5] sm:$0xff]
    %v1862 = vlaneseq
    %v1863 = vshrl.u32 %v1862, 7
    %v1864 = vsub.s32 0, %v1863
    %v1865 = vrot.slane %v1860, %v1864
    %v1866 = vlaneseq
    %v1867 = vshrl.u32 %v1866, 7
    %v1868 = vsub.s32 1, %v1867
    %v1869 = vrot.slane %v1860, %v1868
    %v1870 = vlaneseq
    %v1871 = vshrl.u32 %v1870, 7
    %v1872 = vsub.s32 2, %v1871
    %v1873 = vrot.slane %v1860, %v1872
    %v1874 = vlaneseq
    %v1875 = vshrl.u32 %v1874, 7
    %v1876 = vsub.s32 3, %v1875
    %v1877 = vrot.slane %v1860, %v1876
    %v1878 = vlaneseq
    %v1879 = vshrl.u32 %v1878, 7
    %v1880 = vsub.s32 4, %v1879
    %v1881 = vrot.slane %v1860, %v1880
    %v1882 = vlaneseq
    %v1883 = vshrl.u32 %v1882, 7
    %v1884 = vsub.s32 5, %v1883
    %v1885 = vrot.slane %v1860, %v1884
    %v1886 = vlaneseq
    %v1887 = vshrl.u32 %v1886, 7
    %v1888 = vsub.s32 6, %v1887
    %v1889 = vrot.slane %v1860, %v1888
    %v1890 = vlaneseq
    %v1891 = vshrl.u32 %v1890, 7
    %v1892 = vsub.s32 7, %v1891
    %v1893 = vrot.slane %v1860, %v1892
    %v1902 = vmul.f32 %v1362, %v1865
    %v1903 = vmul.f32 %v1364, %v1869
    %v1904 = vmul.f32 %v1526, %v1873
    %v1905 = vmul.f32 %v1528, %v1877
    %v1906 = vmul.f32 %v1690, %v1881
    %v1907 = vmul.f32 %v1692, %v1885
    %v1908 = vmul.f32 %v1854, %v1889
    %v1909 = vmul.f32 %v1856, %v1893
    %v1910 = vld [vmem:[#allocation9] sm:$0xff]
    %v1912 = vlaneseq
    %v1913 = vshrl.u32 %v1912, 7
    %v1914 = vsub.s32 0, %v1913
    %v1915 = vrot.slane %v1910, %v1914
    %v1916 = vlaneseq
    %v1917 = vshrl.u32 %v1916, 7
    %v1918 = vsub.s32 1, %v1917
    %v1919 = vrot.slane %v1910, %v1918
    %v1920 = vlaneseq
    %v1921 = vshrl.u32 %v1920, 7
    %v1922 = vsub.s32 2, %v1921
    %v1923 = vrot.slane %v1910, %v1922
    %v1924 = vlaneseq
    %v1925 = vshrl.u32 %v1924, 7
    %v1926 = vsub.s32 3, %v1925
    %v1927 = vrot.slane %v1910, %v1926
    %v1928 = vlaneseq
    %v1929 = vshrl.u32 %v1928, 7
    %v1930 = vsub.s32 4, %v1929
    %v1931 = vrot.slane %v1910, %v1930
    %v1932 = vlaneseq
    %v1933 = vshrl.u32 %v1932, 7
    %v1934 = vsub.s32 5, %v1933
    %v1935 = vrot.slane %v1910, %v1934
    %v1936 = vlaneseq
    %v1937 = vshrl.u32 %v1936, 7
    %v1938 = vsub.s32 6, %v1937
    %v1939 = vrot.slane %v1910, %v1938
    %v1940 = vlaneseq
    %v1941 = vshrl.u32 %v1940, 7
    %v1942 = vsub.s32 7, %v1941
    %v1943 = vrot.slane %v1910, %v1942
    %v1952 = vadd.f32 %v1902, %v1915
    %v1953 = vadd.f32 %v1903, %v1919
    %v1954 = vadd.f32 %v1904, %v1923
    %v1955 = vadd.f32 %v1905, %v1927
    %v1956 = vadd.f32 %v1906, %v1931
    %v1957 = vadd.f32 %v1907, %v1935
    %v1958 = vadd.f32 %v1908, %v1939
    %v1959 = vadd.f32 %v1909, %v1943
    %vm1960 = vcmp.gt.f32.partialorder %v1952, 0.0
    %vm1961 = vcmp.gt.f32.partialorder %v1953, 0.0
    %vm1962 = vcmp.gt.f32.partialorder %v1954, 0.0
    %vm1963 = vcmp.gt.f32.partialorder %v1955, 0.0
    %vm1964 = vcmp.gt.f32.partialorder %v1956, 0.0
    %vm1965 = vcmp.gt.f32.partialorder %v1957, 0.0
    %vm1966 = vcmp.gt.f32.partialorder %v1958, 0.0
    %vm1967 = vcmp.gt.f32.partialorder %v1959, 0.0
    %v1968 = vmul.f32 %v1952, 0.01
    %v1969 = vmul.f32 %v1953, 0.01
    %v1970 = vmul.f32 %v1954, 0.01
    %v1971 = vmul.f32 %v1955, 0.01
    %v1972 = vmul.f32 %v1956, 0.01
    %v1973 = vmul.f32 %v1957, 0.01
    %v1974 = vmul.f32 %v1958, 0.01
    %v1975 = vmul.f32 %v1959, 0.01
    %v1976 = vsel %vm1960, %v1952, %v1968
    %v1977 = vsel %vm1961, %v1953, %v1969
    %v1978 = vsel %vm1962, %v1954, %v1970
    %v1979 = vsel %vm1963, %v1955, %v1971
    %v1980 = vsel %vm1964, %v1956, %v1972
    %v1981 = vsel %vm1965, %v1957, %v1973
    %v1982 = vsel %vm1966, %v1958, %v1974
    %v1983 = vsel %vm1967, %v1959, %v1975
    %v1984 = vpack.c.bf16 %v1976, %v1976
    %v1985 = vpack.c.bf16 %v1977, %v1977
    %v1986 = vpack.c.bf16 %v1978, %v1978
    %v1987 = vpack.c.bf16 %v1979, %v1979
    %v1988 = vpack.c.bf16 %v1980, %v1980
    %v1989 = vpack.c.bf16 %v1981, %v1981
    %v1990 = vpack.c.bf16 %v1982, %v1982
    %v1991 = vpack.c.bf16 %v1983, %v1983
    %v1992 = vld [vmem:[#allocation10] sm:$0xff]
    %v1993 = vld [vmem:[#allocation10 + $0x8] sm:$0xff]
    %v1994 = vld [vmem:[#allocation10 + $0x10] sm:$0xff]
    %v1995 = vld [vmem:[#allocation10 + $0x18] sm:$0xff]
    %v1996 = vld [vmem:[#allocation10 + $0x20] sm:$0xff]
    %v1997 = vld [vmem:[#allocation10 + $0x28] sm:$0xff]
    %v1998 = vld [vmem:[#allocation10 + $0x30] sm:$0xff]
    %v1999 = vld [vmem:[#allocation10 + $0x38] sm:$0xff]
    %v2000 = vld [vmem:[#allocation10 + $0x40] sm:$0xff]
    %v2001 = vld [vmem:[#allocation10 + $0x48] sm:$0xff]
    %v2002 = vld [vmem:[#allocation10 + $0x50] sm:$0xff]
    %v2003 = vld [vmem:[#allocation10 + $0x58] sm:$0xff]
    %v2004 = vld [vmem:[#allocation10 + $0x60] sm:$0xff]
    %v2005 = vld [vmem:[#allocation10 + $0x68] sm:$0xff]
    %v2006 = vld [vmem:[#allocation10 + $0x70] sm:$0xff]
    %v2007 = vld [vmem:[#allocation10 + $0x78] sm:$0xff]
    %v2008 = vld [vmem:[#allocation10 + $0x80] sm:$0xff]
    %v2009 = vld [vmem:[#allocation10 + $0x88] sm:$0xff]
    %v2010 = vld [vmem:[#allocation10 + $0x90] sm:$0xff]
    %v2011 = vld [vmem:[#allocation10 + $0x98] sm:$0xff]
    %v2012 = vld [vmem:[#allocation10 + $0xa0] sm:$0xff]
    %v2013 = vld [vmem:[#allocation10 + $0xa8] sm:$0xff]
    %v2014 = vld [vmem:[#allocation10 + $0xb0] sm:$0xff]
    %v2015 = vld [vmem:[#allocation10 + $0xb8] sm:$0xff]
    %v2016 = vld [vmem:[#allocation10 + $0xc0] sm:$0xff]
    %v2017 = vld [vmem:[#allocation10 + $0xc8] sm:$0xff]
    %v2018 = vld [vmem:[#allocation10 + $0xd0] sm:$0xff]
    %v2019 = vld [vmem:[#allocation10 + $0xd8] sm:$0xff]
    %v2020 = vld [vmem:[#allocation10 + $0xe0] sm:$0xff]
    %v2021 = vld [vmem:[#allocation10 + $0xe8] sm:$0xff]
    %v2022 = vld [vmem:[#allocation10 + $0xf0] sm:$0xff]
    %v2023 = vld [vmem:[#allocation10 + $0xf8] sm:$0xff]
    %v2024 = vld [vmem:[#allocation10 + $0x100] sm:$0xff]
    %v2025 = vld [vmem:[#allocation10 + $0x108] sm:$0xff]
    %v2026 = vld [vmem:[#allocation10 + $0x110] sm:$0xff]
    %v2027 = vld [vmem:[#allocation10 + $0x118] sm:$0xff]
    %v2028 = vld [vmem:[#allocation10 + $0x120] sm:$0xff]
    %v2029 = vld [vmem:[#allocation10 + $0x128] sm:$0xff]
    %v2030 = vld [vmem:[#allocation10 + $0x130] sm:$0xff]
    %v2031 = vld [vmem:[#allocation10 + $0x138] sm:$0xff]
    %v2032 = vld [vmem:[#allocation10 + $0x140] sm:$0xff]
    %v2033 = vld [vmem:[#allocation10 + $0x148] sm:$0xff]
    %v2034 = vld [vmem:[#allocation10 + $0x150] sm:$0xff]
    %v2035 = vld [vmem:[#allocation10 + $0x158] sm:$0xff]
    %v2036 = vld [vmem:[#allocation10 + $0x160] sm:$0xff]
    %v2037 = vld [vmem:[#allocation10 + $0x168] sm:$0xff]
    %v2038 = vld [vmem:[#allocation10 + $0x170] sm:$0xff]
    %v2039 = vld [vmem:[#allocation10 + $0x178] sm:$0xff]
    %v2040 = vld [vmem:[#allocation10 + $0x180] sm:$0xff]
    %v2041 = vld [vmem:[#allocation10 + $0x188] sm:$0xff]
    %v2042 = vld [vmem:[#allocation10 + $0x190] sm:$0xff]
    %v2043 = vld [vmem:[#allocation10 + $0x198] sm:$0xff]
    %v2044 = vld [vmem:[#allocation10 + $0x1a0] sm:$0xff]
    %v2045 = vld [vmem:[#allocation10 + $0x1a8] sm:$0xff]
    %v2046 = vld [vmem:[#allocation10 + $0x1b0] sm:$0xff]
    %v2047 = vld [vmem:[#allocation10 + $0x1b8] sm:$0xff]
    %v2048 = vld [vmem:[#allocation10 + $0x1c0] sm:$0xff]
    %v2049 = vld [vmem:[#allocation10 + $0x1c8] sm:$0xff]
    %v2050 = vld [vmem:[#allocation10 + $0x1d0] sm:$0xff]
    %v2051 = vld [vmem:[#allocation10 + $0x1d8] sm:$0xff]
    %v2052 = vld [vmem:[#allocation10 + $0x1e0] sm:$0xff]
    %v2053 = vld [vmem:[#allocation10 + $0x1e8] sm:$0xff]
    %v2054 = vld [vmem:[#allocation10 + $0x1f0] sm:$0xff]
    %v2055 = vld [vmem:[#allocation10 + $0x1f8] sm:$0xff]
    %v2056 = vld [vmem:[#allocation10 + $0x200] sm:$0xff]
    %v2057 = vld [vmem:[#allocation10 + $0x208] sm:$0xff]
    %v2058 = vld [vmem:[#allocation10 + $0x210] sm:$0xff]
    %v2059 = vld [vmem:[#allocation10 + $0x218] sm:$0xff]
    %v2060 = vld [vmem:[#allocation10 + $0x220] sm:$0xff]
    %v2061 = vld [vmem:[#allocation10 + $0x228] sm:$0xff]
    %v2062 = vld [vmem:[#allocation10 + $0x230] sm:$0xff]
    %v2063 = vld [vmem:[#allocation10 + $0x238] sm:$0xff]
    %v2064 = vld [vmem:[#allocation10 + $0x240] sm:$0xff]
    %v2065 = vld [vmem:[#allocation10 + $0x248] sm:$0xff]
    %v2066 = vld [vmem:[#allocation10 + $0x250] sm:$0xff]
    %v2067 = vld [vmem:[#allocation10 + $0x258] sm:$0xff]
    %v2068 = vld [vmem:[#allocation10 + $0x260] sm:$0xff]
    %v2069 = vld [vmem:[#allocation10 + $0x268] sm:$0xff]
    %v2070 = vld [vmem:[#allocation10 + $0x270] sm:$0xff]
    %v2071 = vld [vmem:[#allocation10 + $0x278] sm:$0xff]
    %v2072 = vld [vmem:[#allocation10 + $0x280] sm:$0xff]
    %v2073 = vld [vmem:[#allocation10 + $0x288] sm:$0xff]
    %v2074 = vld [vmem:[#allocation10 + $0x290] sm:$0xff]
    %v2075 = vld [vmem:[#allocation10 + $0x298] sm:$0xff]
    %v2076 = vld [vmem:[#allocation10 + $0x2a0] sm:$0xff]
    %v2077 = vld [vmem:[#allocation10 + $0x2a8] sm:$0xff]
    %v2078 = vld [vmem:[#allocation10 + $0x2b0] sm:$0xff]
    %v2079 = vld [vmem:[#allocation10 + $0x2b8] sm:$0xff]
    %v2080 = vld [vmem:[#allocation10 + $0x2c0] sm:$0xff]
    %v2081 = vld [vmem:[#allocation10 + $0x2c8] sm:$0xff]
    %v2082 = vld [vmem:[#allocation10 + $0x2d0] sm:$0xff]
    %v2083 = vld [vmem:[#allocation10 + $0x2d8] sm:$0xff]
    %v2084 = vld [vmem:[#allocation10 + $0x2e0] sm:$0xff]
    %v2085 = vld [vmem:[#allocation10 + $0x2e8] sm:$0xff]
    %v2086 = vld [vmem:[#allocation10 + $0x2f0] sm:$0xff]
    %v2087 = vld [vmem:[#allocation10 + $0x2f8] sm:$0xff]
    %v2088 = vld [vmem:[#allocation10 + $0x300] sm:$0xff]
    %v2089 = vld [vmem:[#allocation10 + $0x308] sm:$0xff]
    %v2090 = vld [vmem:[#allocation10 + $0x310] sm:$0xff]
    %v2091 = vld [vmem:[#allocation10 + $0x318] sm:$0xff]
    %v2092 = vld [vmem:[#allocation10 + $0x320] sm:$0xff]
    %v2093 = vld [vmem:[#allocation10 + $0x328] sm:$0xff]
    %v2094 = vld [vmem:[#allocation10 + $0x330] sm:$0xff]
    %v2095 = vld [vmem:[#allocation10 + $0x338] sm:$0xff]
    %v2096 = vld [vmem:[#allocation10 + $0x340] sm:$0xff]
    %v2097 = vld [vmem:[#allocation10 + $0x348] sm:$0xff]
    %v2098 = vld [vmem:[#allocation10 + $0x350] sm:$0xff]
    %v2099 = vld [vmem:[#allocation10 + $0x358] sm:$0xff]
    %v2100 = vld [vmem:[#allocation10 + $0x360] sm:$0xff]
    %v2101 = vld [vmem:[#allocation10 + $0x368] sm:$0xff]
    %v2102 = vld [vmem:[#allocation10 + $0x370] sm:$0xff]
    %v2103 = vld [vmem:[#allocation10 + $0x378] sm:$0xff]
    %v2104 = vld [vmem:[#allocation10 + $0x380] sm:$0xff]
    %v2105 = vld [vmem:[#allocation10 + $0x388] sm:$0xff]
    %v2106 = vld [vmem:[#allocation10 + $0x390] sm:$0xff]
    %v2107 = vld [vmem:[#allocation10 + $0x398] sm:$0xff]
    %v2108 = vld [vmem:[#allocation10 + $0x3a0] sm:$0xff]
    %v2109 = vld [vmem:[#allocation10 + $0x3a8] sm:$0xff]
    %v2110 = vld [vmem:[#allocation10 + $0x3b0] sm:$0xff]
    %v2111 = vld [vmem:[#allocation10 + $0x3b8] sm:$0xff]
    %v2112 = vld [vmem:[#allocation10 + $0x3c0] sm:$0xff]
    %v2113 = vld [vmem:[#allocation10 + $0x3c8] sm:$0xff]
    %v2114 = vld [vmem:[#allocation10 + $0x3d0] sm:$0xff]
    %v2115 = vld [vmem:[#allocation10 + $0x3d8] sm:$0xff]
    %v2116 = vld [vmem:[#allocation10 + $0x3e0] sm:$0xff]
    %v2117 = vld [vmem:[#allocation10 + $0x3e8] sm:$0xff]
    %v2118 = vld [vmem:[#allocation10 + $0x3f0] sm:$0xff]
    %v2119 = vld [vmem:[#allocation10 + $0x3f8] sm:$0xff]
    %v2120 = vld [vmem:[#allocation10 + $0x400] sm:$0xff]
    %v2121 = vld [vmem:[#allocation10 + $0x408] sm:$0xff]
    %v2122 = vld [vmem:[#allocation10 + $0x410] sm:$0xff]
    %v2123 = vld [vmem:[#allocation10 + $0x418] sm:$0xff]
    %v2124 = vld [vmem:[#allocation10 + $0x420] sm:$0xff]
    %v2125 = vld [vmem:[#allocation10 + $0x428] sm:$0xff]
    %v2126 = vld [vmem:[#allocation10 + $0x430] sm:$0xff]
    %v2127 = vld [vmem:[#allocation10 + $0x438] sm:$0xff]
    %v2128 = vld [vmem:[#allocation10 + $0x440] sm:$0xff]
    %v2129 = vld [vmem:[#allocation10 + $0x448] sm:$0xff]
    %v2130 = vld [vmem:[#allocation10 + $0x450] sm:$0xff]
    %v2131 = vld [vmem:[#allocation10 + $0x458] sm:$0xff]
    %v2132 = vld [vmem:[#allocation10 + $0x460] sm:$0xff]
    %v2133 = vld [vmem:[#allocation10 + $0x468] sm:$0xff]
    %v2134 = vld [vmem:[#allocation10 + $0x470] sm:$0xff]
    %v2135 = vld [vmem:[#allocation10 + $0x478] sm:$0xff]
    %v2136 = vld [vmem:[#allocation10 + $0x480] sm:$0xff]
    %v2137 = vld [vmem:[#allocation10 + $0x488] sm:$0xff]
    %v2138 = vld [vmem:[#allocation10 + $0x490] sm:$0xff]
    %v2139 = vld [vmem:[#allocation10 + $0x498] sm:$0xff]
    %v2140 = vld [vmem:[#allocation10 + $0x4a0] sm:$0xff]
    %v2141 = vld [vmem:[#allocation10 + $0x4a8] sm:$0xff]
    %v2142 = vld [vmem:[#allocation10 + $0x4b0] sm:$0xff]
    %v2143 = vld [vmem:[#allocation10 + $0x4b8] sm:$0xff]
    %v2144 = vld [vmem:[#allocation10 + $0x4c0] sm:$0xff]
    %v2145 = vld [vmem:[#allocation10 + $0x4c8] sm:$0xff]
    %v2146 = vld [vmem:[#allocation10 + $0x4d0] sm:$0xff]
    %v2147 = vld [vmem:[#allocation10 + $0x4d8] sm:$0xff]
    %v2148 = vld [vmem:[#allocation10 + $0x4e0] sm:$0xff]
    %v2149 = vld [vmem:[#allocation10 + $0x4e8] sm:$0xff]
    %v2150 = vld [vmem:[#allocation10 + $0x4f0] sm:$0xff]
    %v2151 = vld [vmem:[#allocation10 + $0x4f8] sm:$0xff]
    %v2152 = vld [vmem:[#allocation10 + $0x500] sm:$0xff]
    %v2153 = vld [vmem:[#allocation10 + $0x508] sm:$0xff]
    %v2154 = vld [vmem:[#allocation10 + $0x510] sm:$0xff]
    %v2155 = vld [vmem:[#allocation10 + $0x518] sm:$0xff]
    %v2156 = vld [vmem:[#allocation10 + $0x520] sm:$0xff]
    %v2157 = vld [vmem:[#allocation10 + $0x528] sm:$0xff]
    %v2158 = vld [vmem:[#allocation10 + $0x530] sm:$0xff]
    %v2159 = vld [vmem:[#allocation10 + $0x538] sm:$0xff]
    %v2160 = vld [vmem:[#allocation10 + $0x540] sm:$0xff]
    %v2161 = vld [vmem:[#allocation10 + $0x548] sm:$0xff]
    %v2162 = vld [vmem:[#allocation10 + $0x550] sm:$0xff]
    %v2163 = vld [vmem:[#allocation10 + $0x558] sm:$0xff]
    %v2164 = vld [vmem:[#allocation10 + $0x560] sm:$0xff]
    %v2165 = vld [vmem:[#allocation10 + $0x568] sm:$0xff]
    %v2166 = vld [vmem:[#allocation10 + $0x570] sm:$0xff]
    %v2167 = vld [vmem:[#allocation10 + $0x578] sm:$0xff]
    %v2168 = vld [vmem:[#allocation10 + $0x580] sm:$0xff]
    %v2169 = vld [vmem:[#allocation10 + $0x588] sm:$0xff]
    %v2170 = vld [vmem:[#allocation10 + $0x590] sm:$0xff]
    %v2171 = vld [vmem:[#allocation10 + $0x598] sm:$0xff]
    %v2172 = vld [vmem:[#allocation10 + $0x5a0] sm:$0xff]
    %v2173 = vld [vmem:[#allocation10 + $0x5a8] sm:$0xff]
    %v2174 = vld [vmem:[#allocation10 + $0x5b0] sm:$0xff]
    %v2175 = vld [vmem:[#allocation10 + $0x5b8] sm:$0xff]
    %v2176 = vld [vmem:[#allocation10 + $0x5c0] sm:$0xff]
    %v2177 = vld [vmem:[#allocation10 + $0x5c8] sm:$0xff]
    %v2178 = vld [vmem:[#allocation10 + $0x5d0] sm:$0xff]
    %v2179 = vld [vmem:[#allocation10 + $0x5d8] sm:$0xff]
    %v2180 = vld [vmem:[#allocation10 + $0x5e0] sm:$0xff]
    %v2181 = vld [vmem:[#allocation10 + $0x5e8] sm:$0xff]
    %v2182 = vld [vmem:[#allocation10 + $0x5f0] sm:$0xff]
    %v2183 = vld [vmem:[#allocation10 + $0x5f8] sm:$0xff]
    %v2184 = vld [vmem:[#allocation10 + $0x600] sm:$0xff]
    %v2185 = vld [vmem:[#allocation10 + $0x608] sm:$0xff]
    %v2186 = vld [vmem:[#allocation10 + $0x610] sm:$0xff]
    %v2187 = vld [vmem:[#allocation10 + $0x618] sm:$0xff]
    %v2188 = vld [vmem:[#allocation10 + $0x620] sm:$0xff]
    %v2189 = vld [vmem:[#allocation10 + $0x628] sm:$0xff]
    %v2190 = vld [vmem:[#allocation10 + $0x630] sm:$0xff]
    %v2191 = vld [vmem:[#allocation10 + $0x638] sm:$0xff]
    %v2192 = vld [vmem:[#allocation10 + $0x640] sm:$0xff]
    %v2193 = vld [vmem:[#allocation10 + $0x648] sm:$0xff]
    %v2194 = vld [vmem:[#allocation10 + $0x650] sm:$0xff]
    %v2195 = vld [vmem:[#allocation10 + $0x658] sm:$0xff]
    %v2196 = vld [vmem:[#allocation10 + $0x660] sm:$0xff]
    %v2197 = vld [vmem:[#allocation10 + $0x668] sm:$0xff]
    %v2198 = vld [vmem:[#allocation10 + $0x670] sm:$0xff]
    %v2199 = vld [vmem:[#allocation10 + $0x678] sm:$0xff]
    %v2200 = vld [vmem:[#allocation10 + $0x680] sm:$0xff]
    %v2201 = vld [vmem:[#allocation10 + $0x688] sm:$0xff]
    %v2202 = vld [vmem:[#allocation10 + $0x690] sm:$0xff]
    %v2203 = vld [vmem:[#allocation10 + $0x698] sm:$0xff]
    %v2204 = vld [vmem:[#allocation10 + $0x6a0] sm:$0xff]
    %v2205 = vld [vmem:[#allocation10 + $0x6a8] sm:$0xff]
    %v2206 = vld [vmem:[#allocation10 + $0x6b0] sm:$0xff]
    %v2207 = vld [vmem:[#allocation10 + $0x6b8] sm:$0xff]
    %v2208 = vld [vmem:[#allocation10 + $0x6c0] sm:$0xff]
    %v2209 = vld [vmem:[#allocation10 + $0x6c8] sm:$0xff]
    %v2210 = vld [vmem:[#allocation10 + $0x6d0] sm:$0xff]
    %v2211 = vld [vmem:[#allocation10 + $0x6d8] sm:$0xff]
    %v2212 = vld [vmem:[#allocation10 + $0x6e0] sm:$0xff]
    %v2213 = vld [vmem:[#allocation10 + $0x6e8] sm:$0xff]
    %v2214 = vld [vmem:[#allocation10 + $0x6f0] sm:$0xff]
    %v2215 = vld [vmem:[#allocation10 + $0x6f8] sm:$0xff]
    %v2216 = vunpack.c.l.s8.bf16 %v1992
    %v2217 = vunpack.c.l.s8.bf16 %v1993
    %v2218 = vunpack.c.l.s8.bf16 %v1994
    %v2219 = vunpack.c.l.s8.bf16 %v1995
    %v2220 = vunpack.c.l.s8.bf16 %v1996
    %v2221 = vunpack.c.l.s8.bf16 %v1997
    %v2222 = vunpack.c.l.s8.bf16 %v1998
    %v2223 = vunpack.c.h.s8.bf16 %v1992
    %v2224 = vunpack.c.h.s8.bf16 %v1993
    %v2225 = vunpack.c.h.s8.bf16 %v1994
    %v2226 = vunpack.c.h.s8.bf16 %v1995
    %v2227 = vunpack.c.h.s8.bf16 %v1996
    %v2228 = vunpack.c.h.s8.bf16 %v1997
    %v2229 = vunpack.c.h.s8.bf16 %v1998
    %v2230 = vunpack.c.l.s8.bf16 %v1999
    %v2231 = vunpack.c.l.s8.bf16 %v2000
    %v2232 = vunpack.c.l.s8.bf16 %v2001
    %v2233 = vunpack.c.l.s8.bf16 %v2002
    %v2234 = vunpack.c.l.s8.bf16 %v2003
    %v2235 = vunpack.c.l.s8.bf16 %v2004
    %v2236 = vunpack.c.l.s8.bf16 %v2005
    %v2237 = vunpack.c.h.s8.bf16 %v1999
    %v2238 = vunpack.c.h.s8.bf16 %v2000
    %v2239 = vunpack.c.h.s8.bf16 %v2001
    %v2240 = vunpack.c.h.s8.bf16 %v2002
    %v2241 = vunpack.c.h.s8.bf16 %v2003
    %v2242 = vunpack.c.h.s8.bf16 %v2004
    %v2243 = vunpack.c.h.s8.bf16 %v2005
    %v2244 = vunpack.c.l.s8.bf16 %v2006
    %v2245 = vunpack.c.l.s8.bf16 %v2007
    %v2246 = vunpack.c.l.s8.bf16 %v2008
    %v2247 = vunpack.c.l.s8.bf16 %v2009
    %v2248 = vunpack.c.l.s8.bf16 %v2010
    %v2249 = vunpack.c.l.s8.bf16 %v2011
    %v2250 = vunpack.c.l.s8.bf16 %v2012
    %v2251 = vunpack.c.h.s8.bf16 %v2006
    %v2252 = vunpack.c.h.s8.bf16 %v2007
    %v2253 = vunpack.c.h.s8.bf16 %v2008
    %v2254 = vunpack.c.h.s8.bf16 %v2009
    %v2255 = vunpack.c.h.s8.bf16 %v2010
    %v2256 = vunpack.c.h.s8.bf16 %v2011
    %v2257 = vunpack.c.h.s8.bf16 %v2012
    %v2258 = vunpack.c.l.s8.bf16 %v2013
    %v2259 = vunpack.c.l.s8.bf16 %v2014
    %v2260 = vunpack.c.l.s8.bf16 %v2015
    %v2261 = vunpack.c.l.s8.bf16 %v2016
    %v2262 = vunpack.c.l.s8.bf16 %v2017
    %v2263 = vunpack.c.l.s8.bf16 %v2018
    %v2264 = vunpack.c.l.s8.bf16 %v2019
    %v2265 = vunpack.c.h.s8.bf16 %v2013
    %v2266 = vunpack.c.h.s8.bf16 %v2014
    %v2267 = vunpack.c.h.s8.bf16 %v2015
    %v2268 = vunpack.c.h.s8.bf16 %v2016
    %v2269 = vunpack.c.h.s8.bf16 %v2017
    %v2270 = vunpack.c.h.s8.bf16 %v2018
    %v2271 = vunpack.c.h.s8.bf16 %v2019
    %v2272 = vunpack.c.l.s8.bf16 %v2020
    %v2273 = vunpack.c.l.s8.bf16 %v2021
    %v2274 = vunpack.c.l.s8.bf16 %v2022
    %v2275 = vunpack.c.l.s8.bf16 %v2023
    %v2276 = vunpack.c.l.s8.bf16 %v2024
    %v2277 = vunpack.c.l.s8.bf16 %v2025
    %v2278 = vunpack.c.l.s8.bf16 %v2026
    %v2279 = vunpack.c.h.s8.bf16 %v2020
    %v2280 = vunpack.c.h.s8.bf16 %v2021
    %v2281 = vunpack.c.h.s8.bf16 %v2022
    %v2282 = vunpack.c.h.s8.bf16 %v2023
    %v2283 = vunpack.c.h.s8.bf16 %v2024
    %v2284 = vunpack.c.h.s8.bf16 %v2025
    %v2285 = vunpack.c.h.s8.bf16 %v2026
    %v2286 = vunpack.c.l.s8.bf16 %v2027
    %v2287 = vunpack.c.l.s8.bf16 %v2028
    %v2288 = vunpack.c.l.s8.bf16 %v2029
    %v2289 = vunpack.c.l.s8.bf16 %v2030
    %v2290 = vunpack.c.l.s8.bf16 %v2031
    %v2291 = vunpack.c.l.s8.bf16 %v2032
    %v2292 = vunpack.c.l.s8.bf16 %v2033
    %v2293 = vunpack.c.h.s8.bf16 %v2027
    %v2294 = vunpack.c.h.s8.bf16 %v2028
    %v2295 = vunpack.c.h.s8.bf16 %v2029
    %v2296 = vunpack.c.h.s8.bf16 %v2030
    %v2297 = vunpack.c.h.s8.bf16 %v2031
    %v2298 = vunpack.c.h.s8.bf16 %v2032
    %v2299 = vunpack.c.h.s8.bf16 %v2033
    %v2300 = vunpack.c.l.s8.bf16 %v2034
    %v2301 = vunpack.c.l.s8.bf16 %v2035
    %v2302 = vunpack.c.l.s8.bf16 %v2036
    %v2303 = vunpack.c.l.s8.bf16 %v2037
    %v2304 = vunpack.c.l.s8.bf16 %v2038
    %v2305 = vunpack.c.l.s8.bf16 %v2039
    %v2306 = vunpack.c.l.s8.bf16 %v2040
    %v2307 = vunpack.c.h.s8.bf16 %v2034
    %v2308 = vunpack.c.h.s8.bf16 %v2035
    %v2309 = vunpack.c.h.s8.bf16 %v2036
    %v2310 = vunpack.c.h.s8.bf16 %v2037
    %v2311 = vunpack.c.h.s8.bf16 %v2038
    %v2312 = vunpack.c.h.s8.bf16 %v2039
    %v2313 = vunpack.c.h.s8.bf16 %v2040
    %v2314 = vunpack.c.l.s8.bf16 %v2041
    %v2315 = vunpack.c.l.s8.bf16 %v2042
    %v2316 = vunpack.c.l.s8.bf16 %v2043
    %v2317 = vunpack.c.l.s8.bf16 %v2044
    %v2318 = vunpack.c.l.s8.bf16 %v2045
    %v2319 = vunpack.c.l.s8.bf16 %v2046
    %v2320 = vunpack.c.l.s8.bf16 %v2047
    %v2321 = vunpack.c.h.s8.bf16 %v2041
    %v2322 = vunpack.c.h.s8.bf16 %v2042
    %v2323 = vunpack.c.h.s8.bf16 %v2043
    %v2324 = vunpack.c.h.s8.bf16 %v2044
    %v2325 = vunpack.c.h.s8.bf16 %v2045
    %v2326 = vunpack.c.h.s8.bf16 %v2046
    %v2327 = vunpack.c.h.s8.bf16 %v2047
    %v2328 = vunpack.c.l.s8.bf16 %v2048
    %v2329 = vunpack.c.l.s8.bf16 %v2049
    %v2330 = vunpack.c.l.s8.bf16 %v2050
    %v2331 = vunpack.c.l.s8.bf16 %v2051
    %v2332 = vunpack.c.l.s8.bf16 %v2052
    %v2333 = vunpack.c.l.s8.bf16 %v2053
    %v2334 = vunpack.c.l.s8.bf16 %v2054
    %v2335 = vunpack.c.h.s8.bf16 %v2048
    %v2336 = vunpack.c.h.s8.bf16 %v2049
    %v2337 = vunpack.c.h.s8.bf16 %v2050
    %v2338 = vunpack.c.h.s8.bf16 %v2051
    %v2339 = vunpack.c.h.s8.bf16 %v2052
    %v2340 = vunpack.c.h.s8.bf16 %v2053
    %v2341 = vunpack.c.h.s8.bf16 %v2054
    %v2342 = vunpack.c.l.s8.bf16 %v2055
    %v2343 = vunpack.c.l.s8.bf16 %v2056
    %v2344 = vunpack.c.l.s8.bf16 %v2057
    %v2345 = vunpack.c.l.s8.bf16 %v2058
    %v2346 = vunpack.c.l.s8.bf16 %v2059
    %v2347 = vunpack.c.l.s8.bf16 %v2060
    %v2348 = vunpack.c.l.s8.bf16 %v2061
    %v2349 = vunpack.c.h.s8.bf16 %v2055
    %v2350 = vunpack.c.h.s8.bf16 %v2056
    %v2351 = vunpack.c.h.s8.bf16 %v2057
    %v2352 = vunpack.c.h.s8.bf16 %v2058
    %v2353 = vunpack.c.h.s8.bf16 %v2059
    %v2354 = vunpack.c.h.s8.bf16 %v2060
    %v2355 = vunpack.c.h.s8.bf16 %v2061
    %v2356 = vunpack.c.l.s8.bf16 %v2062
    %v2357 = vunpack.c.l.s8.bf16 %v2063
    %v2358 = vunpack.c.l.s8.bf16 %v2064
    %v2359 = vunpack.c.l.s8.bf16 %v2065
    %v2360 = vunpack.c.l.s8.bf16 %v2066
    %v2361 = vunpack.c.l.s8.bf16 %v2067
    %v2362 = vunpack.c.l.s8.bf16 %v2068
    %v2363 = vunpack.c.h.s8.bf16 %v2062
    %v2364 = vunpack.c.h.s8.bf16 %v2063
    %v2365 = vunpack.c.h.s8.bf16 %v2064
    %v2366 = vunpack.c.h.s8.bf16 %v2065
    %v2367 = vunpack.c.h.s8.bf16 %v2066
    %v2368 = vunpack.c.h.s8.bf16 %v2067
    %v2369 = vunpack.c.h.s8.bf16 %v2068
    %v2370 = vunpack.c.l.s8.bf16 %v2069
    %v2371 = vunpack.c.l.s8.bf16 %v2070
    %v2372 = vunpack.c.l.s8.bf16 %v2071
    %v2373 = vunpack.c.l.s8.bf16 %v2072
    %v2374 = vunpack.c.l.s8.bf16 %v2073
    %v2375 = vunpack.c.l.s8.bf16 %v2074
    %v2376 = vunpack.c.l.s8.bf16 %v2075
    %v2377 = vunpack.c.h.s8.bf16 %v2069
    %v2378 = vunpack.c.h.s8.bf16 %v2070
    %v2379 = vunpack.c.h.s8.bf16 %v2071
    %v2380 = vunpack.c.h.s8.bf16 %v2072
    %v2381 = vunpack.c.h.s8.bf16 %v2073
    %v2382 = vunpack.c.h.s8.bf16 %v2074
    %v2383 = vunpack.c.h.s8.bf16 %v2075
    %v2384 = vunpack.c.l.s8.bf16 %v2076
    %v2385 = vunpack.c.l.s8.bf16 %v2077
    %v2386 = vunpack.c.l.s8.bf16 %v2078
    %v2387 = vunpack.c.l.s8.bf16 %v2079
    %v2388 = vunpack.c.l.s8.bf16 %v2080
    %v2389 = vunpack.c.l.s8.bf16 %v2081
    %v2390 = vunpack.c.l.s8.bf16 %v2082
    %v2391 = vunpack.c.h.s8.bf16 %v2076
    %v2392 = vunpack.c.h.s8.bf16 %v2077
    %v2393 = vunpack.c.h.s8.bf16 %v2078
    %v2394 = vunpack.c.h.s8.bf16 %v2079
    %v2395 = vunpack.c.h.s8.bf16 %v2080
    %v2396 = vunpack.c.h.s8.bf16 %v2081
    %v2397 = vunpack.c.h.s8.bf16 %v2082
    %v2398 = vunpack.c.l.s8.bf16 %v2083
    %v2399 = vunpack.c.l.s8.bf16 %v2084
    %v2400 = vunpack.c.l.s8.bf16 %v2085
    %v2401 = vunpack.c.l.s8.bf16 %v2086
    %v2402 = vunpack.c.l.s8.bf16 %v2087
    %v2403 = vunpack.c.l.s8.bf16 %v2088
    %v2404 = vunpack.c.l.s8.bf16 %v2089
    %v2405 = vunpack.c.h.s8.bf16 %v2083
    %v2406 = vunpack.c.h.s8.bf16 %v2084
    %v2407 = vunpack.c.h.s8.bf16 %v2085
    %v2408 = vunpack.c.h.s8.bf16 %v2086
    %v2409 = vunpack.c.h.s8.bf16 %v2087
    %v2410 = vunpack.c.h.s8.bf16 %v2088
    %v2411 = vunpack.c.h.s8.bf16 %v2089
    %v2412 = vunpack.c.l.s8.bf16 %v2090
    %v2413 = vunpack.c.l.s8.bf16 %v2091
    %v2414 = vunpack.c.l.s8.bf16 %v2092
    %v2415 = vunpack.c.l.s8.bf16 %v2093
    %v2416 = vunpack.c.l.s8.bf16 %v2094
    %v2417 = vunpack.c.l.s8.bf16 %v2095
    %v2418 = vunpack.c.l.s8.bf16 %v2096
    %v2419 = vunpack.c.h.s8.bf16 %v2090
    %v2420 = vunpack.c.h.s8.bf16 %v2091
    %v2421 = vunpack.c.h.s8.bf16 %v2092
    %v2422 = vunpack.c.h.s8.bf16 %v2093
    %v2423 = vunpack.c.h.s8.bf16 %v2094
    %v2424 = vunpack.c.h.s8.bf16 %v2095
    %v2425 = vunpack.c.h.s8.bf16 %v2096
    %v2426 = vunpack.c.l.s8.bf16 %v2097
    %v2427 = vunpack.c.l.s8.bf16 %v2098
    %v2428 = vunpack.c.l.s8.bf16 %v2099
    %v2429 = vunpack.c.l.s8.bf16 %v2100
    %v2430 = vunpack.c.l.s8.bf16 %v2101
    %v2431 = vunpack.c.l.s8.bf16 %v2102
    %v2432 = vunpack.c.l.s8.bf16 %v2103
    %v2433 = vunpack.c.h.s8.bf16 %v2097
    %v2434 = vunpack.c.h.s8.bf16 %v2098
    %v2435 = vunpack.c.h.s8.bf16 %v2099
    %v2436 = vunpack.c.h.s8.bf16 %v2100
    %v2437 = vunpack.c.h.s8.bf16 %v2101
    %v2438 = vunpack.c.h.s8.bf16 %v2102
    %v2439 = vunpack.c.h.s8.bf16 %v2103
    %v2440 = vunpack.c.l.s8.bf16 %v2104
    %v2441 = vunpack.c.l.s8.bf16 %v2105
    %v2442 = vunpack.c.l.s8.bf16 %v2106
    %v2443 = vunpack.c.l.s8.bf16 %v2107
    %v2444 = vunpack.c.l.s8.bf16 %v2108
    %v2445 = vunpack.c.l.s8.bf16 %v2109
    %v2446 = vunpack.c.l.s8.bf16 %v2110
    %v2447 = vunpack.c.h.s8.bf16 %v2104
    %v2448 = vunpack.c.h.s8.bf16 %v2105
    %v2449 = vunpack.c.h.s8.bf16 %v2106
    %v2450 = vunpack.c.h.s8.bf16 %v2107
    %v2451 = vunpack.c.h.s8.bf16 %v2108
    %v2452 = vunpack.c.h.s8.bf16 %v2109
    %v2453 = vunpack.c.h.s8.bf16 %v2110
    %v2454 = vunpack.c.l.s8.bf16 %v2111
    %v2455 = vunpack.c.l.s8.bf16 %v2112
    %v2456 = vunpack.c.l.s8.bf16 %v2113
    %v2457 = vunpack.c.l.s8.bf16 %v2114
    %v2458 = vunpack.c.l.s8.bf16 %v2115
    %v2459 = vunpack.c.l.s8.bf16 %v2116
    %v2460 = vunpack.c.l.s8.bf16 %v2117
    %v2461 = vunpack.c.h.s8.bf16 %v2111
    %v2462 = vunpack.c.h.s8.bf16 %v2112
    %v2463 = vunpack.c.h.s8.bf16 %v2113
    %v2464 = vunpack.c.h.s8.bf16 %v2114
    %v2465 = vunpack.c.h.s8.bf16 %v2115
    %v2466 = vunpack.c.h.s8.bf16 %v2116
    %v2467 = vunpack.c.h.s8.bf16 %v2117
    %v2468 = vunpack.c.l.s8.bf16 %v2118
    %v2469 = vunpack.c.l.s8.bf16 %v2119
    %v2470 = vunpack.c.l.s8.bf16 %v2120
    %v2471 = vunpack.c.l.s8.bf16 %v2121
    %v2472 = vunpack.c.l.s8.bf16 %v2122
    %v2473 = vunpack.c.l.s8.bf16 %v2123
    %v2474 = vunpack.c.l.s8.bf16 %v2124
    %v2475 = vunpack.c.h.s8.bf16 %v2118
    %v2476 = vunpack.c.h.s8.bf16 %v2119
    %v2477 = vunpack.c.h.s8.bf16 %v2120
    %v2478 = vunpack.c.h.s8.bf16 %v2121
    %v2479 = vunpack.c.h.s8.bf16 %v2122
    %v2480 = vunpack.c.h.s8.bf16 %v2123
    %v2481 = vunpack.c.h.s8.bf16 %v2124
    %v2482 = vunpack.c.l.s8.bf16 %v2125
    %v2483 = vunpack.c.l.s8.bf16 %v2126
    %v2484 = vunpack.c.l.s8.bf16 %v2127
    %v2485 = vunpack.c.l.s8.bf16 %v2128
    %v2486 = vunpack.c.l.s8.bf16 %v2129
    %v2487 = vunpack.c.l.s8.bf16 %v2130
    %v2488 = vunpack.c.l.s8.bf16 %v2131
    %v2489 = vunpack.c.h.s8.bf16 %v2125
    %v2490 = vunpack.c.h.s8.bf16 %v2126
    %v2491 = vunpack.c.h.s8.bf16 %v2127
    %v2492 = vunpack.c.h.s8.bf16 %v2128
    %v2493 = vunpack.c.h.s8.bf16 %v2129
    %v2494 = vunpack.c.h.s8.bf16 %v2130
    %v2495 = vunpack.c.h.s8.bf16 %v2131
    %v2496 = vunpack.c.l.s8.bf16 %v2132
    %v2497 = vunpack.c.l.s8.bf16 %v2133
    %v2498 = vunpack.c.l.s8.bf16 %v2134
    %v2499 = vunpack.c.l.s8.bf16 %v2135
    %v2500 = vunpack.c.l.s8.bf16 %v2136
    %v2501 = vunpack.c.l.s8.bf16 %v2137
    %v2502 = vunpack.c.l.s8.bf16 %v2138
    %v2503 = vunpack.c.h.s8.bf16 %v2132
    %v2504 = vunpack.c.h.s8.bf16 %v2133
    %v2505 = vunpack.c.h.s8.bf16 %v2134
    %v2506 = vunpack.c.h.s8.bf16 %v2135
    %v2507 = vunpack.c.h.s8.bf16 %v2136
    %v2508 = vunpack.c.h.s8.bf16 %v2137
    %v2509 = vunpack.c.h.s8.bf16 %v2138
    %v2510 = vunpack.c.l.s8.bf16 %v2139
    %v2511 = vunpack.c.l.s8.bf16 %v2140
    %v2512 = vunpack.c.l.s8.bf16 %v2141
    %v2513 = vunpack.c.l.s8.bf16 %v2142
    %v2514 = vunpack.c.l.s8.bf16 %v2143
    %v2515 = vunpack.c.l.s8.bf16 %v2144
    %v2516 = vunpack.c.l.s8.bf16 %v2145
    %v2517 = vunpack.c.h.s8.bf16 %v2139
    %v2518 = vunpack.c.h.s8.bf16 %v2140
    %v2519 = vunpack.c.h.s8.bf16 %v2141
    %v2520 = vunpack.c.h.s8.bf16 %v2142
    %v2521 = vunpack.c.h.s8.bf16 %v2143
    %v2522 = vunpack.c.h.s8.bf16 %v2144
    %v2523 = vunpack.c.h.s8.bf16 %v2145
    %v2524 = vunpack.c.l.s8.bf16 %v2146
    %v2525 = vunpack.c.l.s8.bf16 %v2147
    %v2526 = vunpack.c.l.s8.bf16 %v2148
    %v2527 = vunpack.c.l.s8.bf16 %v2149
    %v2528 = vunpack.c.l.s8.bf16 %v2150
    %v2529 = vunpack.c.l.s8.bf16 %v2151
    %v2530 = vunpack.c.l.s8.bf16 %v2152
    %v2531 = vunpack.c.h.s8.bf16 %v2146
    %v2532 = vunpack.c.h.s8.bf16 %v2147
    %v2533 = vunpack.c.h.s8.bf16 %v2148
    %v2534 = vunpack.c.h.s8.bf16 %v2149
    %v2535 = vunpack.c.h.s8.bf16 %v2150
    %v2536 = vunpack.c.h.s8.bf16 %v2151
    %v2537 = vunpack.c.h.s8.bf16 %v2152
    %v2538 = vunpack.c.l.s8.bf16 %v2153
    %v2539 = vunpack.c.l.s8.bf16 %v2154
    %v2540 = vunpack.c.l.s8.bf16 %v2155
    %v2541 = vunpack.c.l.s8.bf16 %v2156
    %v2542 = vunpack.c.l.s8.bf16 %v2157
    %v2543 = vunpack.c.l.s8.bf16 %v2158
    %v2544 = vunpack.c.l.s8.bf16 %v2159
    %v2545 = vunpack.c.h.s8.bf16 %v2153
    %v2546 = vunpack.c.h.s8.bf16 %v2154
    %v2547 = vunpack.c.h.s8.bf16 %v2155
    %v2548 = vunpack.c.h.s8.bf16 %v2156
    %v2549 = vunpack.c.h.s8.bf16 %v2157
    %v2550 = vunpack.c.h.s8.bf16 %v2158
    %v2551 = vunpack.c.h.s8.bf16 %v2159
    %v2552 = vunpack.c.l.s8.bf16 %v2160
    %v2553 = vunpack.c.l.s8.bf16 %v2161
    %v2554 = vunpack.c.l.s8.bf16 %v2162
    %v2555 = vunpack.c.l.s8.bf16 %v2163
    %v2556 = vunpack.c.l.s8.bf16 %v2164
    %v2557 = vunpack.c.l.s8.bf16 %v2165
    %v2558 = vunpack.c.l.s8.bf16 %v2166
    %v2559 = vunpack.c.h.s8.bf16 %v2160
    %v2560 = vunpack.c.h.s8.bf16 %v2161
    %v2561 = vunpack.c.h.s8.bf16 %v2162
    %v2562 = vunpack.c.h.s8.bf16 %v2163
    %v2563 = vunpack.c.h.s8.bf16 %v2164
    %v2564 = vunpack.c.h.s8.bf16 %v2165
    %v2565 = vunpack.c.h.s8.bf16 %v2166
    %v2566 = vunpack.c.l.s8.bf16 %v2167
    %v2567 = vunpack.c.l.s8.bf16 %v2168
    %v2568 = vunpack.c.l.s8.bf16 %v2169
    %v2569 = vunpack.c.l.s8.bf16 %v2170
    %v2570 = vunpack.c.l.s8.bf16 %v2171
    %v2571 = vunpack.c.l.s8.bf16 %v2172
    %v2572 = vunpack.c.l.s8.bf16 %v2173
    %v2573 = vunpack.c.h.s8.bf16 %v2167
    %v2574 = vunpack.c.h.s8.bf16 %v2168
    %v2575 = vunpack.c.h.s8.bf16 %v2169
    %v2576 = vunpack.c.h.s8.bf16 %v2170
    %v2577 = vunpack.c.h.s8.bf16 %v2171
    %v2578 = vunpack.c.h.s8.bf16 %v2172
    %v2579 = vunpack.c.h.s8.bf16 %v2173
    %v2580 = vunpack.c.l.s8.bf16 %v2174
    %v2581 = vunpack.c.l.s8.bf16 %v2175
    %v2582 = vunpack.c.l.s8.bf16 %v2176
    %v2583 = vunpack.c.l.s8.bf16 %v2177
    %v2584 = vunpack.c.l.s8.bf16 %v2178
    %v2585 = vunpack.c.l.s8.bf16 %v2179
    %v2586 = vunpack.c.l.s8.bf16 %v2180
    %v2587 = vunpack.c.h.s8.bf16 %v2174
    %v2588 = vunpack.c.h.s8.bf16 %v2175
    %v2589 = vunpack.c.h.s8.bf16 %v2176
    %v2590 = vunpack.c.h.s8.bf16 %v2177
    %v2591 = vunpack.c.h.s8.bf16 %v2178
    %v2592 = vunpack.c.h.s8.bf16 %v2179
    %v2593 = vunpack.c.h.s8.bf16 %v2180
    %v2594 = vunpack.c.l.s8.bf16 %v2181
    %v2595 = vunpack.c.l.s8.bf16 %v2182
    %v2596 = vunpack.c.l.s8.bf16 %v2183
    %v2597 = vunpack.c.l.s8.bf16 %v2184
    %v2598 = vunpack.c.l.s8.bf16 %v2185
    %v2599 = vunpack.c.l.s8.bf16 %v2186
    %v2600 = vunpack.c.l.s8.bf16 %v2187
    %v2601 = vunpack.c.h.s8.bf16 %v2181
    %v2602 = vunpack.c.h.s8.bf16 %v2182
    %v2603 = vunpack.c.h.s8.bf16 %v2183
    %v2604 = vunpack.c.h.s8.bf16 %v2184
    %v2605 = vunpack.c.h.s8.bf16 %v2185
    %v2606 = vunpack.c.h.s8.bf16 %v2186
    %v2607 = vunpack.c.h.s8.bf16 %v2187
    %v2608 = vunpack.c.l.s8.bf16 %v2188
    %v2609 = vunpack.c.l.s8.bf16 %v2189
    %v2610 = vunpack.c.l.s8.bf16 %v2190
    %v2611 = vunpack.c.l.s8.bf16 %v2191
    %v2612 = vunpack.c.l.s8.bf16 %v2192
    %v2613 = vunpack.c.l.s8.bf16 %v2193
    %v2614 = vunpack.c.l.s8.bf16 %v2194
    %v2615 = vunpack.c.h.s8.bf16 %v2188
    %v2616 = vunpack.c.h.s8.bf16 %v2189
    %v2617 = vunpack.c.h.s8.bf16 %v2190
    %v2618 = vunpack.c.h.s8.bf16 %v2191
    %v2619 = vunpack.c.h.s8.bf16 %v2192
    %v2620 = vunpack.c.h.s8.bf16 %v2193
    %v2621 = vunpack.c.h.s8.bf16 %v2194
    %v2622 = vunpack.c.l.s8.bf16 %v2195
    %v2623 = vunpack.c.l.s8.bf16 %v2196
    %v2624 = vunpack.c.l.s8.bf16 %v2197
    %v2625 = vunpack.c.l.s8.bf16 %v2198
    %v2626 = vunpack.c.l.s8.bf16 %v2199
    %v2627 = vunpack.c.l.s8.bf16 %v2200
    %v2628 = vunpack.c.l.s8.bf16 %v2201
    %v2629 = vunpack.c.h.s8.bf16 %v2195
    %v2630 = vunpack.c.h.s8.bf16 %v2196
    %v2631 = vunpack.c.h.s8.bf16 %v2197
    %v2632 = vunpack.c.h.s8.bf16 %v2198
    %v2633 = vunpack.c.h.s8.bf16 %v2199
    %v2634 = vunpack.c.h.s8.bf16 %v2200
    %v2635 = vunpack.c.h.s8.bf16 %v2201
    %v2636 = vunpack.c.l.s8.bf16 %v2202
    %v2637 = vunpack.c.l.s8.bf16 %v2203
    %v2638 = vunpack.c.l.s8.bf16 %v2204
    %v2639 = vunpack.c.l.s8.bf16 %v2205
    %v2640 = vunpack.c.l.s8.bf16 %v2206
    %v2641 = vunpack.c.l.s8.bf16 %v2207
    %v2642 = vunpack.c.l.s8.bf16 %v2208
    %v2643 = vunpack.c.h.s8.bf16 %v2202
    %v2644 = vunpack.c.h.s8.bf16 %v2203
    %v2645 = vunpack.c.h.s8.bf16 %v2204
    %v2646 = vunpack.c.h.s8.bf16 %v2205
    %v2647 = vunpack.c.h.s8.bf16 %v2206
    %v2648 = vunpack.c.h.s8.bf16 %v2207
    %v2649 = vunpack.c.h.s8.bf16 %v2208
    %v2650 = vunpack.c.l.s8.bf16 %v2209
    %v2651 = vunpack.c.l.s8.bf16 %v2210
    %v2652 = vunpack.c.l.s8.bf16 %v2211
    %v2653 = vunpack.c.l.s8.bf16 %v2212
    %v2654 = vunpack.c.l.s8.bf16 %v2213
    %v2655 = vunpack.c.l.s8.bf16 %v2214
    %v2656 = vunpack.c.l.s8.bf16 %v2215
    %v2657 = vunpack.c.h.s8.bf16 %v2209
    %v2658 = vunpack.c.h.s8.bf16 %v2210
    %v2659 = vunpack.c.h.s8.bf16 %v2211
    %v2660 = vunpack.c.h.s8.bf16 %v2212
    %v2661 = vunpack.c.h.s8.bf16 %v2213
    %v2662 = vunpack.c.h.s8.bf16 %v2214
    %v2663 = vunpack.c.h.s8.bf16 %v2215
    %2664 = vmatprep.subr.bf16.mxu0 %v2217
    %2665 = vmatpush1.bf16.msra.mxu0 %v2216
    %2666 = vmatprep.subr.bf16.mxu0 %v2224
    %2667 = vmatpush1.bf16.msra.mxu0 %v2223
    %2668 = vmatprep.subr.bf16.mxu0 %v2231
    %2669 = vmatpush1.bf16.msra.mxu0 %v2230
    %2670 = vmatprep.subr.bf16.mxu0 %v2238
    %2671 = vmatpush1.bf16.msra.mxu0 %v2237
    %2672 = vmatprep.subr.bf16.mxu0 %v2245
    %2673 = vmatpush1.bf16.msra.mxu0 %v2244
    %2674 = vmatprep.subr.bf16.mxu0 %v2252
    %2675 = vmatpush1.bf16.msra.mxu0 %v2251
    %2676 = vmatprep.subr.bf16.mxu0 %v2259
    %2677 = vmatpush1.bf16.msra.mxu0 %v2258
    %2678 = vmatprep.subr.bf16.mxu0 %v2266
    %2679 = vmatpush1.bf16.msra.mxu0 %v2265
    %2680 = vmatprep.subr.bf16.mxu0 %v2273
    %2681 = vmatpush1.bf16.msra.mxu0 %v2272
    %2682 = vmatprep.subr.bf16.mxu0 %v2280
    %2683 = vmatpush1.bf16.msra.mxu0 %v2279
    %2684 = vmatprep.subr.bf16.mxu0 %v2287
    %2685 = vmatpush1.bf16.msra.mxu0 %v2286
    %2686 = vmatprep.subr.bf16.mxu0 %v2294
    %2687 = vmatpush1.bf16.msra.mxu0 %v2293
    %2688 = vmatprep.subr.bf16.mxu0 %v2301
    %2689 = vmatpush1.bf16.msra.mxu0 %v2300
    %2690 = vmatprep.subr.bf16.mxu0 %v2308
    %2691 = vmatpush1.bf16.msra.mxu0 %v2307
    %2692 = vmatprep.subr.bf16.mxu0 %v2315
    %2693 = vmatpush1.bf16.msra.mxu0 %v2314
    %2694 = vmatprep.subr.bf16.mxu0 %v2322
    %2695 = vmatpush1.bf16.msra.mxu0 %v2321
    %2696 = vmatprep.mubr.bf16.mxu0 %v1985
    %2697 = vmatmul.mubr.bf16.gmra.mrb[0].mxu0 %v1984
    %v2698 = vpop.f32.mrb[0].mxu0
    %v2699 = vadd.f32 0.0, %v2698
    %v2700 = vpop.f32.mrb[0].mxu0
    %v2701 = vadd.f32 0.0, %v2700
    %v2702 = vpop.f32.mrb[0].mxu0
    %v2703 = vpop.f32.mrb[0].mxu0
    %2704 = vdwg.mxu0
    %2705 = vmatprep.subr.bf16.mxu0 %v2329
    %2706 = vmatpush1.bf16.msra.mxu0 %v2328
    %2707 = vmatprep.subr.bf16.mxu0 %v2336
    %2708 = vmatpush1.bf16.msra.mxu0 %v2335
    %2709 = vmatprep.subr.bf16.mxu0 %v2343
    %2710 = vmatpush1.bf16.msra.mxu0 %v2342
    %2711 = vmatprep.subr.bf16.mxu0 %v2350
    %2712 = vmatpush1.bf16.msra.mxu0 %v2349
    %2713 = vmatprep.subr.bf16.mxu0 %v2357
    %2714 = vmatpush1.bf16.msra.mxu0 %v2356
    %2715 = vmatprep.subr.bf16.mxu0 %v2364
    %2716 = vmatpush1.bf16.msra.mxu0 %v2363
    %2717 = vmatprep.subr.bf16.mxu0 %v2371
    %2718 = vmatpush1.bf16.msra.mxu0 %v2370
    %2719 = vmatprep.subr.bf16.mxu0 %v2378
    %2720 = vmatpush1.bf16.msra.mxu0 %v2377
    %2721 = vmatprep.subr.bf16.mxu0 %v2385
    %2722 = vmatpush1.bf16.msra.mxu0 %v2384
    %2723 = vmatprep.subr.bf16.mxu0 %v2392
    %2724 = vmatpush1.bf16.msra.mxu0 %v2391
    %2725 = vmatprep.subr.bf16.mxu0 %v2399
    %2726 = vmatpush1.bf16.msra.mxu0 %v2398
    %2727 = vmatprep.subr.bf16.mxu0 %v2406
    %2728 = vmatpush1.bf16.msra.mxu0 %v2405
    %2729 = vmatprep.subr.bf16.mxu0 %v2413
    %2730 = vmatpush1.bf16.msra.mxu0 %v2412
    %2731 = vmatprep.subr.bf16.mxu0 %v2420
    %2732 = vmatpush1.bf16.msra.mxu0 %v2419
    %2733 = vmatprep.subr.bf16.mxu0 %v2427
    %2734 = vmatpush1.bf16.msra.mxu0 %v2426
    %2735 = vmatprep.subr.bf16.mxu0 %v2434
    %2736 = vmatpush1.bf16.msra.mxu0 %v2433
    %2737 = vmatprep.mubr.bf16.mxu0 %v1987
    %2738 = vmatmul.mubr.bf16.gmra.mrb[0].mxu0 %v1986
    %v2739 = vpop.f32.mrb[0].mxu0
    %v2740 = vadd.f32 %v2699, %v2739
    %v2741 = vpop.f32.mrb[0].mxu0
    %v2742 = vadd.f32 %v2701, %v2741
    %v2743 = vpop.f32.mrb[0].mxu0
    %v2744 = vpop.f32.mrb[0].mxu0
    %2745 = vdwg.mxu0
    %2746 = vmatprep.subr.bf16.mxu0 %v2441
    %2747 = vmatpush1.bf16.msra.mxu0 %v2440
    %2748 = vmatprep.subr.bf16.mxu0 %v2448
    %2749 = vmatpush1.bf16.msra.mxu0 %v2447
    %2750 = vmatprep.subr.bf16.mxu0 %v2455
    %2751 = vmatpush1.bf16.msra.mxu0 %v2454
    %2752 = vmatprep.subr.bf16.mxu0 %v2462
    %2753 = vmatpush1.bf16.msra.mxu0 %v2461
    %2754 = vmatprep.subr.bf16.mxu0 %v2469
    %2755 = vmatpush1.bf16.msra.mxu0 %v2468
    %2756 = vmatprep.subr.bf16.mxu0 %v2476
    %2757 = vmatpush1.bf16.msra.mxu0 %v2475
    %2758 = vmatprep.subr.bf16.mxu0 %v2483
    %2759 = vmatpush1.bf16.msra.mxu0 %v2482
    %2760 = vmatprep.subr.bf16.mxu0 %v2490
    %2761 = vmatpush1.bf16.msra.mxu0 %v2489
    %2762 = vmatprep.subr.bf16.mxu0 %v2497
    %2763 = vmatpush1.bf16.msra.mxu0 %v2496
    %2764 = vmatprep.subr.bf16.mxu0 %v2504
    %2765 = vmatpush1.bf16.msra.mxu0 %v2503
    %2766 = vmatprep.subr.bf16.mxu0 %v2511
    %2767 = vmatpush1.bf16.msra.mxu0 %v2510
    %2768 = vmatprep.subr.bf16.mxu0 %v2518
    %2769 = vmatpush1.bf16.msra.mxu0 %v2517
    %2770 = vmatprep.subr.bf16.mxu0 %v2525
    %2771 = vmatpush1.bf16.msra.mxu0 %v2524
    %2772 = vmatprep.subr.bf16.mxu0 %v2532
    %2773 = vmatpush1.bf16.msra.mxu0 %v2531
    %2774 = vmatprep.subr.bf16.mxu0 %v2539
    %2775 = vmatpush1.bf16.msra.mxu0 %v2538
    %2776 = vmatprep.subr.bf16.mxu0 %v2546
    %2777 = vmatpush1.bf16.msra.mxu0 %v2545
    %2778 = vmatprep.mubr.bf16.mxu0 %v1989
    %2779 = vmatmul.mubr.bf16.gmra.mrb[0].mxu0 %v1988
    %v2780 = vpop.f32.mrb[0].mxu0
    %v2781 = vadd.f32 %v2740, %v2780
    %v2782 = vpop.f32.mrb[0].mxu0
    %v2783 = vadd.f32 %v2742, %v2782
    %v2784 = vpop.f32.mrb[0].mxu0
    %v2785 = vpop.f32.mrb[0].mxu0
    %2786 = vdwg.mxu0
    %2787 = vmatprep.subr.bf16.mxu0 %v2553
    %2788 = vmatpush1.bf16.msra.mxu0 %v2552
    %2789 = vmatprep.subr.bf16.mxu0 %v2560
    %2790 = vmatpush1.bf16.msra.mxu0 %v2559
    %2791 = vmatprep.subr.bf16.mxu0 %v2567
    %2792 = vmatpush1.bf16.msra.mxu0 %v2566
    %2793 = vmatprep.subr.bf16.mxu0 %v2574
    %2794 = vmatpush1.bf16.msra.mxu0 %v2573
    %2795 = vmatprep.subr.bf16.mxu0 %v2581
    %2796 = vmatpush1.bf16.msra.mxu0 %v2580
    %2797 = vmatprep.subr.bf16.mxu0 %v2588
    %2798 = vmatpush1.bf16.msra.mxu0 %v2587
    %2799 = vmatprep.subr.bf16.mxu0 %v2595
    %2800 = vmatpush1.bf16.msra.mxu0 %v2594
    %2801 = vmatprep.subr.bf16.mxu0 %v2602
    %2802 = vmatpush1.bf16.msra.mxu0 %v2601
    %2803 = vmatprep.subr.bf16.mxu0 %v2609
    %2804 = vmatpush1.bf16.msra.mxu0 %v2608
    %2805 = vmatprep.subr.bf16.mxu0 %v2616
    %2806 = vmatpush1.bf16.msra.mxu0 %v2615
    %2807 = vmatprep.subr.bf16.mxu0 %v2623
    %2808 = vmatpush1.bf16.msra.mxu0 %v2622
    %2809 = vmatprep.subr.bf16.mxu0 %v2630
    %2810 = vmatpush1.bf16.msra.mxu0 %v2629
    %2811 = vmatprep.subr.bf16.mxu0 %v2637
    %2812 = vmatpush1.bf16.msra.mxu0 %v2636
    %2813 = vmatprep.subr.bf16.mxu0 %v2644
    %2814 = vmatpush1.bf16.msra.mxu0 %v2643
    %2815 = vmatprep.subr.bf16.mxu0 %v2651
    %2816 = vmatpush1.bf16.msra.mxu0 %v2650
    %2817 = vmatprep.subr.bf16.mxu0 %v2658
    %2818 = vmatpush1.bf16.msra.mxu0 %v2657
    %2819 = vmatprep.mubr.bf16.mxu0 %v1991
    %2820 = vmatmul.mubr.bf16.gmra.mrb[0].mxu0 %v1990
    %v2821 = vpop.f32.mrb[0].mxu0
    %v2822 = vadd.f32 %v2781, %v2821
    %v2823 = vpop.f32.mrb[0].mxu0
    %v2824 = vadd.f32 %v2783, %v2823
    %v2825 = vpop.f32.mrb[0].mxu0
    %v2826 = vpop.f32.mrb[0].mxu0
    %2827 = vdwg.mxu0
    %2828 = vmatprep.subr.bf16.mxu0 %v2219
    %2829 = vmatpush1.bf16.msra.mxu0 %v2218
    %2830 = vmatprep.subr.bf16.mxu0 %v2226
    %2831 = vmatpush1.bf16.msra.mxu0 %v2225
    %2832 = vmatprep.subr.bf16.mxu0 %v2233
    %2833 = vmatpush1.bf16.msra.mxu0 %v2232
    %2834 = vmatprep.subr.bf16.mxu0 %v2240
    %2835 = vmatpush1.bf16.msra.mxu0 %v2239
    %2836 = vmatprep.subr.bf16.mxu0 %v2247
    %2837 = vmatpush1.bf16.msra.mxu0 %v2246
    %2838 = vmatprep.subr.bf16.mxu0 %v2254
    %2839 = vmatpush1.bf16.msra.mxu0 %v2253
    %2840 = vmatprep.subr.bf16.mxu0 %v2261
    %2841 = vmatpush1.bf16.msra.mxu0 %v2260
    %2842 = vmatprep.subr.bf16.mxu0 %v2268
    %2843 = vmatpush1.bf16.msra.mxu0 %v2267
    %2844 = vmatprep.subr.bf16.mxu0 %v2275
    %2845 = vmatpush1.bf16.msra.mxu0 %v2274
    %2846 = vmatprep.subr.bf16.mxu0 %v2282
    %2847 = vmatpush1.bf16.msra.mxu0 %v2281
    %2848 = vmatprep.subr.bf16.mxu0 %v2289
    %2849 = vmatpush1.bf16.msra.mxu0 %v2288
    %2850 = vmatprep.subr.bf16.mxu0 %v2296
    %2851 = vmatpush1.bf16.msra.mxu0 %v2295
    %2852 = vmatprep.subr.bf16.mxu0 %v2303
    %2853 = vmatpush1.bf16.msra.mxu0 %v2302
    %2854 = vmatprep.subr.bf16.mxu0 %v2310
    %2855 = vmatpush1.bf16.msra.mxu0 %v2309
    %2856 = vmatprep.subr.bf16.mxu0 %v2317
    %2857 = vmatpush1.bf16.msra.mxu0 %v2316
    %2858 = vmatprep.subr.bf16.mxu0 %v2324
    %2859 = vmatpush1.bf16.msra.mxu0 %v2323
    %2860 = vmatprep.mubr.bf16.mxu0 %v1985
    %2861 = vmatmul.mubr.bf16.gmra.mrb[0].mxu0 %v1984
    %v2862 = vpop.f32.mrb[0].mxu0
    %v2863 = vadd.f32 0.0, %v2862
    %v2864 = vpop.f32.mrb[0].mxu0
    %v2865 = vadd.f32 0.0, %v2864
    %v2866 = vpop.f32.mrb[0].mxu0
    %v2867 = vpop.f32.mrb[0].mxu0
    %2868 = vdwg.mxu0
    %2869 = vmatprep.subr.bf16.mxu0 %v2331
    %2870 = vmatpush1.bf16.msra.mxu0 %v2330
    %2871 = vmatprep.subr.bf16.mxu0 %v2338
    %2872 = vmatpush1.bf16.msra.mxu0 %v2337
    %2873 = vmatprep.subr.bf16.mxu0 %v2345
    %2874 = vmatpush1.bf16.msra.mxu0 %v2344
    %2875 = vmatprep.subr.bf16.mxu0 %v2352
    %2876 = vmatpush1.bf16.msra.mxu0 %v2351
    %2877 = vmatprep.subr.bf16.mxu0 %v2359
    %2878 = vmatpush1.bf16.msra.mxu0 %v2358
    %2879 = vmatprep.subr.bf16.mxu0 %v2366
    %2880 = vmatpush1.bf16.msra.mxu0 %v2365
    %2881 = vmatprep.subr.bf16.mxu0 %v2373
    %2882 = vmatpush1.bf16.msra.mxu0 %v2372
    %2883 = vmatprep.subr.bf16.mxu0 %v2380
    %2884 = vmatpush1.bf16.msra.mxu0 %v2379
    %2885 = vmatprep.subr.bf16.mxu0 %v2387
    %2886 = vmatpush1.bf16.msra.mxu0 %v2386
    %2887 = vmatprep.subr.bf16.mxu0 %v2394
    %2888 = vmatpush1.bf16.msra.mxu0 %v2393
    %2889 = vmatprep.subr.bf16.mxu0 %v2401
    %2890 = vmatpush1.bf16.msra.mxu0 %v2400
    %2891 = vmatprep.subr.bf16.mxu0 %v2408
    %2892 = vmatpush1.bf16.msra.mxu0 %v2407
    %2893 = vmatprep.subr.bf16.mxu0 %v2415
    %2894 = vmatpush1.bf16.msra.mxu0 %v2414
    %2895 = vmatprep.subr.bf16.mxu0 %v2422
    %2896 = vmatpush1.bf16.msra.mxu0 %v2421
    %2897 = vmatprep.subr.bf16.mxu0 %v2429
    %2898 = vmatpush1.bf16.msra.mxu0 %v2428
    %2899 = vmatprep.subr.bf16.mxu0 %v2436
    %2900 = vmatpush1.bf16.msra.mxu0 %v2435
    %2901 = vmatprep.mubr.bf16.mxu0 %v1987
    %2902 = vmatmul.mubr.bf16.gmra.mrb[0].mxu0 %v1986
    %v2903 = vpop.f32.mrb[0].mxu0
    %v2904 = vadd.f32 %v2863, %v2903
    %v2905 = vpop.f32.mrb[0].mxu0
    %v2906 = vadd.f32 %v2865, %v2905
    %v2907 = vpop.f32.mrb[0].mxu0
    %v2908 = vpop.f32.mrb[0].mxu0
    %2909 = vdwg.mxu0
    %2910 = vmatprep.subr.bf16.mxu0 %v2443
    %2911 = vmatpush1.bf16.msra.mxu0 %v2442
    %2912 = vmatprep.subr.bf16.mxu0 %v2450
    %2913 = vmatpush1.bf16.msra.mxu0 %v2449
    %2914 = vmatprep.subr.bf16.mxu0 %v2457
    %2915 = vmatpush1.bf16.msra.mxu0 %v2456
    %2916 = vmatprep.subr.bf16.mxu0 %v2464
    %2917 = vmatpush1.bf16.msra.mxu0 %v2463
    %2918 = vmatprep.subr.bf16.mxu0 %v2471
    %2919 = vmatpush1.bf16.msra.mxu0 %v2470
    %2920 = vmatprep.subr.bf16.mxu0 %v2478
    %2921 = vmatpush1.bf16.msra.mxu0 %v2477
    %2922 = vmatprep.subr.bf16.mxu0 %v2485
    %2923 = vmatpush1.bf16.msra.mxu0 %v2484
    %2924 = vmatprep.subr.bf16.mxu0 %v2492
    %2925 = vmatpush1.bf16.msra.mxu0 %v2491
    %2926 = vmatprep.subr.bf16.mxu0 %v2499
    %2927 = vmatpush1.bf16.msra.mxu0 %v2498
    %2928 = vmatprep.subr.bf16.mxu0 %v2506
    %2929 = vmatpush1.bf16.msra.mxu0 %v2505
    %2930 = vmatprep.subr.bf16.mxu0 %v2513
    %2931 = vmatpush1.bf16.msra.mxu0 %v2512
    %2932 = vmatprep.subr.bf16.mxu0 %v2520
    %2933 = vmatpush1.bf16.msra.mxu0 %v2519
    %2934 = vmatprep.subr.bf16.mxu0 %v2527
    %2935 = vmatpush1.bf16.msra.mxu0 %v2526
    %2936 = vmatprep.subr.bf16.mxu0 %v2534
    %2937 = vmatpush1.bf16.msra.mxu0 %v2533
    %2938 = vmatprep.subr.bf16.mxu0 %v2541
    %2939 = vmatpush1.bf16.msra.mxu0 %v2540
    %2940 = vmatprep.subr.bf16.mxu0 %v2548
    %2941 = vmatpush1.bf16.msra.mxu0 %v2547
    %2942 = vmatprep.mubr.bf16.mxu0 %v1989
    %2943 = vmatmul.mubr.bf16.gmra.mrb[0].mxu0 %v1988
    %v2944 = vpop.f32.mrb[0].mxu0
    %v2945 = vadd.f32 %v2904, %v2944
    %v2946 = vpop.f32.mrb[0].mxu0
    %v2947 = vadd.f32 %v2906, %v2946
    %v2948 = vpop.f32.mrb[0].mxu0
    %v2949 = vpop.f32.mrb[0].mxu0
    %2950 = vdwg.mxu0
    %2951 = vmatprep.subr.bf16.mxu0 %v2555
    %2952 = vmatpush1.bf16.msra.mxu0 %v2554
    %2953 = vmatprep.subr.bf16.mxu0 %v2562
    %2954 = vmatpush1.bf16.msra.mxu0 %v2561
    %2955 = vmatprep.subr.bf16.mxu0 %v2569
    %2956 = vmatpush1.bf16.msra.mxu0 %v2568
    %2957 = vmatprep.subr.bf16.mxu0 %v2576
    %2958 = vmatpush1.bf16.msra.mxu0 %v2575
    %2959 = vmatprep.subr.bf16.mxu0 %v2583
    %2960 = vmatpush1.bf16.msra.mxu0 %v2582
    %2961 = vmatprep.subr.bf16.mxu0 %v2590
    %2962 = vmatpush1.bf16.msra.mxu0 %v2589
    %2963 = vmatprep.subr.bf16.mxu0 %v2597
    %2964 = vmatpush1.bf16.msra.mxu0 %v2596
    %2965 = vmatprep.subr.bf16.mxu0 %v2604
    %2966 = vmatpush1.bf16.msra.mxu0 %v2603
    %2967 = vmatprep.subr.bf16.mxu0 %v2611
    %2968 = vmatpush1.bf16.msra.mxu0 %v2610
    %2969 = vmatprep.subr.bf16.mxu0 %v2618
    %2970 = vmatpush1.bf16.msra.mxu0 %v2617
    %2971 = vmatprep.subr.bf16.mxu0 %v2625
    %2972 = vmatpush1.bf16.msra.mxu0 %v2624
    %2973 = vmatprep.subr.bf16.mxu0 %v2632
    %2974 = vmatpush1.bf16.msra.mxu0 %v2631
    %2975 = vmatprep.subr.bf16.mxu0 %v2639
    %2976 = vmatpush1.bf16.msra.mxu0 %v2638
    %2977 = vmatprep.subr.bf16.mxu0 %v2646
    %2978 = vmatpush1.bf16.msra.mxu0 %v2645
    %2979 = vmatprep.subr.bf16.mxu0 %v2653
    %2980 = vmatpush1.bf16.msra.mxu0 %v2652
    %2981 = vmatprep.subr.bf16.mxu0 %v2660
    %2982 = vmatpush1.bf16.msra.mxu0 %v2659
    %2983 = vmatprep.mubr.bf16.mxu0 %v1991
    %2984 = vmatmul.mubr.bf16.gmra.mrb[0].mxu0 %v1990
    %v2985 = vpop.f32.mrb[0].mxu0
    %v2986 = vadd.f32 %v2945, %v2985
    %v2987 = vpop.f32.mrb[0].mxu0
    %v2988 = vadd.f32 %v2947, %v2987
    %v2989 = vpop.f32.mrb[0].mxu0
    %v2990 = vpop.f32.mrb[0].mxu0
    %2991 = vdwg.mxu0
    %2992 = vmatprep.subr.bf16.mxu0 %v2221
    %2993 = vmatpush1.bf16.msra.mxu0 %v2220
    %2994 = vmatprep.subr.bf16.mxu0 %v2228
    %2995 = vmatpush1.bf16.msra.mxu0 %v2227
    %2996 = vmatprep.subr.bf16.mxu0 %v2235
    %2997 = vmatpush1.bf16.msra.mxu0 %v2234
    %2998 = vmatprep.subr.bf16.mxu0 %v2242
    %2999 = vmatpush1.bf16.msra.mxu0 %v2241
    %3000 = vmatprep.subr.bf16.mxu0 %v2249
    %3001 = vmatpush1.bf16.msra.mxu0 %v2248
    %3002 = vmatprep.subr.bf16.mxu0 %v2256
    %3003 = vmatpush1.bf16.msra.mxu0 %v2255
    %3004 = vmatprep.subr.bf16.mxu0 %v2263
    %3005 = vmatpush1.bf16.msra.mxu0 %v2262
    %3006 = vmatprep.subr.bf16.mxu0 %v2270
    %3007 = vmatpush1.bf16.msra.mxu0 %v2269
    %3008 = vmatprep.subr.bf16.mxu0 %v2277
    %3009 = vmatpush1.bf16.msra.mxu0 %v2276
    %3010 = vmatprep.subr.bf16.mxu0 %v2284
    %3011 = vmatpush1.bf16.msra.mxu0 %v2283
    %3012 = vmatprep.subr.bf16.mxu0 %v2291
    %3013 = vmatpush1.bf16.msra.mxu0 %v2290
    %3014 = vmatprep.subr.bf16.mxu0 %v2298
    %3015 = vmatpush1.bf16.msra.mxu0 %v2297
    %3016 = vmatprep.subr.bf16.mxu0 %v2305
    %3017 = vmatpush1.bf16.msra.mxu0 %v2304
    %3018 = vmatprep.subr.bf16.mxu0 %v2312
    %3019 = vmatpush1.bf16.msra.mxu0 %v2311
    %3020 = vmatprep.subr.bf16.mxu0 %v2319
    %3021 = vmatpush1.bf16.msra.mxu0 %v2318
    %3022 = vmatprep.subr.bf16.mxu0 %v2326
    %3023 = vmatpush1.bf16.msra.mxu0 %v2325
    %3024 = vmatprep.mubr.bf16.mxu0 %v1985
    %3025 = vmatmul.mubr.bf16.gmra.mrb[0].mxu0 %v1984
    %v3026 = vpop.f32.mrb[0].mxu0
    %v3027 = vadd.f32 0.0, %v3026
    %v3028 = vpop.f32.mrb[0].mxu0
    %v3029 = vadd.f32 0.0, %v3028
    %v3030 = vpop.f32.mrb[0].mxu0
    %v3031 = vpop.f32.mrb[0].mxu0
    %3032 = vdwg.mxu0
    %3033 = vmatprep.subr.bf16.mxu0 %v2333
    %3034 = vmatpush1.bf16.msra.mxu0 %v2332
    %3035 = vmatprep.subr.bf16.mxu0 %v2340
    %3036 = vmatpush1.bf16.msra.mxu0 %v2339
    %3037 = vmatprep.subr.bf16.mxu0 %v2347
    %3038 = vmatpush1.bf16.msra.mxu0 %v2346
    %3039 = vmatprep.subr.bf16.mxu0 %v2354
    %3040 = vmatpush1.bf16.msra.mxu0 %v2353
    %3041 = vmatprep.subr.bf16.mxu0 %v2361
    %3042 = vmatpush1.bf16.msra.mxu0 %v2360
    %3043 = vmatprep.subr.bf16.mxu0 %v2368
    %3044 = vmatpush1.bf16.msra.mxu0 %v2367
    %3045 = vmatprep.subr.bf16.mxu0 %v2375
    %3046 = vmatpush1.bf16.msra.mxu0 %v2374
    %3047 = vmatprep.subr.bf16.mxu0 %v2382
    %3048 = vmatpush1.bf16.msra.mxu0 %v2381
    %3049 = vmatprep.subr.bf16.mxu0 %v2389
    %3050 = vmatpush1.bf16.msra.mxu0 %v2388
    %3051 = vmatprep.subr.bf16.mxu0 %v2396
    %3052 = vmatpush1.bf16.msra.mxu0 %v2395
    %3053 = vmatprep.subr.bf16.mxu0 %v2403
    %3054 = vmatpush1.bf16.msra.mxu0 %v2402
    %3055 = vmatprep.subr.bf16.mxu0 %v2410
    %3056 = vmatpush1.bf16.msra.mxu0 %v2409
    %3057 = vmatprep.subr.bf16.mxu0 %v2417
    %3058 = vmatpush1.bf16.msra.mxu0 %v2416
    %3059 = vmatprep.subr.bf16.mxu0 %v2424
    %3060 = vmatpush1.bf16.msra.mxu0 %v2423
    %3061 = vmatprep.subr.bf16.mxu0 %v2431
    %3062 = vmatpush1.bf16.msra.mxu0 %v2430
    %3063 = vmatprep.subr.bf16.mxu0 %v2438
    %3064 = vmatpush1.bf16.msra.mxu0 %v2437
    %3065 = vmatprep.mubr.bf16.mxu0 %v1987
    %3066 = vmatmul.mubr.bf16.gmra.mrb[0].mxu0 %v1986
    %v3067 = vpop.f32.mrb[0].mxu0
    %v3068 = vadd.f32 %v3027, %v3067
    %v3069 = vpop.f32.mrb[0].mxu0
    %v3070 = vadd.f32 %v3029, %v3069
    %v3071 = vpop.f32.mrb[0].mxu0
    %v3072 = vpop.f32.mrb[0].mxu0
    %3073 = vdwg.mxu0
    %3074 = vmatprep.subr.bf16.mxu0 %v2445
    %3075 = vmatpush1.bf16.msra.mxu0 %v2444
    %3076 = vmatprep.subr.bf16.mxu0 %v2452
    %3077 = vmatpush1.bf16.msra.mxu0 %v2451
    %3078 = vmatprep.subr.bf16.mxu0 %v2459
    %3079 = vmatpush1.bf16.msra.mxu0 %v2458
    %3080 = vmatprep.subr.bf16.mxu0 %v2466
    %3081 = vmatpush1.bf16.msra.mxu0 %v2465
    %3082 = vmatprep.subr.bf16.mxu0 %v2473
    %3083 = vmatpush1.bf16.msra.mxu0 %v2472
    %3084 = vmatprep.subr.bf16.mxu0 %v2480
    %3085 = vmatpush1.bf16.msra.mxu0 %v2479
    %3086 = vmatprep.subr.bf16.mxu0 %v2487
    %3087 = vmatpush1.bf16.msra.mxu0 %v2486
    %3088 = vmatprep.subr.bf16.mxu0 %v2494
    %3089 = vmatpush1.bf16.msra.mxu0 %v2493
    %3090 = vmatprep.subr.bf16.mxu0 %v2501
    %3091 = vmatpush1.bf16.msra.mxu0 %v2500
    %3092 = vmatprep.subr.bf16.mxu0 %v2508
    %3093 = vmatpush1.bf16.msra.mxu0 %v2507
    %3094 = vmatprep.subr.bf16.mxu0 %v2515
    %3095 = vmatpush1.bf16.msra.mxu0 %v2514
    %3096 = vmatprep.subr.bf16.mxu0 %v2522
    %3097 = vmatpush1.bf16.msra.mxu0 %v2521
    %3098 = vmatprep.subr.bf16.mxu0 %v2529
    %3099 = vmatpush1.bf16.msra.mxu0 %v2528
    %3100 = vmatprep.subr.bf16.mxu0 %v2536
    %3101 = vmatpush1.bf16.msra.mxu0 %v2535
    %3102 = vmatprep.subr.bf16.mxu0 %v2543
    %3103 = vmatpush1.bf16.msra.mxu0 %v2542
    %3104 = vmatprep.subr.bf16.mxu0 %v2550
    %3105 = vmatpush1.bf16.msra.mxu0 %v2549
    %3106 = vmatprep.mubr.bf16.mxu0 %v1989
    %3107 = vmatmul.mubr.bf16.gmra.mrb[0].mxu0 %v1988
    %v3108 = vpop.f32.mrb[0].mxu0
    %v3109 = vadd.f32 %v3068, %v3108
    %v3110 = vpop.f32.mrb[0].mxu0
    %v3111 = vadd.f32 %v3070, %v3110
    %v3112 = vpop.f32.mrb[0].mxu0
    %v3113 = vpop.f32.mrb[0].mxu0
    %3114 = vdwg.mxu0
    %3115 = vmatprep.subr.bf16.mxu0 %v2557
    %3116 = vmatpush1.bf16.msra.mxu0 %v2556
    %3117 = vmatprep.subr.bf16.mxu0 %v2564
    %3118 = vmatpush1.bf16.msra.mxu0 %v2563
    %3119 = vmatprep.subr.bf16.mxu0 %v2571
    %3120 = vmatpush1.bf16.msra.mxu0 %v2570
    %3121 = vmatprep.subr.bf16.mxu0 %v2578
    %3122 = vmatpush1.bf16.msra.mxu0 %v2577
    %3123 = vmatprep.subr.bf16.mxu0 %v2585
    %3124 = vmatpush1.bf16.msra.mxu0 %v2584
    %3125 = vmatprep.subr.bf16.mxu0 %v2592
    %3126 = vmatpush1.bf16.msra.mxu0 %v2591
    %3127 = vmatprep.subr.bf16.mxu0 %v2599
    %3128 = vmatpush1.bf16.msra.mxu0 %v2598
    %3129 = vmatprep.subr.bf16.mxu0 %v2606
    %3130 = vmatpush1.bf16.msra.mxu0 %v2605
    %3131 = vmatprep.subr.bf16.mxu0 %v2613
    %3132 = vmatpush1.bf16.msra.mxu0 %v2612
    %3133 = vmatprep.subr.bf16.mxu0 %v2620
    %3134 = vmatpush1.bf16.msra.mxu0 %v2619
    %3135 = vmatprep.subr.bf16.mxu0 %v2627
    %3136 = vmatpush1.bf16.msra.mxu0 %v2626
    %3137 = vmatprep.subr.bf16.mxu0 %v2634
    %3138 = vmatpush1.bf16.msra.mxu0 %v2633
    %3139 = vmatprep.subr.bf16.mxu0 %v2641
    %3140 = vmatpush1.bf16.msra.mxu0 %v2640
    %3141 = vmatprep.subr.bf16.mxu0 %v2648
    %3142 = vmatpush1.bf16.msra.mxu0 %v2647
    %3143 = vmatprep.subr.bf16.mxu0 %v2655
    %3144 = vmatpush1.bf16.msra.mxu0 %v2654
    %3145 = vmatprep.subr.bf16.mxu0 %v2662
    %3146 = vmatpush1.bf16.msra.mxu0 %v2661
    %3147 = vmatprep.mubr.bf16.mxu0 %v1991
    %3148 = vmatmul.mubr.bf16.gmra.mrb[0].mxu0 %v1990
    %v3149 = vpop.f32.mrb[0].mxu0
    %v3150 = vadd.f32 %v3109, %v3149
    %v3151 = vpop.f32.mrb[0].mxu0
    %v3152 = vadd.f32 %v3111, %v3151
    %v3153 = vpop.f32.mrb[0].mxu0
    %v3154 = vpop.f32.mrb[0].mxu0
    %3155 = vdwg.mxu0
    %3156 = vmatprep.subr.bf16.mxu0 0
    %3157 = vmatpush1.bf16.msra.mxu0 %v2222
    %3158 = vmatprep.subr.bf16.mxu0 0
    %3159 = vmatpush1.bf16.msra.mxu0 %v2229
    %3160 = vmatprep.subr.bf16.mxu0 0
    %3161 = vmatpush1.bf16.msra.mxu0 %v2236
    %3162 = vmatprep.subr.bf16.mxu0 0
    %3163 = vmatpush1.bf16.msra.mxu0 %v2243
    %3164 = vmatprep.subr.bf16.mxu0 0
    %3165 = vmatpush1.bf16.msra.mxu0 %v2250
    %3166 = vmatprep.subr.bf16.mxu0 0
    %3167 = vmatpush1.bf16.msra.mxu0 %v2257
    %3168 = vmatprep.subr.bf16.mxu0 0
    %3169 = vmatpush1.bf16.msra.mxu0 %v2264
    %3170 = vmatprep.subr.bf16.mxu0 0
    %3171 = vmatpush1.bf16.msra.mxu0 %v2271
    %3172 = vmatprep.subr.bf16.mxu0 0
    %3173 = vmatpush1.bf16.msra.mxu0 %v2278
    %3174 = vmatprep.subr.bf16.mxu0 0
    %3175 = vmatpush1.bf16.msra.mxu0 %v2285
    %3176 = vmatprep.subr.bf16.mxu0 0
    %3177 = vmatpush1.bf16.msra.mxu0 %v2292
    %3178 = vmatprep.subr.bf16.mxu0 0
    %3179 = vmatpush1.bf16.msra.mxu0 %v2299
    %3180 = vmatprep.subr.bf16.mxu0 0
    %3181 = vmatpush1.bf16.msra.mxu0 %v2306
    %3182 = vmatprep.subr.bf16.mxu0 0
    %3183 = vmatpush1.bf16.msra.mxu0 %v2313
    %3184 = vmatprep.subr.bf16.mxu0 0
    %3185 = vmatpush1.bf16.msra.mxu0 %v2320
    %3186 = vmatprep.subr.bf16.mxu0 0
    %3187 = vmatpush1.bf16.msra.mxu0 %v2327
    %3188 = vmatprep.mubr.bf16.mxu0 %v1985
    %3189 = vmatmul.mubr.bf16.gmra.mrb[0].mxu0 %v1984
    %v3190 = vpop.f32.mrb[0].mxu0
    %v3191 = vadd.f32 0.0, %v3190
    %v3192 = vpop.f32.mrb[0].mxu0
    %v3193 = vpop.f32.mrb[0].mxu0
    %v3194 = vpop.f32.mrb[0].mxu0
    %3195 = vdwg.mxu0
    %3196 = vmatprep.subr.bf16.mxu0 0
    %3197 = vmatpush1.bf16.msra.mxu0 %v2334
    %3198 = vmatprep.subr.bf16.mxu0 0
    %3199 = vmatpush1.bf16.msra.mxu0 %v2341
    %3200 = vmatprep.subr.bf16.mxu0 0
    %3201 = vmatpush1.bf16.msra.mxu0 %v2348
    %3202 = vmatprep.subr.bf16.mxu0 0
    %3203 = vmatpush1.bf16.msra.mxu0 %v2355
    %3204 = vmatprep.subr.bf16.mxu0 0
    %3205 = vmatpush1.bf16.msra.mxu0 %v2362
    %3206 = vmatprep.subr.bf16.mxu0 0
    %3207 = vmatpush1.bf16.msra.mxu0 %v2369
    %3208 = vmatprep.subr.bf16.mxu0 0
    %3209 = vmatpush1.bf16.msra.mxu0 %v2376
    %3210 = vmatprep.subr.bf16.mxu0 0
    %3211 = vmatpush1.bf16.msra.mxu0 %v2383
    %3212 = vmatprep.subr.bf16.mxu0 0
    %3213 = vmatpush1.bf16.msra.mxu0 %v2390
    %3214 = vmatprep.subr.bf16.mxu0 0
    %3215 = vmatpush1.bf16.msra.mxu0 %v2397
    %3216 = vmatprep.subr.bf16.mxu0 0
    %3217 = vmatpush1.bf16.msra.mxu0 %v2404
    %3218 = vmatprep.subr.bf16.mxu0 0
    %3219 = vmatpush1.bf16.msra.mxu0 %v2411
    %3220 = vmatprep.subr.bf16.mxu0 0
    %3221 = vmatpush1.bf16.msra.mxu0 %v2418
    %3222 = vmatprep.subr.bf16.mxu0 0
    %3223 = vmatpush1.bf16.msra.mxu0 %v2425
    %3224 = vmatprep.subr.bf16.mxu0 0
    %3225 = vmatpush1.bf16.msra.mxu0 %v2432
    %3226 = vmatprep.subr.bf16.mxu0 0
    %3227 = vmatpush1.bf16.msra.mxu0 %v2439
    %3228 = vmatprep.mubr.bf16.mxu0 %v1987
    %3229 = vmatmul.mubr.bf16.gmra.mrb[0].mxu0 %v1986
    %v3230 = vpop.f32.mrb[0].mxu0
    %v3231 = vadd.f32 %v3191, %v3230
    %v3232 = vpop.f32.mrb[0].mxu0
    %v3233 = vpop.f32.mrb[0].mxu0
    %v3234 = vpop.f32.mrb[0].mxu0
    %3235 = vdwg.mxu0
    %3236 = vmatprep.subr.bf16.mxu0 0
    %3237 = vmatpush1.bf16.msra.mxu0 %v2446
    %3238 = vmatprep.subr.bf16.mxu0 0
    %3239 = vmatpush1.bf16.msra.mxu0 %v2453
    %3240 = vmatprep.subr.bf16.mxu0 0
    %3241 = vmatpush1.bf16.msra.mxu0 %v2460
    %3242 = vmatprep.subr.bf16.mxu0 0
    %3243 = vmatpush1.bf16.msra.mxu0 %v2467
    %3244 = vmatprep.subr.bf16.mxu0 0
    %3245 = vmatpush1.bf16.msra.mxu0 %v2474
    %3246 = vmatprep.subr.bf16.mxu0 0
    %3247 = vmatpush1.bf16.msra.mxu0 %v2481
    %3248 = vmatprep.subr.bf16.mxu0 0
    %3249 = vmatpush1.bf16.msra.mxu0 %v2488
    %3250 = vmatprep.subr.bf16.mxu0 0
    %3251 = vmatpush1.bf16.msra.mxu0 %v2495
    %3252 = vmatprep.subr.bf16.mxu0 0
    %3253 = vmatpush1.bf16.msra.mxu0 %v2502
    %3254 = vmatprep.subr.bf16.mxu0 0
    %3255 = vmatpush1.bf16.msra.mxu0 %v2509
    %3256 = vmatprep.subr.bf16.mxu0 0
    %3257 = vmatpush1.bf16.msra.mxu0 %v2516
    %3258 = vmatprep.subr.bf16.mxu0 0
    %3259 = vmatpush1.bf16.msra.mxu0 %v2523
    %3260 = vmatprep.subr.bf16.mxu0 0
    %3261 = vmatpush1.bf16.msra.mxu0 %v2530
    %3262 = vmatprep.subr.bf16.mxu0 0
    %3263 = vmatpush1.bf16.msra.mxu0 %v2537
    %3264 = vmatprep.subr.bf16.mxu0 0
    %3265 = vmatpush1.bf16.msra.mxu0 %v2544
    %3266 = vmatprep.subr.bf16.mxu0 0
    %3267 = vmatpush1.bf16.msra.mxu0 %v2551
    %3268 = vmatprep.mubr.bf16.mxu0 %v1989
    %3269 = vmatmul.mubr.bf16.gmra.mrb[0].mxu0 %v1988
    %v3270 = vpop.f32.mrb[0].mxu0
    %v3271 = vadd.f32 %v3231, %v3270
    %v3272 = vpop.f32.mrb[0].mxu0
    %v3273 = vpop.f32.mrb[0].mxu0
    %v3274 = vpop.f32.mrb[0].mxu0
    %3275 = vdwg.mxu0
    %3276 = vmatprep.subr.bf16.mxu0 0
    %3277 = vmatpush1.bf16.msra.mxu0 %v2558
    %3278 = vmatprep.subr.bf16.mxu0 0
    %3279 = vmatpush1.bf16.msra.mxu0 %v2565
    %3280 = vmatprep.subr.bf16.mxu0 0
    %3281 = vmatpush1.bf16.msra.mxu0 %v2572
    %3282 = vmatprep.subr.bf16.mxu0 0
    %3283 = vmatpush1.bf16.msra.mxu0 %v2579
    %3284 = vmatprep.subr.bf16.mxu0 0
    %3285 = vmatpush1.bf16.msra.mxu0 %v2586
    %3286 = vmatprep.subr.bf16.mxu0 0
    %3287 = vmatpush1.bf16.msra.mxu0 %v2593
    %3288 = vmatprep.subr.bf16.mxu0 0
    %3289 = vmatpush1.bf16.msra.mxu0 %v2600
    %3290 = vmatprep.subr.bf16.mxu0 0
    %3291 = vmatpush1.bf16.msra.mxu0 %v2607
    %3292 = vmatprep.subr.bf16.mxu0 0
    %3293 = vmatpush1.bf16.msra.mxu0 %v2614
    %3294 = vmatprep.subr.bf16.mxu0 0
    %3295 = vmatpush1.bf16.msra.mxu0 %v2621
    %3296 = vmatprep.subr.bf16.mxu0 0
    %3297 = vmatpush1.bf16.msra.mxu0 %v2628
    %3298 = vmatprep.subr.bf16.mxu0 0
    %3299 = vmatpush1.bf16.msra.mxu0 %v2635
    %3300 = vmatprep.subr.bf16.mxu0 0
    %3301 = vmatpush1.bf16.msra.mxu0 %v2642
    %3302 = vmatprep.subr.bf16.mxu0 0
    %3303 = vmatpush1.bf16.msra.mxu0 %v2649
    %3304 = vmatprep.subr.bf16.mxu0 0
    %3305 = vmatpush1.bf16.msra.mxu0 %v2656
    %3306 = vmatprep.subr.bf16.mxu0 0
    %3307 = vmatpush1.bf16.msra.mxu0 %v2663
    %3308 = vmatprep.mubr.bf16.mxu0 %v1991
    %3309 = vmatmul.mubr.bf16.gmra.mrb[0].mxu0 %v1990
    %v3310 = vpop.f32.mrb[0].mxu0
    %v3311 = vadd.f32 %v3271, %v3310
    %v3312 = vpop.f32.mrb[0].mxu0
    %v3313 = vpop.f32.mrb[0].mxu0
    %v3314 = vpop.f32.mrb[0].mxu0
    %3315 = vdwg.mxu0
    %v3316 = vld [vmem:[%s8] sm:$0xff]
    %v3318 = vlaneseq
    %v3319 = vshrl.u32 %v3318, 7
    %v3320 = vsub.s32 0, %v3319
    %v3321 = vrot.slane %v3316, %v3320
    %v3322 = vlaneseq
    %v3323 = vshrl.u32 %v3322, 7
    %v3324 = vsub.s32 1, %v3323
    %v3325 = vrot.slane %v3316, %v3324
    %v3326 = vlaneseq
    %v3327 = vshrl.u32 %v3326, 7
    %v3328 = vsub.s32 2, %v3327
    %v3329 = vrot.slane %v3316, %v3328
    %v3330 = vlaneseq
    %v3331 = vshrl.u32 %v3330, 7
    %v3332 = vsub.s32 3, %v3331
    %v3333 = vrot.slane %v3316, %v3332
    %v3334 = vlaneseq
    %v3335 = vshrl.u32 %v3334, 7
    %v3336 = vsub.s32 4, %v3335
    %v3337 = vrot.slane %v3316, %v3336
    %v3338 = vlaneseq
    %v3339 = vshrl.u32 %v3338, 7
    %v3340 = vsub.s32 5, %v3339
    %v3341 = vrot.slane %v3316, %v3340
    %v3342 = vlaneseq
    %v3343 = vshrl.u32 %v3342, 7
    %v3344 = vsub.s32 6, %v3343
    %v3345 = vrot.slane %v3316, %v3344
    %v3353 = vmul.f32 %v2822, %v3321
    %v3354 = vmul.f32 %v2824, %v3325
    %v3355 = vmul.f32 %v2986, %v3329
    %v3356 = vmul.f32 %v2988, %v3333
    %v3357 = vmul.f32 %v3150, %v3337
    %v3358 = vmul.f32 %v3152, %v3341
    %v3359 = vmul.f32 %v3311, %v3345
    %v3360 = vld [vmem:[%s9] sm:$0xff]
    %v3362 = vlaneseq
    %v3363 = vshrl.u32 %v3362, 7
    %v3364 = vsub.s32 0, %v3363
    %v3365 = vrot.slane %v3360, %v3364
    %v3366 = vlaneseq
    %v3367 = vshrl.u32 %v3366, 7
    %v3368 = vsub.s32 1, %v3367
    %v3369 = vrot.slane %v3360, %v3368
    %v3370 = vlaneseq
    %v3371 = vshrl.u32 %v3370, 7
    %v3372 = vsub.s32 2, %v3371
    %v3373 = vrot.slane %v3360, %v3372
    %v3374 = vlaneseq
    %v3375 = vshrl.u32 %v3374, 7
    %v3376 = vsub.s32 3, %v3375
    %v3377 = vrot.slane %v3360, %v3376
    %v3378 = vlaneseq
    %v3379 = vshrl.u32 %v3378, 7
    %v3380 = vsub.s32 4, %v3379
    %v3381 = vrot.slane %v3360, %v3380
    %v3382 = vlaneseq
    %v3383 = vshrl.u32 %v3382, 7
    %v3384 = vsub.s32 5, %v3383
    %v3385 = vrot.slane %v3360, %v3384
    %v3386 = vlaneseq
    %v3387 = vshrl.u32 %v3386, 7
    %v3388 = vsub.s32 6, %v3387
    %v3389 = vrot.slane %v3360, %v3388
    %v3397 = vadd.f32 %v3353, %v3365
    %v3398 = vadd.f32 %v3354, %v3369
    %v3399 = vadd.f32 %v3355, %v3373
    %v3400 = vadd.f32 %v3356, %v3377
    %v3401 = vadd.f32 %v3357, %v3381
    %v3402 = vadd.f32 %v3358, %v3385
    %v3403 = vadd.f32 %v3359, %v3389
    %v3404 = vxor.u32 %v3397, 2147483648
    %v3405 = vxor.u32 %v3398, 2147483648
    %v3406 = vxor.u32 %v3399, 2147483648
    %v3407 = vxor.u32 %v3400, 2147483648
    %v3408 = vxor.u32 %v3401, 2147483648
    %v3409 = vxor.u32 %v3402, 2147483648
    %v3410 = vxor.u32 %v3403, 2147483648
    %v3411 = vmul.f32 %v3404, 1.442695
    %v3412 = vpow.pop %v3411
    %v3413 = vmul.f32 %v3405, 1.442695
    %v3414 = vpow.pop %v3413
    %v3415 = vmul.f32 %v3406, 1.442695
    %v3416 = vpow.pop %v3415
    %v3417 = vmul.f32 %v3407, 1.442695
    %v3418 = vpow.pop %v3417
    %v3419 = vmul.f32 %v3408, 1.442695
    %v3420 = vpow.pop %v3419
    %v3421 = vmul.f32 %v3409, 1.442695
    %v3422 = vpow.pop %v3421
    %v3423 = vmul.f32 %v3410, 1.442695
    %v3424 = vpow.pop %v3423
    %v3425 = vadd.f32 %v3412, 1.0
    %v3426 = vadd.f32 %v3414, 1.0
    %v3427 = vadd.f32 %v3416, 1.0
    %v3428 = vadd.f32 %v3418, 1.0
    %v3429 = vadd.f32 %v3420, 1.0
    %v3430 = vadd.f32 %v3422, 1.0
    %v3431 = vadd.f32 %v3424, 1.0
    %v3432 = vrcp.pop %v3425
    %v3433 = vmul.f32 1.0, %v3432
    %v3434 = vrcp.pop %v3426
    %v3435 = vmul.f32 1.0, %v3434
    %v3436 = vrcp.pop %v3427
    %v3437 = vmul.f32 1.0, %v3436
    %v3438 = vrcp.pop %v3428
    %v3439 = vmul.f32 1.0, %v3438
    %v3440 = vrcp.pop %v3429
    %v3441 = vmul.f32 1.0, %v3440
    %v3442 = vrcp.pop %v3430
    %v3443 = vmul.f32 1.0, %v3442
    %v3444 = vrcp.pop %v3431
    %v3445 = vmul.f32 1.0, %v3444
    %3446 = vst [vmem:[%s10] sm:$0xff] %v3433
    %3447 = vst [vmem:[%s10 + $0x8] sm:$0xff] %v3435
    %3448 = vst [vmem:[%s10 + $0x10] sm:$0xff] %v3437
    %3449 = vst [vmem:[%s10 + $0x18] sm:$0xff] %v3439
    %3450 = vst [vmem:[%s10 + $0x20] sm:$0xff] %v3441
    %3451 = vst [vmem:[%s10 + $0x28] sm:$0xff] %v3443
    %3452 = vst [vmem:[%s10 + $0x30] sm:$0xff] %v3445
    // Predicated region
    $region66: #{decoder_forward.1} parent=1 // pred_check
      _
    $region67: #{decoder_forward.1} parent=1 // pred_check_branch
      %3454 = sbr.rel (0) target = $region69
    $region68: #{decoder_forward.1} parent=1 // pred_region
      _
    $region69: #{decoder_forward.1} parent=1 // pred_fallthru
      _
    // Predicated region
    $region70: #{decoder_forward.1} parent=1 // pred_check
      _
    $region71: #{decoder_forward.1} parent=1 // pred_check_branch
      %3456 = sbr.rel (0) target = $region73
    $region72: #{decoder_forward.1} parent=1 // pred_region
      _
    $region73: #{decoder_forward.1} parent=1 // pred_fallthru
      _
    %3457 = vsyncpa [#allocation3], 1
    %3458 = vsyncpa [#allocation5], 1
    %3459 = vsyncpa [#allocation8], 1
    %3460 = vsyncpa [#allocation11], 1

</llo_original>
